<compile_context>
chip_gen: v7x
topology: tpu7x:2x2x1
jax: 0.10.0
libtpu: 0.0.40
codegen_flags: <defaults>
</compile_context>

<pallas_src>
import functools

import jax
import jax.numpy as jnp
from jax.experimental import pallas as pl
from jax.experimental.pallas import tpu as pltpu

KS = (3, 4, 5)
K_MAX = max(KS)
LANE = 128


def _round_up(x, m):
    return (x + m - 1) // m * m


def _resident_spec(shape):
    """Constant-index (VMEM-resident) weight/bias spec; single-buffered when
    the installed JAX supports pipeline_mode on BlockSpec."""
    index_map = lambda i: (0,) * len(shape)
    try:
        return pl.BlockSpec(shape, index_map, pipeline_mode=pl.Buffered(1))
    except TypeError:  # older JAX without pipeline_mode: default buffering
        return pl.BlockSpec(shape, index_map)


def textcnn_kernel(x_ref, wconv_ref, bconv_ref, wfc_ref, bfc_ref, out_ref, *,
                   co_pad):
    T, tb, kdp = x_ref.shape
    n_lanes = wconv_ref.shape[1]

    # One fused MXU matmul for all three conv branches:
    #   (T*tb, 256) x (256, 3*CO_PAD), f32 accumulation.
    x = x_ref[...].reshape(T * tb, kdp)           # relayout-free: tb % 16 == 0
    acc = jnp.dot(x, wconv_ref[...], preferred_element_type=jnp.float32)

    # Max-pool over time, unrolled over the T sublane-aligned row slices
    # (T is small; the loop is fully static).  Trailing windows that are out
    # of range for the K=4 / K=5 branches are masked off before the max.
    neg = jnp.float32(-1e30)
    pooled = None
    for t in range(T):
        sl = acc[t * tb:(t + 1) * tb, :]                      # (tb, 3*CO_PAD)
        n_valid = min(len(KS), T - t)      # branches with a valid window here
        if n_valid < len(KS):
            lane = jax.lax.broadcasted_iota(jnp.int32, sl.shape, 1)
            sl = jnp.where(lane < n_valid * co_pad, sl, neg)
        pooled = sl if pooled is None else jnp.maximum(pooled, sl)

    # Conv bias + ReLU hoisted after the max-pool (bias constant over time,
    # ReLU monotone -> identical to relu(conv + bias) -> maxpool).
    feat = jnp.maximum(pooled + bconv_ref[...], 0.0)           # (tb, 3*CO_PAD)
    # TODO(synk): nn.Dropout(p=0.1) is identity at inference; training-mode
    # RNG mask (pltpu.prng_seed / prng_random_bits) not implemented.
    out = jnp.dot(feat.astype(wfc_ref.dtype), wfc_ref[...],
                  preferred_element_type=jnp.float32)          # (tb, OUT_PAD)
    out_ref[...] = (out + bfc_ref[...]).astype(out_ref.dtype)


def pack_params(params):
    """One-time wrapper-side repack of the weights for the fused kernel."""
    co, _, d = params['conv3_w'].shape                       # (Co, K, D)
    emb_dim = params['fc_w'].shape[0]
    co_pad = _round_up(co, LANE)
    kd_pad = _round_up(K_MAX * d, LANE)                      # 250 -> 256
    out_pad = _round_up(emb_dim, LANE)
    n_lanes = len(KS) * co_pad

    # Fused conv weight (KD_PAD, 3*CO_PAD): branch b (K = 3+b) occupies lanes
    # [b*CO_PAD, b*CO_PAD+Co); row k*D+j holds w_K[:, k, j] for k < K, else 0,
    # so one matmul against the shared K_MAX-window im2col slab evaluates all
    # three convolutions at once.
    wconv = jnp.zeros((kd_pad, n_lanes), jnp.float32)
    bconv = jnp.zeros((1, n_lanes), jnp.float32)
    for bidx, K in enumerate(KS):
        w = params[f'conv{K}_w']                             # (Co, K, D)
        wt = jnp.transpose(w, (1, 2, 0)).reshape(K * d, co)  # (K*D, Co): Co on lanes
        wconv = wconv.at[:K * d, bidx * co_pad:bidx * co_pad + co].set(wt)
        bconv = bconv.at[:, bidx * co_pad:bidx * co_pad + co].set(
            params[f'conv{K}_b'])
    wconv = wconv.astype(jnp.bfloat16)

    # fc: (emb_dim, 3*Co) -> (3*CO_PAD, OUT_PAD); rows grouped per branch to
    # match the padded pooled-feature layout inside the kernel.
    wfc = params['fc_w'].T.reshape(len(KS), co, emb_dim)
    wfc = jnp.pad(wfc, ((0, 0), (0, co_pad - co), (0, out_pad - emb_dim)))
    wfc = wfc.reshape(n_lanes, out_pad).astype(jnp.bfloat16)
    bfc = jnp.pad(params['fc_b'],
                  ((0, 0), (0, out_pad - emb_dim))).astype(jnp.float32)

    return {
        'embed': params['embed'].astype(jnp.bfloat16),        # bf16 gather table
        'conv_w': wconv, 'conv_b': bconv,
        'fc_w': wfc, 'fc_b': bfc,
        'dims': (d, kd_pad, co, co_pad, n_lanes, emb_dim, out_pad),
    }


def _choose_batch_tile(batch, T, n_lanes):
    """Pick (tb, B_pad): fill the MXU M dimension, cap the f32 conv accumulator
    at ~8 MiB (v7x 64 MiB VMEM headroom) and keep grid >= 2 when the batch
    allows it so both v7x TensorCores get work."""
    b16 = _round_up(max(batch, 1), 16)
    acc_cap = max(16, (8 * 1024 * 1024) // (T * n_lanes * 4) // 16 * 16)
    tb = min(256, acc_cap, b16)
    if b16 > 16:
        tb = min(tb, _round_up(b16 // 2, 16))   # grid >= 2 -> megacore sharding
    tb = max(tb, 16)
    b_pad = _round_up(b16, tb)
    return tb, b_pad


def textcnn_forward(tokens, packed):
    d, kd_pad, co, co_pad, n_lanes, emb_dim, out_pad = packed['dims']
    B, L = tokens.shape
    assert L >= K_MAX, "sequence must be at least as long as the largest conv kernel"
    T = L - min(KS) + 1                 # shared #windows (= #windows of the K=3 branch)

    tb, b_pad = _choose_batch_tile(B, T, n_lanes)
    grid = (b_pad // tb,)

    # bf16 embedding gather + shared K_MAX-window im2col slab, built wrapper
    # side and laid out time-major (T, B_pad, KD_PAD) so the kernel needs no
    # sublane-shifted slicing or relayouts.
    emb = jnp.take(packed['embed'], tokens, axis=0)                    # (B, L, D) bf16
    emb = jnp.pad(emb, ((0, b_pad - B), (0, K_MAX - min(KS)), (0, 0)))
    x = jnp.concatenate([emb[:, k:k + T, :] for k in range(K_MAX)], axis=-1)
    x = jnp.pad(x, ((0, 0), (0, 0), (0, kd_pad - K_MAX * d)))          # (B_pad, T, 256)
    x = jnp.transpose(x, (1, 0, 2))                                    # (T, B_pad, 256)

    in_specs = [
        pl.BlockSpec((T, tb, kd_pad), lambda i: (0, i, 0)),
        _resident_spec((kd_pad, n_lanes)),
        _resident_spec((1, n_lanes)),
        _resident_spec((n_lanes, out_pad)),
        _resident_spec((1, out_pad)),
    ]
    out_specs = pl.BlockSpec((tb, out_pad), lambda i: (i, 0))

    args = (x, packed['conv_w'], packed['conv_b'], packed['fc_w'], packed['fc_b'])
    flops = 2 * b_pad * T * kd_pad * n_lanes + 2 * b_pad * n_lanes * out_pad
    bytes_accessed = (sum(int(a.size) * a.dtype.itemsize for a in args)
                      + b_pad * out_pad * 4)

    out = pl.pallas_call(
        functools.partial(textcnn_kernel, co_pad=co_pad),
        out_shape=jax.ShapeDtypeStruct((b_pad, out_pad), jnp.float32),
        grid=grid,
        in_specs=in_specs,
        out_specs=out_specs,
        compiler_params=pltpu.CompilerParams(
            dimension_semantics=("parallel",),
            vmem_limit_bytes=32 * 1024 * 1024),
        cost_estimate=pl.CostEstimate(flops=flops, transcendentals=0,
                                      bytes_accessed=bytes_accessed),
    )(*args)
    return out[:B, :emb_dim]


def textcnn_reference(tokens, params):
    """Pure-JAX f32 reference mirroring the PyTorch module (eval mode)."""
    emb = params['embed'][tokens]                                     # (B, L, D) f32
    L = emb.shape[1]
    feats = []
    for K in KS:
        w = params[f'conv{K}_w']                                      # (Co, K, D)
        b = params[f'conv{K}_b']                                      # (1, Co)
        tK = L - K + 1
        win = jnp.stack([emb[:, t:t + K, :] for t in range(tK)], axis=1)  # (B, tK, K, D)
        conv = jnp.einsum('btkd,okd->bto', win, w) + b[:, None, :]
        feats.append(jnp.max(jax.nn.relu(conv), axis=1))              # (B, Co)
    feat = jnp.concatenate(feats, axis=1)                             # (B, 3*Co)
    return feat @ params['fc_w'].T + params['fc_b']


def init_params(key, vocab_size, word_embed_dim, co, emb_dim):
    ks = jax.random.split(key, 10)
    params = {
        'embed': jax.random.normal(ks[0], (vocab_size, word_embed_dim), jnp.float32),
        'conv3_w': 0.05 * jax.random.normal(ks[1], (co, 3, word_embed_dim), jnp.float32),
        'conv3_b': 0.05 * jax.random.normal(ks[2], (1, co), jnp.float32),
        'conv4_w': 0.05 * jax.random.normal(ks[3], (co, 4, word_embed_dim), jnp.float32),
        'conv4_b': 0.05 * jax.random.normal(ks[4], (1, co), jnp.float32),
        'conv5_w': 0.05 * jax.random.normal(ks[5], (co, 5, word_embed_dim), jnp.float32),
        'conv5_b': 0.05 * jax.random.normal(ks[6], (1, co), jnp.float32),
        'fc_w': 0.02 * jax.random.normal(ks[7], (emb_dim, 3 * co), jnp.float32),
        'fc_b': 0.02 * jax.random.normal(ks[8], (1, emb_dim), jnp.float32),
    }
    return params, ks[9]


if __name__ == "__main__":
    # Module defaults: word_embed_dim=50, Co=1000, Ks=[3,4,5], emb_dim=104.
    VOCAB, D, CO, EMB_DIM = 100, 50, 1000, 104
    B, L = 2, 8                                          # small batch / sequence

    key = jax.random.PRNGKey(0)
    params, tok_key = init_params(key, VOCAB, D, CO, EMB_DIM)
    tokens = jax.random.randint(tok_key, (B, L), 0, VOCAB, dtype=jnp.int32)

    packed = pack_params(params)
    out = jax.block_until_ready(textcnn_forward(tokens, packed))

    assert out.shape == (B, EMB_DIM), out.shape
    assert out.dtype == jnp.float32
    assert bool(jnp.all(jnp.isfinite(out)))

    # bf16-matmul kernel vs f32 reference: loose tolerance, catches packing bugs.
    ref = textcnn_reference(tokens, params)
    err = float(jnp.max(jnp.abs(out - ref)))
    assert err < 0.15, f"max abs error vs reference: {err}"

    print("KERNEL_OK")
</pallas_src>

<mosaic_0001>
module attributes {stable_mosaic.version = 11 : i64} {
  func.func @textcnn_kernel(%arg0: i32, %arg1: memref<6x16x256xbf16, #tpu.memory_space<vmem>>, %arg2: memref<256x3072xbf16, #tpu.memory_space<vmem>>, %arg3: memref<1x3072xf32, #tpu.memory_space<vmem>>, %arg4: memref<3072x128xbf16, #tpu.memory_space<vmem>>, %arg5: memref<1x128xf32, #tpu.memory_space<vmem>>, %arg6: memref<16x128xf32, #tpu.memory_space<vmem>>) attributes {dimension_semantics = [#tpu.dimension_semantics<parallel>], iteration_bounds = array<i64: 1>, scalar_prefetch = 0 : i64, scratch_operands = 0 : i64, tpu.core_type = #tpu.core_type<tc>, window_params = [{transform_indices = @transform_0, window_bounds = array<i64: 6, 16, 256>}, {pipeline_mode = #tpu.pipeline_mode<synchronous>, transform_indices = @transform_1, window_bounds = array<i64: 256, 3072>}, {pipeline_mode = #tpu.pipeline_mode<synchronous>, transform_indices = @transform_2, window_bounds = array<i64: 1, 3072>}, {pipeline_mode = #tpu.pipeline_mode<synchronous>, transform_indices = @transform_3, window_bounds = array<i64: 3072, 128>}, {pipeline_mode = #tpu.pipeline_mode<synchronous>, transform_indices = @transform_4, window_bounds = array<i64: 1, 128>}, {transform_indices = @transform_5, window_bounds = array<i64: 16, 128>}]} {
    %c0 = arith.constant 0 : index
    %c0_0 = arith.constant 0 : index
    %c0_1 = arith.constant 0 : index
    %0 = vector.load %arg1[%c0, %c0_0, %c0_1] : memref<6x16x256xbf16, #tpu.memory_space<vmem>>, vector<6x16x256xbf16>
    %1 = vector.shape_cast %0 : vector<6x16x256xbf16> to vector<96x256xbf16>
    %c0_2 = arith.constant 0 : index
    %c0_3 = arith.constant 0 : index
    %2 = vector.load %arg2[%c0_2, %c0_3] : memref<256x3072xbf16, #tpu.memory_space<vmem>>, vector<256x3072xbf16>
    %cst = arith.constant dense<0.000000e+00> : vector<96x3072xf32>
    %3 = tpu.matmul %1, %2, %cst {dimension_numbers = #tpu.dot_dimension_numbers<[1], [0], [0], [1], [0, 0, 1, 1], [], []>} : vector<96x256xbf16>, vector<256x3072xbf16>, vector<96x3072xf32> -> vector<96x3072xf32>
    %4 = vector.extract_strided_slice %3 {offsets = [0, 0], sizes = [16, 3072], strides = [1, 1]} : vector<96x3072xf32> to vector<16x3072xf32>
    %5 = vector.extract_strided_slice %3 {offsets = [16, 0], sizes = [16, 3072], strides = [1, 1]} : vector<96x3072xf32> to vector<16x3072xf32>
    %6 = arith.maximumf %4, %5 : vector<16x3072xf32>
    %7 = vector.extract_strided_slice %3 {offsets = [32, 0], sizes = [16, 3072], strides = [1, 1]} : vector<96x3072xf32> to vector<16x3072xf32>
    %8 = arith.maximumf %6, %7 : vector<16x3072xf32>
    %9 = vector.extract_strided_slice %3 {offsets = [48, 0], sizes = [16, 3072], strides = [1, 1]} : vector<96x3072xf32> to vector<16x3072xf32>
    %10 = arith.maximumf %8, %9 : vector<16x3072xf32>
    %11 = vector.extract_strided_slice %3 {offsets = [64, 0], sizes = [16, 3072], strides = [1, 1]} : vector<96x3072xf32> to vector<16x3072xf32>
    %12 = tpu.iota {dimensions = array<i32: 1>} : vector<16x3072xi32>
    %c2048_i32 = arith.constant 2048 : i32
    %13 = vector.broadcast %c2048_i32 : i32 to vector<16x3072xi32>
    %14 = arith.cmpi slt, %12, %13 : vector<16x3072xi32>
    %cst_4 = arith.constant -1.000000e+30 : f32
    %15 = vector.broadcast %cst_4 : f32 to vector<16x3072xf32>
    %16 = arith.select %14, %11, %15 : vector<16x3072xi1>, vector<16x3072xf32>
    %17 = arith.maximumf %10, %16 : vector<16x3072xf32>
    %18 = vector.extract_strided_slice %3 {offsets = [80, 0], sizes = [16, 3072], strides = [1, 1]} : vector<96x3072xf32> to vector<16x3072xf32>
    %19 = tpu.iota {dimensions = array<i32: 1>} : vector<16x3072xi32>
    %c1024_i32 = arith.constant 1024 : i32
    %20 = vector.broadcast %c1024_i32 : i32 to vector<16x3072xi32>
    %21 = arith.cmpi slt, %19, %20 : vector<16x3072xi32>
    %cst_5 = arith.constant -1.000000e+30 : f32
    %22 = vector.broadcast %cst_5 : f32 to vector<16x3072xf32>
    %23 = arith.select %21, %18, %22 : vector<16x3072xi1>, vector<16x3072xf32>
    %24 = arith.maximumf %17, %23 : vector<16x3072xf32>
    %c0_6 = arith.constant 0 : index
    %c0_7 = arith.constant 0 : index
    %25 = vector.load %arg3[%c0_6, %c0_7] : memref<1x3072xf32, #tpu.memory_space<vmem>>, vector<1x3072xf32>
    %26 = vector.broadcast %25 : vector<1x3072xf32> to vector<16x3072xf32>
    %27 = arith.addf %24, %26 : vector<16x3072xf32>
    %cst_8 = arith.constant 0.000000e+00 : f32
    %28 = vector.broadcast %cst_8 : f32 to vector<16x3072xf32>
    %29 = arith.maximumf %27, %28 : vector<16x3072xf32>
    %30 = arith.truncf %29 : vector<16x3072xf32> to vector<16x3072xbf16>
    %c0_9 = arith.constant 0 : index
    %c0_10 = arith.constant 0 : index
    %31 = vector.load %arg4[%c0_9, %c0_10] : memref<3072x128xbf16, #tpu.memory_space<vmem>>, vector<3072x128xbf16>
    %cst_11 = arith.constant dense<0.000000e+00> : vector<16x128xf32>
    %32 = tpu.matmul %30, %31, %cst_11 {dimension_numbers = #tpu.dot_dimension_numbers<[1], [0], [0], [1], [0, 0, 1, 1], [], []>} : vector<16x3072xbf16>, vector<3072x128xbf16>, vector<16x128xf32> -> vector<16x128xf32>
    %c0_12 = arith.constant 0 : index
    %c0_13 = arith.constant 0 : index
    %33 = vector.load %arg5[%c0_12, %c0_13] : memref<1x128xf32, #tpu.memory_space<vmem>>, vector<1x128xf32>
    %34 = vector.broadcast %33 : vector<1x128xf32> to vector<16x128xf32>
    %35 = arith.addf %32, %34 : vector<16x128xf32>
    %c0_14 = arith.constant 0 : index
    %c0_15 = arith.constant 0 : index
    %36 = vector.load %arg6[%c0_14, %c0_15] : memref<16x128xf32, #tpu.memory_space<vmem>>, vector<16x128xf32>
    tpu.vector_store %arg6[%c0_14, %c0_15], %35 {strides = array<i32>} : memref<16x128xf32, #tpu.memory_space<vmem>>, vector<16x128xf32>,
    return
  }
  func.func @transform_0(%arg0: i32) -> (i32, i32, i32) {
    %c0_i32 = arith.constant 0 : i32
    %c0_i32_0 = arith.constant 0 : i32
    %c0_i32_1 = arith.constant 0 : i32
    return %c0_i32, %arg0, %c0_i32_0 : i32, i32, i32
  }
  func.func @transform_1(%arg0: i32) -> (i32, i32) {
    %c0_i32 = arith.constant 0 : i32
    %c0_i32_0 = arith.constant 0 : i32
    %c0_i32_1 = arith.constant 0 : i32
    return %c0_i32, %c0_i32_0 : i32, i32
  }
  func.func @transform_2(%arg0: i32) -> (i32, i32) {
    %c0_i32 = arith.constant 0 : i32
    %c0_i32_0 = arith.constant 0 : i32
    %c0_i32_1 = arith.constant 0 : i32
    return %c0_i32, %c0_i32_0 : i32, i32
  }
  func.func @transform_3(%arg0: i32) -> (i32, i32) {
    %c0_i32 = arith.constant 0 : i32
    %c0_i32_0 = arith.constant 0 : i32
    %c0_i32_1 = arith.constant 0 : i32
    return %c0_i32, %c0_i32_0 : i32, i32
  }
  func.func @transform_4(%arg0: i32) -> (i32, i32) {
    %c0_i32 = arith.constant 0 : i32
    %c0_i32_0 = arith.constant 0 : i32
    %c0_i32_1 = arith.constant 0 : i32
    return %c0_i32, %c0_i32_0 : i32, i32
  }
  func.func @transform_5(%arg0: i32) -> (i32, i32) {
    %c0_i32 = arith.constant 0 : i32
    %c0_i32_0 = arith.constant 0 : i32
    return %arg0, %c0_i32 : i32, i32
  }
}

</mosaic_0001>

<llo_original>
// kernel: tpu_custom_call.1
$region0: #{tpu_custom_call.1}
  #allocation0 [shape = 'u32[]', space=smem, size = 0x4, offset = 0x4, fixed_abs, tag = 'smem constant byte address 0x4 - core index']
  #allocation1 [shape = 'u32[144,128]{1,0:T(1,128)}', space=vmem, size = 0x12000, scoped, tag = 'internal scratch']
  %s0 = inlined_call_operand.hbm [shape: bf16[6,16,256], index: 0, kind: input, shape index: {}]
  %s1 = inlined_call_operand.hbm [shape: bf16[256,3072], index: 1, kind: input, shape index: {}]
  %s2 = inlined_call_operand.hbm [shape: f32[1,3072], index: 2, kind: input, shape index: {}]
  %s3 = inlined_call_operand.hbm [shape: bf16[3072,128], index: 3, kind: input, shape index: {}]
  %s4 = inlined_call_operand.hbm [shape: f32[1,128], index: 4, kind: input, shape index: {}]
  %s5 = inlined_call_operand.hbm [shape: f32[16,128], index: 5, kind: output, shape index: {}]
  %s6 = sld [smem:[#allocation0]]
  $region50: #{tpu_custom_call.1} parent=0
    _
  %s8 = ssub.s32 1, %s6
  %s9 = scalar_select 0, %s8, %s6
  $region1: #{tpu_custom_call.1} parent=0
    #allocation2 [shape = 'u8[49152]{0}', space=vmem, size = 0xc000, scoped, tag = 'input window, operand 0, single buffered']
    #allocation3 [shape = 's32[1]{0}', space=sflag, size = 0x4, scoped, tag = 'scoped memory for tpu_custom_call.1']
    #allocation4 [shape = 's32[1]{0}', space=sflag, size = 0x4, scoped, tag = 'scoped memory for tpu_custom_call.1']
    #allocation5 [shape = 'u8[1572864]{0}', space=vmem, size = 0x180000, scoped, tag = 'input window, operand 1, single buffered']
    #allocation6 [shape = 's32[1]{0}', space=sflag, size = 0x4, scoped, tag = 'scoped memory for tpu_custom_call.1']
    #allocation7 [shape = 'u8[12288]{0}', space=vmem, size = 0x3000, scoped, tag = 'input window, operand 2, single buffered']
    #allocation8 [shape = 'u8[786432]{0}', space=vmem, size = 0xc0000, scoped, tag = 'input window, operand 3, single buffered']
    #allocation9 [shape = 's32[1]{0}', space=sflag, size = 0x4, scoped, tag = 'scoped memory for tpu_custom_call.1']
    #allocation10 [shape = 'u8[512]{0}', space=vmem, size = 0x400, scoped, tag = 'input window, operand 4, single buffered']
    #allocation11 [shape = 'u8[8192]{0}', space=vmem, size = 0x2000, scoped, tag = 'output window, operand 0, single buffered']
    %10 = vsyncpa [#allocation3], 0
    %11 = vsyncpa [#allocation6], 0
    %12 = vsyncpa [#allocation9], 0
    %13 = vsyncpa [#allocation4], 0
    // Predicated region
    $region2: #{tpu_custom_call.1} parent=1 // pred_check
      _
    $region3: #{tpu_custom_call.1} parent=1 // pred_check_branch
      %15 = sbr.rel (0) target = $region5
    $region4: #{tpu_custom_call.1} parent=1 // pred_region
      %s17 = ssub.s32 1536, 1536
      %18 = vsyncadd [#allocation3], %s17
      %s19 = sshll.u32 [#allocation2], 4
      %s20 = int_to_ptr.vmem [resolvable:$true] %s19
      %25 = dma.hbm_to_vmem [thread:$0]  %s0, 1536, %s20, [#allocation3], 128, 128, 8
    $region5: #{tpu_custom_call.1} parent=1 // pred_fallthru
      _
    // Predicated region
    $region6: #{tpu_custom_call.1} parent=1 // pred_check
      _
    $region7: #{tpu_custom_call.1} parent=1 // pred_check_branch
      %27 = sbr.rel (0) target = $region9
    $region8: #{tpu_custom_call.1} parent=1 // pred_region
      %s29 = ssub.s32 49152, 49152
      %30 = vsyncadd [#allocation6], %s29
      %s31 = sshll.u32 [#allocation5], 4
      %s32 = int_to_ptr.vmem [resolvable:$true] %s31
      %37 = dma.hbm_to_vmem [thread:$0]  %s1, 49152, %s32, [#allocation6], 1536, 1536, 96
    $region9: #{tpu_custom_call.1} parent=1 // pred_fallthru
      _
    // Predicated region
    $region10: #{tpu_custom_call.1} parent=1 // pred_check
      _
    $region11: #{tpu_custom_call.1} parent=1 // pred_check_branch
      %39 = sbr.rel (0) target = $region13
    $region12: #{tpu_custom_call.1} parent=1 // pred_region
      %s41 = ssub.s32 384, 384
      %42 = vsyncadd [#allocation6], %s41
      %s44 = sshll.u32 [#allocation7], 4
      %s45 = int_to_ptr.vmem [resolvable:$true] %s44
      %47 = dma.hbm_to_vmem [thread:$0]  %s2, 384, %s45, [#allocation6]
    $region13: #{tpu_custom_call.1} parent=1 // pred_fallthru
      _
    // Predicated region
    $region14: #{tpu_custom_call.1} parent=1 // pred_check
      _
    $region15: #{tpu_custom_call.1} parent=1 // pred_check_branch
      %49 = sbr.rel (0) target = $region17
    $region16: #{tpu_custom_call.1} parent=1 // pred_region
      %s51 = ssub.s32 24576, 24576
      %52 = vsyncadd [#allocation9], %s51
      %s53 = sshll.u32 [#allocation8], 4
      %s54 = int_to_ptr.vmem [resolvable:$true] %s53
      %59 = dma.hbm_to_vmem [thread:$0]  %s3, 24576, %s54, [#allocation9], 64, 64, 4
    $region17: #{tpu_custom_call.1} parent=1 // pred_fallthru
      _
    // Predicated region
    $region18: #{tpu_custom_call.1} parent=1 // pred_check
      _
    $region19: #{tpu_custom_call.1} parent=1 // pred_check_branch
      %61 = sbr.rel (0) target = $region21
    $region20: #{tpu_custom_call.1} parent=1 // pred_region
      %s63 = ssub.s32 16, 16
      %64 = vsyncadd [#allocation9], %s63
      %s66 = sshll.u32 [#allocation10], 4
      %s67 = int_to_ptr.vmem [resolvable:$true] %s66
      %69 = dma.hbm_to_vmem [thread:$0]  %s4, 16, %s67, [#allocation9]
    $region21: #{tpu_custom_call.1} parent=1 // pred_fallthru
      _
    // Predicated region
    $region22: #{tpu_custom_call.1} parent=1 // pred_check
      _
    $region23: #{tpu_custom_call.1} parent=1 // pred_check_branch
      %71 = sbr.rel (0) target = $region25
    $region24: #{tpu_custom_call.1} parent=1 // pred_region
      %72 = dma.done [#allocation3], 1536
    $region25: #{tpu_custom_call.1} parent=1 // pred_fallthru
      _
    // Predicated region
    $region26: #{tpu_custom_call.1} parent=1 // pred_check
      _
    $region27: #{tpu_custom_call.1} parent=1 // pred_check_branch
      %74 = sbr.rel (0) target = $region29
    $region28: #{tpu_custom_call.1} parent=1 // pred_region
      %75 = dma.done [#allocation6], 49152
    $region29: #{tpu_custom_call.1} parent=1 // pred_fallthru
      _
    // Predicated region
    $region30: #{tpu_custom_call.1} parent=1 // pred_check
      _
    $region31: #{tpu_custom_call.1} parent=1 // pred_check_branch
      %77 = sbr.rel (0) target = $region33
    $region32: #{tpu_custom_call.1} parent=1 // pred_region
      %78 = dma.done [#allocation6], 384
    $region33: #{tpu_custom_call.1} parent=1 // pred_fallthru
      _
    // Predicated region
    $region34: #{tpu_custom_call.1} parent=1 // pred_check
      _
    $region35: #{tpu_custom_call.1} parent=1 // pred_check_branch
      %80 = sbr.rel (0) target = $region37
    $region36: #{tpu_custom_call.1} parent=1 // pred_region
      %81 = dma.done [#allocation9], 24576
    $region37: #{tpu_custom_call.1} parent=1 // pred_fallthru
      _
    // Predicated region
    $region38: #{tpu_custom_call.1} parent=1 // pred_check
      _
    $region39: #{tpu_custom_call.1} parent=1 // pred_check_branch
      %83 = sbr.rel (0) target = $region41
    $region40: #{tpu_custom_call.1} parent=1 // pred_region
      %84 = dma.done [#allocation9], 16
    $region41: #{tpu_custom_call.1} parent=1 // pred_fallthru
      _
    %v86 = vld [vmem:[#allocation2] sm:$0xff]
    %v87 = vld [vmem:[#allocation2 + $0x8] sm:$0xff]
    %v88 = vld [vmem:[#allocation2 + $0x10] sm:$0xff]
    %v89 = vld [vmem:[#allocation2 + $0x18] sm:$0xff]
    %v90 = vld [vmem:[#allocation2 + $0x20] sm:$0xff]
    %v91 = vld [vmem:[#allocation2 + $0x28] sm:$0xff]
    %v92 = vld [vmem:[#allocation2 + $0x30] sm:$0xff]
    %v93 = vld [vmem:[#allocation2 + $0x38] sm:$0xff]
    %v94 = vld [vmem:[#allocation2 + $0x40] sm:$0xff]
    %v95 = vld [vmem:[#allocation2 + $0x48] sm:$0xff]
    %v96 = vld [vmem:[#allocation2 + $0x50] sm:$0xff]
    %v97 = vld [vmem:[#allocation2 + $0x58] sm:$0xff]
    %v98 = vld [vmem:[#allocation5] sm:$0xff]
    %v99 = vld [vmem:[#allocation5 + $0x8] sm:$0xff]
    %v100 = vld [vmem:[#allocation5 + $0x10] sm:$0xff]
    %v101 = vld [vmem:[#allocation5 + $0x18] sm:$0xff]
    %v102 = vld [vmem:[#allocation5 + $0x20] sm:$0xff]
    %v103 = vld [vmem:[#allocation5 + $0x28] sm:$0xff]
    %v104 = vld [vmem:[#allocation5 + $0x30] sm:$0xff]
    %v105 = vld [vmem:[#allocation5 + $0x38] sm:$0xff]
    %v106 = vld [vmem:[#allocation5 + $0x40] sm:$0xff]
    %v107 = vld [vmem:[#allocation5 + $0x48] sm:$0xff]
    %v108 = vld [vmem:[#allocation5 + $0x50] sm:$0xff]
    %v109 = vld [vmem:[#allocation5 + $0x58] sm:$0xff]
    %v110 = vld [vmem:[#allocation5 + $0x60] sm:$0xff]
    %v111 = vld [vmem:[#allocation5 + $0x68] sm:$0xff]
    %v112 = vld [vmem:[#allocation5 + $0x70] sm:$0xff]
    %v113 = vld [vmem:[#allocation5 + $0x78] sm:$0xff]
    %v114 = vld [vmem:[#allocation5 + $0x80] sm:$0xff]
    %v115 = vld [vmem:[#allocation5 + $0x88] sm:$0xff]
    %v116 = vld [vmem:[#allocation5 + $0x90] sm:$0xff]
    %v117 = vld [vmem:[#allocation5 + $0x98] sm:$0xff]
    %v118 = vld [vmem:[#allocation5 + $0xa0] sm:$0xff]
    %v119 = vld [vmem:[#allocation5 + $0xa8] sm:$0xff]
    %v120 = vld [vmem:[#allocation5 + $0xb0] sm:$0xff]
    %v121 = vld [vmem:[#allocation5 + $0xb8] sm:$0xff]
    %v122 = vld [vmem:[#allocation5 + $0xc0] sm:$0xff]
    %v123 = vld [vmem:[#allocation5 + $0xc8] sm:$0xff]
    %v124 = vld [vmem:[#allocation5 + $0xd0] sm:$0xff]
    %v125 = vld [vmem:[#allocation5 + $0xd8] sm:$0xff]
    %v126 = vld [vmem:[#allocation5 + $0xe0] sm:$0xff]
    %v127 = vld [vmem:[#allocation5 + $0xe8] sm:$0xff]
    %v128 = vld [vmem:[#allocation5 + $0xf0] sm:$0xff]
    %v129 = vld [vmem:[#allocation5 + $0xf8] sm:$0xff]
    %v130 = vld [vmem:[#allocation5 + $0x100] sm:$0xff]
    %v131 = vld [vmem:[#allocation5 + $0x108] sm:$0xff]
    %v132 = vld [vmem:[#allocation5 + $0x110] sm:$0xff]
    %v133 = vld [vmem:[#allocation5 + $0x118] sm:$0xff]
    %v134 = vld [vmem:[#allocation5 + $0x120] sm:$0xff]
    %v135 = vld [vmem:[#allocation5 + $0x128] sm:$0xff]
    %v136 = vld [vmem:[#allocation5 + $0x130] sm:$0xff]
    %v137 = vld [vmem:[#allocation5 + $0x138] sm:$0xff]
    %v138 = vld [vmem:[#allocation5 + $0x140] sm:$0xff]
    %v139 = vld [vmem:[#allocation5 + $0x148] sm:$0xff]
    %v140 = vld [vmem:[#allocation5 + $0x150] sm:$0xff]
    %v141 = vld [vmem:[#allocation5 + $0x158] sm:$0xff]
    %v142 = vld [vmem:[#allocation5 + $0x160] sm:$0xff]
    %v143 = vld [vmem:[#allocation5 + $0x168] sm:$0xff]
    %v144 = vld [vmem:[#allocation5 + $0x170] sm:$0xff]
    %v145 = vld [vmem:[#allocation5 + $0x178] sm:$0xff]
    %v146 = vld [vmem:[#allocation5 + $0x180] sm:$0xff]
    %v147 = vld [vmem:[#allocation5 + $0x188] sm:$0xff]
    %v148 = vld [vmem:[#allocation5 + $0x190] sm:$0xff]
    %v149 = vld [vmem:[#allocation5 + $0x198] sm:$0xff]
    %v150 = vld [vmem:[#allocation5 + $0x1a0] sm:$0xff]
    %v151 = vld [vmem:[#allocation5 + $0x1a8] sm:$0xff]
    %v152 = vld [vmem:[#allocation5 + $0x1b0] sm:$0xff]
    %v153 = vld [vmem:[#allocation5 + $0x1b8] sm:$0xff]
    %v154 = vld [vmem:[#allocation5 + $0x1c0] sm:$0xff]
    %v155 = vld [vmem:[#allocation5 + $0x1c8] sm:$0xff]
    %v156 = vld [vmem:[#allocation5 + $0x1d0] sm:$0xff]
    %v157 = vld [vmem:[#allocation5 + $0x1d8] sm:$0xff]
    %v158 = vld [vmem:[#allocation5 + $0x1e0] sm:$0xff]
    %v159 = vld [vmem:[#allocation5 + $0x1e8] sm:$0xff]
    %v160 = vld [vmem:[#allocation5 + $0x1f0] sm:$0xff]
    %v161 = vld [vmem:[#allocation5 + $0x1f8] sm:$0xff]
    %v162 = vld [vmem:[#allocation5 + $0x200] sm:$0xff]
    %v163 = vld [vmem:[#allocation5 + $0x208] sm:$0xff]
    %v164 = vld [vmem:[#allocation5 + $0x210] sm:$0xff]
    %v165 = vld [vmem:[#allocation5 + $0x218] sm:$0xff]
    %v166 = vld [vmem:[#allocation5 + $0x220] sm:$0xff]
    %v167 = vld [vmem:[#allocation5 + $0x228] sm:$0xff]
    %v168 = vld [vmem:[#allocation5 + $0x230] sm:$0xff]
    %v169 = vld [vmem:[#allocation5 + $0x238] sm:$0xff]
    %v170 = vld [vmem:[#allocation5 + $0x240] sm:$0xff]
    %v171 = vld [vmem:[#allocation5 + $0x248] sm:$0xff]
    %v172 = vld [vmem:[#allocation5 + $0x250] sm:$0xff]
    %v173 = vld [vmem:[#allocation5 + $0x258] sm:$0xff]
    %v174 = vld [vmem:[#allocation5 + $0x260] sm:$0xff]
    %v175 = vld [vmem:[#allocation5 + $0x268] sm:$0xff]
    %v176 = vld [vmem:[#allocation5 + $0x270] sm:$0xff]
    %v177 = vld [vmem:[#allocation5 + $0x278] sm:$0xff]
    %v178 = vld [vmem:[#allocation5 + $0x280] sm:$0xff]
    %v179 = vld [vmem:[#allocation5 + $0x288] sm:$0xff]
    %v180 = vld [vmem:[#allocation5 + $0x290] sm:$0xff]
    %v181 = vld [vmem:[#allocation5 + $0x298] sm:$0xff]
    %v182 = vld [vmem:[#allocation5 + $0x2a0] sm:$0xff]
    %v183 = vld [vmem:[#allocation5 + $0x2a8] sm:$0xff]
    %v184 = vld [vmem:[#allocation5 + $0x2b0] sm:$0xff]
    %v185 = vld [vmem:[#allocation5 + $0x2b8] sm:$0xff]
    %v186 = vld [vmem:[#allocation5 + $0x2c0] sm:$0xff]
    %v187 = vld [vmem:[#allocation5 + $0x2c8] sm:$0xff]
    %v188 = vld [vmem:[#allocation5 + $0x2d0] sm:$0xff]
    %v189 = vld [vmem:[#allocation5 + $0x2d8] sm:$0xff]
    %v190 = vld [vmem:[#allocation5 + $0x2e0] sm:$0xff]
    %v191 = vld [vmem:[#allocation5 + $0x2e8] sm:$0xff]
    %v192 = vld [vmem:[#allocation5 + $0x2f0] sm:$0xff]
    %v193 = vld [vmem:[#allocation5 + $0x2f8] sm:$0xff]
    %v194 = vld [vmem:[#allocation5 + $0x300] sm:$0xff]
    %v195 = vld [vmem:[#allocation5 + $0x308] sm:$0xff]
    %v196 = vld [vmem:[#allocation5 + $0x310] sm:$0xff]
    %v197 = vld [vmem:[#allocation5 + $0x318] sm:$0xff]
    %v198 = vld [vmem:[#allocation5 + $0x320] sm:$0xff]
    %v199 = vld [vmem:[#allocation5 + $0x328] sm:$0xff]
    %v200 = vld [vmem:[#allocation5 + $0x330] sm:$0xff]
    %v201 = vld [vmem:[#allocation5 + $0x338] sm:$0xff]
    %v202 = vld [vmem:[#allocation5 + $0x340] sm:$0xff]
    %v203 = vld [vmem:[#allocation5 + $0x348] sm:$0xff]
    %v204 = vld [vmem:[#allocation5 + $0x350] sm:$0xff]
    %v205 = vld [vmem:[#allocation5 + $0x358] sm:$0xff]
    %v206 = vld [vmem:[#allocation5 + $0x360] sm:$0xff]
    %v207 = vld [vmem:[#allocation5 + $0x368] sm:$0xff]
    %v208 = vld [vmem:[#allocation5 + $0x370] sm:$0xff]
    %v209 = vld [vmem:[#allocation5 + $0x378] sm:$0xff]
    %v210 = vld [vmem:[#allocation5 + $0x380] sm:$0xff]
    %v211 = vld [vmem:[#allocation5 + $0x388] sm:$0xff]
    %v212 = vld [vmem:[#allocation5 + $0x390] sm:$0xff]
    %v213 = vld [vmem:[#allocation5 + $0x398] sm:$0xff]
    %v214 = vld [vmem:[#allocation5 + $0x3a0] sm:$0xff]
    %v215 = vld [vmem:[#allocation5 + $0x3a8] sm:$0xff]
    %v216 = vld [vmem:[#allocation5 + $0x3b0] sm:$0xff]
    %v217 = vld [vmem:[#allocation5 + $0x3b8] sm:$0xff]
    %v218 = vld [vmem:[#allocation5 + $0x3c0] sm:$0xff]
    %v219 = vld [vmem:[#allocation5 + $0x3c8] sm:$0xff]
    %v220 = vld [vmem:[#allocation5 + $0x3d0] sm:$0xff]
    %v221 = vld [vmem:[#allocation5 + $0x3d8] sm:$0xff]
    %v222 = vld [vmem:[#allocation5 + $0x3e0] sm:$0xff]
    %v223 = vld [vmem:[#allocation5 + $0x3e8] sm:$0xff]
    %v224 = vld [vmem:[#allocation5 + $0x3f0] sm:$0xff]
    %v225 = vld [vmem:[#allocation5 + $0x3f8] sm:$0xff]
    %v226 = vld [vmem:[#allocation5 + $0x400] sm:$0xff]
    %v227 = vld [vmem:[#allocation5 + $0x408] sm:$0xff]
    %v228 = vld [vmem:[#allocation5 + $0x410] sm:$0xff]
    %v229 = vld [vmem:[#allocation5 + $0x418] sm:$0xff]
    %v230 = vld [vmem:[#allocation5 + $0x420] sm:$0xff]
    %v231 = vld [vmem:[#allocation5 + $0x428] sm:$0xff]
    %v232 = vld [vmem:[#allocation5 + $0x430] sm:$0xff]
    %v233 = vld [vmem:[#allocation5 + $0x438] sm:$0xff]
    %v234 = vld [vmem:[#allocation5 + $0x440] sm:$0xff]
    %v235 = vld [vmem:[#allocation5 + $0x448] sm:$0xff]
    %v236 = vld [vmem:[#allocation5 + $0x450] sm:$0xff]
    %v237 = vld [vmem:[#allocation5 + $0x458] sm:$0xff]
    %v238 = vld [vmem:[#allocation5 + $0x460] sm:$0xff]
    %v239 = vld [vmem:[#allocation5 + $0x468] sm:$0xff]
    %v240 = vld [vmem:[#allocation5 + $0x470] sm:$0xff]
    %v241 = vld [vmem:[#allocation5 + $0x478] sm:$0xff]
    %v242 = vld [vmem:[#allocation5 + $0x480] sm:$0xff]
    %v243 = vld [vmem:[#allocation5 + $0x488] sm:$0xff]
    %v244 = vld [vmem:[#allocation5 + $0x490] sm:$0xff]
    %v245 = vld [vmem:[#allocation5 + $0x498] sm:$0xff]
    %v246 = vld [vmem:[#allocation5 + $0x4a0] sm:$0xff]
    %v247 = vld [vmem:[#allocation5 + $0x4a8] sm:$0xff]
    %v248 = vld [vmem:[#allocation5 + $0x4b0] sm:$0xff]
    %v249 = vld [vmem:[#allocation5 + $0x4b8] sm:$0xff]
    %v250 = vld [vmem:[#allocation5 + $0x4c0] sm:$0xff]
    %v251 = vld [vmem:[#allocation5 + $0x4c8] sm:$0xff]
    %v252 = vld [vmem:[#allocation5 + $0x4d0] sm:$0xff]
    %v253 = vld [vmem:[#allocation5 + $0x4d8] sm:$0xff]
    %v254 = vld [vmem:[#allocation5 + $0x4e0] sm:$0xff]
    %v255 = vld [vmem:[#allocation5 + $0x4e8] sm:$0xff]
    %v256 = vld [vmem:[#allocation5 + $0x4f0] sm:$0xff]
    %v257 = vld [vmem:[#allocation5 + $0x4f8] sm:$0xff]
    %v258 = vld [vmem:[#allocation5 + $0x500] sm:$0xff]
    %v259 = vld [vmem:[#allocation5 + $0x508] sm:$0xff]
    %v260 = vld [vmem:[#allocation5 + $0x510] sm:$0xff]
    %v261 = vld [vmem:[#allocation5 + $0x518] sm:$0xff]
    %v262 = vld [vmem:[#allocation5 + $0x520] sm:$0xff]
    %v263 = vld [vmem:[#allocation5 + $0x528] sm:$0xff]
    %v264 = vld [vmem:[#allocation5 + $0x530] sm:$0xff]
    %v265 = vld [vmem:[#allocation5 + $0x538] sm:$0xff]
    %v266 = vld [vmem:[#allocation5 + $0x540] sm:$0xff]
    %v267 = vld [vmem:[#allocation5 + $0x548] sm:$0xff]
    %v268 = vld [vmem:[#allocation5 + $0x550] sm:$0xff]
    %v269 = vld [vmem:[#allocation5 + $0x558] sm:$0xff]
    %v270 = vld [vmem:[#allocation5 + $0x560] sm:$0xff]
    %v271 = vld [vmem:[#allocation5 + $0x568] sm:$0xff]
    %v272 = vld [vmem:[#allocation5 + $0x570] sm:$0xff]
    %v273 = vld [vmem:[#allocation5 + $0x578] sm:$0xff]
    %v274 = vld [vmem:[#allocation5 + $0x580] sm:$0xff]
    %v275 = vld [vmem:[#allocation5 + $0x588] sm:$0xff]
    %v276 = vld [vmem:[#allocation5 + $0x590] sm:$0xff]
    %v277 = vld [vmem:[#allocation5 + $0x598] sm:$0xff]
    %v278 = vld [vmem:[#allocation5 + $0x5a0] sm:$0xff]
    %v279 = vld [vmem:[#allocation5 + $0x5a8] sm:$0xff]
    %v280 = vld [vmem:[#allocation5 + $0x5b0] sm:$0xff]
    %v281 = vld [vmem:[#allocation5 + $0x5b8] sm:$0xff]
    %v282 = vld [vmem:[#allocation5 + $0x5c0] sm:$0xff]
    %v283 = vld [vmem:[#allocation5 + $0x5c8] sm:$0xff]
    %v284 = vld [vmem:[#allocation5 + $0x5d0] sm:$0xff]
    %v285 = vld [vmem:[#allocation5 + $0x5d8] sm:$0xff]
    %v286 = vld [vmem:[#allocation5 + $0x5e0] sm:$0xff]
    %v287 = vld [vmem:[#allocation5 + $0x5e8] sm:$0xff]
    %v288 = vld [vmem:[#allocation5 + $0x5f0] sm:$0xff]
    %v289 = vld [vmem:[#allocation5 + $0x5f8] sm:$0xff]
    %v290 = vld [vmem:[#allocation5 + $0x600] sm:$0xff]
    %v291 = vld [vmem:[#allocation5 + $0x608] sm:$0xff]
    %v292 = vld [vmem:[#allocation5 + $0x610] sm:$0xff]
    %v293 = vld [vmem:[#allocation5 + $0x618] sm:$0xff]
    %v294 = vld [vmem:[#allocation5 + $0x620] sm:$0xff]
    %v295 = vld [vmem:[#allocation5 + $0x628] sm:$0xff]
    %v296 = vld [vmem:[#allocation5 + $0x630] sm:$0xff]
    %v297 = vld [vmem:[#allocation5 + $0x638] sm:$0xff]
    %v298 = vld [vmem:[#allocation5 + $0x640] sm:$0xff]
    %v299 = vld [vmem:[#allocation5 + $0x648] sm:$0xff]
    %v300 = vld [vmem:[#allocation5 + $0x650] sm:$0xff]
    %v301 = vld [vmem:[#allocation5 + $0x658] sm:$0xff]
    %v302 = vld [vmem:[#allocation5 + $0x660] sm:$0xff]
    %v303 = vld [vmem:[#allocation5 + $0x668] sm:$0xff]
    %v304 = vld [vmem:[#allocation5 + $0x670] sm:$0xff]
    %v305 = vld [vmem:[#allocation5 + $0x678] sm:$0xff]
    %v306 = vld [vmem:[#allocation5 + $0x680] sm:$0xff]
    %v307 = vld [vmem:[#allocation5 + $0x688] sm:$0xff]
    %v308 = vld [vmem:[#allocation5 + $0x690] sm:$0xff]
    %v309 = vld [vmem:[#allocation5 + $0x698] sm:$0xff]
    %v310 = vld [vmem:[#allocation5 + $0x6a0] sm:$0xff]
    %v311 = vld [vmem:[#allocation5 + $0x6a8] sm:$0xff]
    %v312 = vld [vmem:[#allocation5 + $0x6b0] sm:$0xff]
    %v313 = vld [vmem:[#allocation5 + $0x6b8] sm:$0xff]
    %v314 = vld [vmem:[#allocation5 + $0x6c0] sm:$0xff]
    %v315 = vld [vmem:[#allocation5 + $0x6c8] sm:$0xff]
    %v316 = vld [vmem:[#allocation5 + $0x6d0] sm:$0xff]
    %v317 = vld [vmem:[#allocation5 + $0x6d8] sm:$0xff]
    %v318 = vld [vmem:[#allocation5 + $0x6e0] sm:$0xff]
    %v319 = vld [vmem:[#allocation5 + $0x6e8] sm:$0xff]
    %v320 = vld [vmem:[#allocation5 + $0x6f0] sm:$0xff]
    %v321 = vld [vmem:[#allocation5 + $0x6f8] sm:$0xff]
    %v322 = vld [vmem:[#allocation5 + $0x700] sm:$0xff]
    %v323 = vld [vmem:[#allocation5 + $0x708] sm:$0xff]
    %v324 = vld [vmem:[#allocation5 + $0x710] sm:$0xff]
    %v325 = vld [vmem:[#allocation5 + $0x718] sm:$0xff]
    %v326 = vld [vmem:[#allocation5 + $0x720] sm:$0xff]
    %v327 = vld [vmem:[#allocation5 + $0x728] sm:$0xff]
    %v328 = vld [vmem:[#allocation5 + $0x730] sm:$0xff]
    %v329 = vld [vmem:[#allocation5 + $0x738] sm:$0xff]
    %v330 = vld [vmem:[#allocation5 + $0x740] sm:$0xff]
    %v331 = vld [vmem:[#allocation5 + $0x748] sm:$0xff]
    %v332 = vld [vmem:[#allocation5 + $0x750] sm:$0xff]
    %v333 = vld [vmem:[#allocation5 + $0x758] sm:$0xff]
    %v334 = vld [vmem:[#allocation5 + $0x760] sm:$0xff]
    %v335 = vld [vmem:[#allocation5 + $0x768] sm:$0xff]
    %v336 = vld [vmem:[#allocation5 + $0x770] sm:$0xff]
    %v337 = vld [vmem:[#allocation5 + $0x778] sm:$0xff]
    %v338 = vld [vmem:[#allocation5 + $0x780] sm:$0xff]
    %v339 = vld [vmem:[#allocation5 + $0x788] sm:$0xff]
    %v340 = vld [vmem:[#allocation5 + $0x790] sm:$0xff]
    %v341 = vld [vmem:[#allocation5 + $0x798] sm:$0xff]
    %v342 = vld [vmem:[#allocation5 + $0x7a0] sm:$0xff]
    %v343 = vld [vmem:[#allocation5 + $0x7a8] sm:$0xff]
    %v344 = vld [vmem:[#allocation5 + $0x7b0] sm:$0xff]
    %v345 = vld [vmem:[#allocation5 + $0x7b8] sm:$0xff]
    %v346 = vld [vmem:[#allocation5 + $0x7c0] sm:$0xff]
    %v347 = vld [vmem:[#allocation5 + $0x7c8] sm:$0xff]
    %v348 = vld [vmem:[#allocation5 + $0x7d0] sm:$0xff]
    %v349 = vld [vmem:[#allocation5 + $0x7d8] sm:$0xff]
    %v350 = vld [vmem:[#allocation5 + $0x7e0] sm:$0xff]
    %v351 = vld [vmem:[#allocation5 + $0x7e8] sm:$0xff]
    %v352 = vld [vmem:[#allocation5 + $0x7f0] sm:$0xff]
    %v353 = vld [vmem:[#allocation5 + $0x7f8] sm:$0xff]
    %v354 = vld [vmem:[#allocation5 + $0x800] sm:$0xff]
    %v355 = vld [vmem:[#allocation5 + $0x808] sm:$0xff]
    %v356 = vld [vmem:[#allocation5 + $0x810] sm:$0xff]
    %v357 = vld [vmem:[#allocation5 + $0x818] sm:$0xff]
    %v358 = vld [vmem:[#allocation5 + $0x820] sm:$0xff]
    %v359 = vld [vmem:[#allocation5 + $0x828] sm:$0xff]
    %v360 = vld [vmem:[#allocation5 + $0x830] sm:$0xff]
    %v361 = vld [vmem:[#allocation5 + $0x838] sm:$0xff]
    %v362 = vld [vmem:[#allocation5 + $0x840] sm:$0xff]
    %v363 = vld [vmem:[#allocation5 + $0x848] sm:$0xff]
    %v364 = vld [vmem:[#allocation5 + $0x850] sm:$0xff]
    %v365 = vld [vmem:[#allocation5 + $0x858] sm:$0xff]
    %v366 = vld [vmem:[#allocation5 + $0x860] sm:$0xff]
    %v367 = vld [vmem:[#allocation5 + $0x868] sm:$0xff]
    %v368 = vld [vmem:[#allocation5 + $0x870] sm:$0xff]
    %v369 = vld [vmem:[#allocation5 + $0x878] sm:$0xff]
    %v370 = vld [vmem:[#allocation5 + $0x880] sm:$0xff]
    %v371 = vld [vmem:[#allocation5 + $0x888] sm:$0xff]
    %v372 = vld [vmem:[#allocation5 + $0x890] sm:$0xff]
    %v373 = vld [vmem:[#allocation5 + $0x898] sm:$0xff]
    %v374 = vld [vmem:[#allocation5 + $0x8a0] sm:$0xff]
    %v375 = vld [vmem:[#allocation5 + $0x8a8] sm:$0xff]
    %v376 = vld [vmem:[#allocation5 + $0x8b0] sm:$0xff]
    %v377 = vld [vmem:[#allocation5 + $0x8b8] sm:$0xff]
    %v378 = vld [vmem:[#allocation5 + $0x8c0] sm:$0xff]
    %v379 = vld [vmem:[#allocation5 + $0x8c8] sm:$0xff]
    %v380 = vld [vmem:[#allocation5 + $0x8d0] sm:$0xff]
    %v381 = vld [vmem:[#allocation5 + $0x8d8] sm:$0xff]
    %v382 = vld [vmem:[#allocation5 + $0x8e0] sm:$0xff]
    %v383 = vld [vmem:[#allocation5 + $0x8e8] sm:$0xff]
    %v384 = vld [vmem:[#allocation5 + $0x8f0] sm:$0xff]
    %v385 = vld [vmem:[#allocation5 + $0x8f8] sm:$0xff]
    %v386 = vld [vmem:[#allocation5 + $0x900] sm:$0xff]
    %v387 = vld [vmem:[#allocation5 + $0x908] sm:$0xff]
    %v388 = vld [vmem:[#allocation5 + $0x910] sm:$0xff]
    %v389 = vld [vmem:[#allocation5 + $0x918] sm:$0xff]
    %v390 = vld [vmem:[#allocation5 + $0x920] sm:$0xff]
    %v391 = vld [vmem:[#allocation5 + $0x928] sm:$0xff]
    %v392 = vld [vmem:[#allocation5 + $0x930] sm:$0xff]
    %v393 = vld [vmem:[#allocation5 + $0x938] sm:$0xff]
    %v394 = vld [vmem:[#allocation5 + $0x940] sm:$0xff]
    %v395 = vld [vmem:[#allocation5 + $0x948] sm:$0xff]
    %v396 = vld [vmem:[#allocation5 + $0x950] sm:$0xff]
    %v397 = vld [vmem:[#allocation5 + $0x958] sm:$0xff]
    %v398 = vld [vmem:[#allocation5 + $0x960] sm:$0xff]
    %v399 = vld [vmem:[#allocation5 + $0x968] sm:$0xff]
    %v400 = vld [vmem:[#allocation5 + $0x970] sm:$0xff]
    %v401 = vld [vmem:[#allocation5 + $0x978] sm:$0xff]
    %v402 = vld [vmem:[#allocation5 + $0x980] sm:$0xff]
    %v403 = vld [vmem:[#allocation5 + $0x988] sm:$0xff]
    %v404 = vld [vmem:[#allocation5 + $0x990] sm:$0xff]
    %v405 = vld [vmem:[#allocation5 + $0x998] sm:$0xff]
    %v406 = vld [vmem:[#allocation5 + $0x9a0] sm:$0xff]
    %v407 = vld [vmem:[#allocation5 + $0x9a8] sm:$0xff]
    %v408 = vld [vmem:[#allocation5 + $0x9b0] sm:$0xff]
    %v409 = vld [vmem:[#allocation5 + $0x9b8] sm:$0xff]
    %v410 = vld [vmem:[#allocation5 + $0x9c0] sm:$0xff]
    %v411 = vld [vmem:[#allocation5 + $0x9c8] sm:$0xff]
    %v412 = vld [vmem:[#allocation5 + $0x9d0] sm:$0xff]
    %v413 = vld [vmem:[#allocation5 + $0x9d8] sm:$0xff]
    %v414 = vld [vmem:[#allocation5 + $0x9e0] sm:$0xff]
    %v415 = vld [vmem:[#allocation5 + $0x9e8] sm:$0xff]
    %v416 = vld [vmem:[#allocation5 + $0x9f0] sm:$0xff]
    %v417 = vld [vmem:[#allocation5 + $0x9f8] sm:$0xff]
    %v418 = vld [vmem:[#allocation5 + $0xa00] sm:$0xff]
    %v419 = vld [vmem:[#allocation5 + $0xa08] sm:$0xff]
    %v420 = vld [vmem:[#allocation5 + $0xa10] sm:$0xff]
    %v421 = vld [vmem:[#allocation5 + $0xa18] sm:$0xff]
    %v422 = vld [vmem:[#allocation5 + $0xa20] sm:$0xff]
    %v423 = vld [vmem:[#allocation5 + $0xa28] sm:$0xff]
    %v424 = vld [vmem:[#allocation5 + $0xa30] sm:$0xff]
    %v425 = vld [vmem:[#allocation5 + $0xa38] sm:$0xff]
    %v426 = vld [vmem:[#allocation5 + $0xa40] sm:$0xff]
    %v427 = vld [vmem:[#allocation5 + $0xa48] sm:$0xff]
    %v428 = vld [vmem:[#allocation5 + $0xa50] sm:$0xff]
    %v429 = vld [vmem:[#allocation5 + $0xa58] sm:$0xff]
    %v430 = vld [vmem:[#allocation5 + $0xa60] sm:$0xff]
    %v431 = vld [vmem:[#allocation5 + $0xa68] sm:$0xff]
    %v432 = vld [vmem:[#allocation5 + $0xa70] sm:$0xff]
    %v433 = vld [vmem:[#allocation5 + $0xa78] sm:$0xff]
    %v434 = vld [vmem:[#allocation5 + $0xa80] sm:$0xff]
    %v435 = vld [vmem:[#allocation5 + $0xa88] sm:$0xff]
    %v436 = vld [vmem:[#allocation5 + $0xa90] sm:$0xff]
    %v437 = vld [vmem:[#allocation5 + $0xa98] sm:$0xff]
    %v438 = vld [vmem:[#allocation5 + $0xaa0] sm:$0xff]
    %v439 = vld [vmem:[#allocation5 + $0xaa8] sm:$0xff]
    %v440 = vld [vmem:[#allocation5 + $0xab0] sm:$0xff]
    %v441 = vld [vmem:[#allocation5 + $0xab8] sm:$0xff]
    %v442 = vld [vmem:[#allocation5 + $0xac0] sm:$0xff]
    %v443 = vld [vmem:[#allocation5 + $0xac8] sm:$0xff]
    %v444 = vld [vmem:[#allocation5 + $0xad0] sm:$0xff]
    %v445 = vld [vmem:[#allocation5 + $0xad8] sm:$0xff]
    %v446 = vld [vmem:[#allocation5 + $0xae0] sm:$0xff]
    %v447 = vld [vmem:[#allocation5 + $0xae8] sm:$0xff]
    %v448 = vld [vmem:[#allocation5 + $0xaf0] sm:$0xff]
    %v449 = vld [vmem:[#allocation5 + $0xaf8] sm:$0xff]
    %v450 = vld [vmem:[#allocation5 + $0xb00] sm:$0xff]
    %v451 = vld [vmem:[#allocation5 + $0xb08] sm:$0xff]
    %v452 = vld [vmem:[#allocation5 + $0xb10] sm:$0xff]
    %v453 = vld [vmem:[#allocation5 + $0xb18] sm:$0xff]
    %v454 = vld [vmem:[#allocation5 + $0xb20] sm:$0xff]
    %v455 = vld [vmem:[#allocation5 + $0xb28] sm:$0xff]
    %v456 = vld [vmem:[#allocation5 + $0xb30] sm:$0xff]
    %v457 = vld [vmem:[#allocation5 + $0xb38] sm:$0xff]
    %v458 = vld [vmem:[#allocation5 + $0xb40] sm:$0xff]
    %v459 = vld [vmem:[#allocation5 + $0xb48] sm:$0xff]
    %v460 = vld [vmem:[#allocation5 + $0xb50] sm:$0xff]
    %v461 = vld [vmem:[#allocation5 + $0xb58] sm:$0xff]
    %v462 = vld [vmem:[#allocation5 + $0xb60] sm:$0xff]
    %v463 = vld [vmem:[#allocation5 + $0xb68] sm:$0xff]
    %v464 = vld [vmem:[#allocation5 + $0xb70] sm:$0xff]
    %v465 = vld [vmem:[#allocation5 + $0xb78] sm:$0xff]
    %v466 = vld [vmem:[#allocation5 + $0xb80] sm:$0xff]
    %v467 = vld [vmem:[#allocation5 + $0xb88] sm:$0xff]
    %v468 = vld [vmem:[#allocation5 + $0xb90] sm:$0xff]
    %v469 = vld [vmem:[#allocation5 + $0xb98] sm:$0xff]
    %v470 = vld [vmem:[#allocation5 + $0xba0] sm:$0xff]
    %v471 = vld [vmem:[#allocation5 + $0xba8] sm:$0xff]
    %v472 = vld [vmem:[#allocation5 + $0xbb0] sm:$0xff]
    %v473 = vld [vmem:[#allocation5 + $0xbb8] sm:$0xff]
    %v474 = vld [vmem:[#allocation5 + $0xbc0] sm:$0xff]
    %v475 = vld [vmem:[#allocation5 + $0xbc8] sm:$0xff]
    %v476 = vld [vmem:[#allocation5 + $0xbd0] sm:$0xff]
    %v477 = vld [vmem:[#allocation5 + $0xbd8] sm:$0xff]
    %v478 = vld [vmem:[#allocation5 + $0xbe0] sm:$0xff]
    %v479 = vld [vmem:[#allocation5 + $0xbe8] sm:$0xff]
    %v480 = vld [vmem:[#allocation5 + $0xbf0] sm:$0xff]
    %v481 = vld [vmem:[#allocation5 + $0xbf8] sm:$0xff]
    %v494 = vunpack.c.l.b16 %v86
    %v495 = vunpack.c.h.b16 %v86
    %v496 = vunpack.c.l.b16 %v87
    %v497 = vunpack.c.h.b16 %v87
    %v498 = vunpack.c.l.b16 %v88
    %v499 = vunpack.c.h.b16 %v88
    %v500 = vunpack.c.l.b16 %v89
    %v501 = vunpack.c.h.b16 %v89
    %v502 = vunpack.c.l.b16 %v90
    %v503 = vunpack.c.h.b16 %v90
    %v504 = vunpack.c.l.b16 %v91
    %v505 = vunpack.c.h.b16 %v91
    %v506 = vunpack.c.l.b16 %v92
    %v507 = vunpack.c.h.b16 %v92
    %v508 = vunpack.c.l.b16 %v93
    %v509 = vunpack.c.h.b16 %v93
    %v510 = vunpack.c.l.b16 %v94
    %v511 = vunpack.c.h.b16 %v94
    %v512 = vunpack.c.l.b16 %v95
    %v513 = vunpack.c.h.b16 %v95
    %v514 = vunpack.c.l.b16 %v96
    %v515 = vunpack.c.h.b16 %v96
    %v516 = vunpack.c.l.b16 %v97
    %v517 = vunpack.c.h.b16 %v97
    %v518 = vpack.c.b16 %v496, %v494
    %v519 = vpack.c.b16 %v497, %v495
    %v520 = vpack.c.b16 %v500, %v498
    %v521 = vpack.c.b16 %v501, %v499
    %v522 = vpack.c.b16 %v504, %v502
    %v523 = vpack.c.b16 %v505, %v503
    %v524 = vpack.c.b16 %v508, %v506
    %v525 = vpack.c.b16 %v509, %v507
    %v526 = vpack.c.b16 %v512, %v510
    %v527 = vpack.c.b16 %v513, %v511
    %v528 = vpack.c.b16 %v516, %v514
    %v529 = vpack.c.b16 %v517, %v515
    %v926 = vunpack.c.l.b16 %v98
    %v927 = vunpack.c.h.b16 %v98
    %v928 = vunpack.c.l.b16 %v99
    %v929 = vunpack.c.h.b16 %v99
    %v930 = vunpack.c.l.b16 %v100
    %v931 = vunpack.c.h.b16 %v100
    %v932 = vunpack.c.l.b16 %v101
    %v933 = vunpack.c.h.b16 %v101
    %v934 = vunpack.c.l.b16 %v102
    %v935 = vunpack.c.h.b16 %v102
    %v936 = vunpack.c.l.b16 %v103
    %v937 = vunpack.c.h.b16 %v103
    %v938 = vunpack.c.l.b16 %v104
    %v939 = vunpack.c.h.b16 %v104
    %v940 = vunpack.c.l.b16 %v105
    %v941 = vunpack.c.h.b16 %v105
    %v942 = vunpack.c.l.b16 %v106
    %v943 = vunpack.c.h.b16 %v106
    %v944 = vunpack.c.l.b16 %v107
    %v945 = vunpack.c.h.b16 %v107
    %v946 = vunpack.c.l.b16 %v108
    %v947 = vunpack.c.h.b16 %v108
    %v948 = vunpack.c.l.b16 %v109
    %v949 = vunpack.c.h.b16 %v109
    %v950 = vunpack.c.l.b16 %v110
    %v951 = vunpack.c.h.b16 %v110
    %v952 = vunpack.c.l.b16 %v111
    %v953 = vunpack.c.h.b16 %v111
    %v954 = vunpack.c.l.b16 %v112
    %v955 = vunpack.c.h.b16 %v112
    %v956 = vunpack.c.l.b16 %v113
    %v957 = vunpack.c.h.b16 %v113
    %v958 = vunpack.c.l.b16 %v114
    %v959 = vunpack.c.h.b16 %v114
    %v960 = vunpack.c.l.b16 %v115
    %v961 = vunpack.c.h.b16 %v115
    %v962 = vunpack.c.l.b16 %v116
    %v963 = vunpack.c.h.b16 %v116
    %v964 = vunpack.c.l.b16 %v117
    %v965 = vunpack.c.h.b16 %v117
    %v966 = vunpack.c.l.b16 %v118
    %v967 = vunpack.c.h.b16 %v118
    %v968 = vunpack.c.l.b16 %v119
    %v969 = vunpack.c.h.b16 %v119
    %v970 = vunpack.c.l.b16 %v120
    %v971 = vunpack.c.h.b16 %v120
    %v972 = vunpack.c.l.b16 %v121
    %v973 = vunpack.c.h.b16 %v121
    %v974 = vunpack.c.l.b16 %v122
    %v975 = vunpack.c.h.b16 %v122
    %v976 = vunpack.c.l.b16 %v123
    %v977 = vunpack.c.h.b16 %v123
    %v978 = vunpack.c.l.b16 %v124
    %v979 = vunpack.c.h.b16 %v124
    %v980 = vunpack.c.l.b16 %v125
    %v981 = vunpack.c.h.b16 %v125
    %v982 = vunpack.c.l.b16 %v126
    %v983 = vunpack.c.h.b16 %v126
    %v984 = vunpack.c.l.b16 %v127
    %v985 = vunpack.c.h.b16 %v127
    %v986 = vunpack.c.l.b16 %v128
    %v987 = vunpack.c.h.b16 %v128
    %v988 = vunpack.c.l.b16 %v129
    %v989 = vunpack.c.h.b16 %v129
    %v990 = vunpack.c.l.b16 %v130
    %v991 = vunpack.c.h.b16 %v130
    %v992 = vunpack.c.l.b16 %v131
    %v993 = vunpack.c.h.b16 %v131
    %v994 = vunpack.c.l.b16 %v132
    %v995 = vunpack.c.h.b16 %v132
    %v996 = vunpack.c.l.b16 %v133
    %v997 = vunpack.c.h.b16 %v133
    %v998 = vunpack.c.l.b16 %v134
    %v999 = vunpack.c.h.b16 %v134
    %v1000 = vunpack.c.l.b16 %v135
    %v1001 = vunpack.c.h.b16 %v135
    %v1002 = vunpack.c.l.b16 %v136
    %v1003 = vunpack.c.h.b16 %v136
    %v1004 = vunpack.c.l.b16 %v137
    %v1005 = vunpack.c.h.b16 %v137
    %v1006 = vunpack.c.l.b16 %v138
    %v1007 = vunpack.c.h.b16 %v138
    %v1008 = vunpack.c.l.b16 %v139
    %v1009 = vunpack.c.h.b16 %v139
    %v1010 = vunpack.c.l.b16 %v140
    %v1011 = vunpack.c.h.b16 %v140
    %v1012 = vunpack.c.l.b16 %v141
    %v1013 = vunpack.c.h.b16 %v141
    %v1014 = vunpack.c.l.b16 %v142
    %v1015 = vunpack.c.h.b16 %v142
    %v1016 = vunpack.c.l.b16 %v143
    %v1017 = vunpack.c.h.b16 %v143
    %v1018 = vunpack.c.l.b16 %v144
    %v1019 = vunpack.c.h.b16 %v144
    %v1020 = vunpack.c.l.b16 %v145
    %v1021 = vunpack.c.h.b16 %v145
    %v1022 = vunpack.c.l.b16 %v146
    %v1023 = vunpack.c.h.b16 %v146
    %v1024 = vunpack.c.l.b16 %v147
    %v1025 = vunpack.c.h.b16 %v147
    %v1026 = vunpack.c.l.b16 %v148
    %v1027 = vunpack.c.h.b16 %v148
    %v1028 = vunpack.c.l.b16 %v149
    %v1029 = vunpack.c.h.b16 %v149
    %v1030 = vunpack.c.l.b16 %v150
    %v1031 = vunpack.c.h.b16 %v150
    %v1032 = vunpack.c.l.b16 %v151
    %v1033 = vunpack.c.h.b16 %v151
    %v1034 = vunpack.c.l.b16 %v152
    %v1035 = vunpack.c.h.b16 %v152
    %v1036 = vunpack.c.l.b16 %v153
    %v1037 = vunpack.c.h.b16 %v153
    %v1038 = vunpack.c.l.b16 %v154
    %v1039 = vunpack.c.h.b16 %v154
    %v1040 = vunpack.c.l.b16 %v155
    %v1041 = vunpack.c.h.b16 %v155
    %v1042 = vunpack.c.l.b16 %v156
    %v1043 = vunpack.c.h.b16 %v156
    %v1044 = vunpack.c.l.b16 %v157
    %v1045 = vunpack.c.h.b16 %v157
    %v1046 = vunpack.c.l.b16 %v158
    %v1047 = vunpack.c.h.b16 %v158
    %v1048 = vunpack.c.l.b16 %v159
    %v1049 = vunpack.c.h.b16 %v159
    %v1050 = vunpack.c.l.b16 %v160
    %v1051 = vunpack.c.h.b16 %v160
    %v1052 = vunpack.c.l.b16 %v161
    %v1053 = vunpack.c.h.b16 %v161
    %v1054 = vunpack.c.l.b16 %v162
    %v1055 = vunpack.c.h.b16 %v162
    %v1056 = vunpack.c.l.b16 %v163
    %v1057 = vunpack.c.h.b16 %v163
    %v1058 = vunpack.c.l.b16 %v164
    %v1059 = vunpack.c.h.b16 %v164
    %v1060 = vunpack.c.l.b16 %v165
    %v1061 = vunpack.c.h.b16 %v165
    %v1062 = vunpack.c.l.b16 %v166
    %v1063 = vunpack.c.h.b16 %v166
    %v1064 = vunpack.c.l.b16 %v167
    %v1065 = vunpack.c.h.b16 %v167
    %v1066 = vunpack.c.l.b16 %v168
    %v1067 = vunpack.c.h.b16 %v168
    %v1068 = vunpack.c.l.b16 %v169
    %v1069 = vunpack.c.h.b16 %v169
    %v1070 = vunpack.c.l.b16 %v170
    %v1071 = vunpack.c.h.b16 %v170
    %v1072 = vunpack.c.l.b16 %v171
    %v1073 = vunpack.c.h.b16 %v171
    %v1074 = vunpack.c.l.b16 %v172
    %v1075 = vunpack.c.h.b16 %v172
    %v1076 = vunpack.c.l.b16 %v173
    %v1077 = vunpack.c.h.b16 %v173
    %v1078 = vunpack.c.l.b16 %v174
    %v1079 = vunpack.c.h.b16 %v174
    %v1080 = vunpack.c.l.b16 %v175
    %v1081 = vunpack.c.h.b16 %v175
    %v1082 = vunpack.c.l.b16 %v176
    %v1083 = vunpack.c.h.b16 %v176
    %v1084 = vunpack.c.l.b16 %v177
    %v1085 = vunpack.c.h.b16 %v177
    %v1086 = vunpack.c.l.b16 %v178
    %v1087 = vunpack.c.h.b16 %v178
    %v1088 = vunpack.c.l.b16 %v179
    %v1089 = vunpack.c.h.b16 %v179
    %v1090 = vunpack.c.l.b16 %v180
    %v1091 = vunpack.c.h.b16 %v180
    %v1092 = vunpack.c.l.b16 %v181
    %v1093 = vunpack.c.h.b16 %v181
    %v1094 = vunpack.c.l.b16 %v182
    %v1095 = vunpack.c.h.b16 %v182
    %v1096 = vunpack.c.l.b16 %v183
    %v1097 = vunpack.c.h.b16 %v183
    %v1098 = vunpack.c.l.b16 %v184
    %v1099 = vunpack.c.h.b16 %v184
    %v1100 = vunpack.c.l.b16 %v185
    %v1101 = vunpack.c.h.b16 %v185
    %v1102 = vunpack.c.l.b16 %v186
    %v1103 = vunpack.c.h.b16 %v186
    %v1104 = vunpack.c.l.b16 %v187
    %v1105 = vunpack.c.h.b16 %v187
    %v1106 = vunpack.c.l.b16 %v188
    %v1107 = vunpack.c.h.b16 %v188
    %v1108 = vunpack.c.l.b16 %v189
    %v1109 = vunpack.c.h.b16 %v189
    %v1110 = vunpack.c.l.b16 %v190
    %v1111 = vunpack.c.h.b16 %v190
    %v1112 = vunpack.c.l.b16 %v191
    %v1113 = vunpack.c.h.b16 %v191
    %v1114 = vunpack.c.l.b16 %v192
    %v1115 = vunpack.c.h.b16 %v192
    %v1116 = vunpack.c.l.b16 %v193
    %v1117 = vunpack.c.h.b16 %v193
    %v1118 = vunpack.c.l.b16 %v194
    %v1119 = vunpack.c.h.b16 %v194
    %v1120 = vunpack.c.l.b16 %v195
    %v1121 = vunpack.c.h.b16 %v195
    %v1122 = vunpack.c.l.b16 %v196
    %v1123 = vunpack.c.h.b16 %v196
    %v1124 = vunpack.c.l.b16 %v197
    %v1125 = vunpack.c.h.b16 %v197
    %v1126 = vunpack.c.l.b16 %v198
    %v1127 = vunpack.c.h.b16 %v198
    %v1128 = vunpack.c.l.b16 %v199
    %v1129 = vunpack.c.h.b16 %v199
    %v1130 = vunpack.c.l.b16 %v200
    %v1131 = vunpack.c.h.b16 %v200
    %v1132 = vunpack.c.l.b16 %v201
    %v1133 = vunpack.c.h.b16 %v201
    %v1134 = vunpack.c.l.b16 %v202
    %v1135 = vunpack.c.h.b16 %v202
    %v1136 = vunpack.c.l.b16 %v203
    %v1137 = vunpack.c.h.b16 %v203
    %v1138 = vunpack.c.l.b16 %v204
    %v1139 = vunpack.c.h.b16 %v204
    %v1140 = vunpack.c.l.b16 %v205
    %v1141 = vunpack.c.h.b16 %v205
    %v1142 = vunpack.c.l.b16 %v206
    %v1143 = vunpack.c.h.b16 %v206
    %v1144 = vunpack.c.l.b16 %v207
    %v1145 = vunpack.c.h.b16 %v207
    %v1146 = vunpack.c.l.b16 %v208
    %v1147 = vunpack.c.h.b16 %v208
    %v1148 = vunpack.c.l.b16 %v209
    %v1149 = vunpack.c.h.b16 %v209
    %v1150 = vunpack.c.l.b16 %v210
    %v1151 = vunpack.c.h.b16 %v210
    %v1152 = vunpack.c.l.b16 %v211
    %v1153 = vunpack.c.h.b16 %v211
    %v1154 = vunpack.c.l.b16 %v212
    %v1155 = vunpack.c.h.b16 %v212
    %v1156 = vunpack.c.l.b16 %v213
    %v1157 = vunpack.c.h.b16 %v213
    %v1158 = vunpack.c.l.b16 %v214
    %v1159 = vunpack.c.h.b16 %v214
    %v1160 = vunpack.c.l.b16 %v215
    %v1161 = vunpack.c.h.b16 %v215
    %v1162 = vunpack.c.l.b16 %v216
    %v1163 = vunpack.c.h.b16 %v216
    %v1164 = vunpack.c.l.b16 %v217
    %v1165 = vunpack.c.h.b16 %v217
    %v1166 = vunpack.c.l.b16 %v218
    %v1167 = vunpack.c.h.b16 %v218
    %v1168 = vunpack.c.l.b16 %v219
    %v1169 = vunpack.c.h.b16 %v219
    %v1170 = vunpack.c.l.b16 %v220
    %v1171 = vunpack.c.h.b16 %v220
    %v1172 = vunpack.c.l.b16 %v221
    %v1173 = vunpack.c.h.b16 %v221
    %v1174 = vunpack.c.l.b16 %v222
    %v1175 = vunpack.c.h.b16 %v222
    %v1176 = vunpack.c.l.b16 %v223
    %v1177 = vunpack.c.h.b16 %v223
    %v1178 = vunpack.c.l.b16 %v224
    %v1179 = vunpack.c.h.b16 %v224
    %v1180 = vunpack.c.l.b16 %v225
    %v1181 = vunpack.c.h.b16 %v225
    %v1182 = vunpack.c.l.b16 %v226
    %v1183 = vunpack.c.h.b16 %v226
    %v1184 = vunpack.c.l.b16 %v227
    %v1185 = vunpack.c.h.b16 %v227
    %v1186 = vunpack.c.l.b16 %v228
    %v1187 = vunpack.c.h.b16 %v228
    %v1188 = vunpack.c.l.b16 %v229
    %v1189 = vunpack.c.h.b16 %v229
    %v1190 = vunpack.c.l.b16 %v230
    %v1191 = vunpack.c.h.b16 %v230
    %v1192 = vunpack.c.l.b16 %v231
    %v1193 = vunpack.c.h.b16 %v231
    %v1194 = vunpack.c.l.b16 %v232
    %v1195 = vunpack.c.h.b16 %v232
    %v1196 = vunpack.c.l.b16 %v233
    %v1197 = vunpack.c.h.b16 %v233
    %v1198 = vunpack.c.l.b16 %v234
    %v1199 = vunpack.c.h.b16 %v234
    %v1200 = vunpack.c.l.b16 %v235
    %v1201 = vunpack.c.h.b16 %v235
    %v1202 = vunpack.c.l.b16 %v236
    %v1203 = vunpack.c.h.b16 %v236
    %v1204 = vunpack.c.l.b16 %v237
    %v1205 = vunpack.c.h.b16 %v237
    %v1206 = vunpack.c.l.b16 %v238
    %v1207 = vunpack.c.h.b16 %v238
    %v1208 = vunpack.c.l.b16 %v239
    %v1209 = vunpack.c.h.b16 %v239
    %v1210 = vunpack.c.l.b16 %v240
    %v1211 = vunpack.c.h.b16 %v240
    %v1212 = vunpack.c.l.b16 %v241
    %v1213 = vunpack.c.h.b16 %v241
    %v1214 = vunpack.c.l.b16 %v242
    %v1215 = vunpack.c.h.b16 %v242
    %v1216 = vunpack.c.l.b16 %v243
    %v1217 = vunpack.c.h.b16 %v243
    %v1218 = vunpack.c.l.b16 %v244
    %v1219 = vunpack.c.h.b16 %v244
    %v1220 = vunpack.c.l.b16 %v245
    %v1221 = vunpack.c.h.b16 %v245
    %v1222 = vunpack.c.l.b16 %v246
    %v1223 = vunpack.c.h.b16 %v246
    %v1224 = vunpack.c.l.b16 %v247
    %v1225 = vunpack.c.h.b16 %v247
    %v1226 = vunpack.c.l.b16 %v248
    %v1227 = vunpack.c.h.b16 %v248
    %v1228 = vunpack.c.l.b16 %v249
    %v1229 = vunpack.c.h.b16 %v249
    %v1230 = vunpack.c.l.b16 %v250
    %v1231 = vunpack.c.h.b16 %v250
    %v1232 = vunpack.c.l.b16 %v251
    %v1233 = vunpack.c.h.b16 %v251
    %v1234 = vunpack.c.l.b16 %v252
    %v1235 = vunpack.c.h.b16 %v252
    %v1236 = vunpack.c.l.b16 %v253
    %v1237 = vunpack.c.h.b16 %v253
    %v1238 = vunpack.c.l.b16 %v254
    %v1239 = vunpack.c.h.b16 %v254
    %v1240 = vunpack.c.l.b16 %v255
    %v1241 = vunpack.c.h.b16 %v255
    %v1242 = vunpack.c.l.b16 %v256
    %v1243 = vunpack.c.h.b16 %v256
    %v1244 = vunpack.c.l.b16 %v257
    %v1245 = vunpack.c.h.b16 %v257
    %v1246 = vunpack.c.l.b16 %v258
    %v1247 = vunpack.c.h.b16 %v258
    %v1248 = vunpack.c.l.b16 %v259
    %v1249 = vunpack.c.h.b16 %v259
    %v1250 = vunpack.c.l.b16 %v260
    %v1251 = vunpack.c.h.b16 %v260
    %v1252 = vunpack.c.l.b16 %v261
    %v1253 = vunpack.c.h.b16 %v261
    %v1254 = vunpack.c.l.b16 %v262
    %v1255 = vunpack.c.h.b16 %v262
    %v1256 = vunpack.c.l.b16 %v263
    %v1257 = vunpack.c.h.b16 %v263
    %v1258 = vunpack.c.l.b16 %v264
    %v1259 = vunpack.c.h.b16 %v264
    %v1260 = vunpack.c.l.b16 %v265
    %v1261 = vunpack.c.h.b16 %v265
    %v1262 = vunpack.c.l.b16 %v266
    %v1263 = vunpack.c.h.b16 %v266
    %v1264 = vunpack.c.l.b16 %v267
    %v1265 = vunpack.c.h.b16 %v267
    %v1266 = vunpack.c.l.b16 %v268
    %v1267 = vunpack.c.h.b16 %v268
    %v1268 = vunpack.c.l.b16 %v269
    %v1269 = vunpack.c.h.b16 %v269
    %v1270 = vunpack.c.l.b16 %v270
    %v1271 = vunpack.c.h.b16 %v270
    %v1272 = vunpack.c.l.b16 %v271
    %v1273 = vunpack.c.h.b16 %v271
    %v1274 = vunpack.c.l.b16 %v272
    %v1275 = vunpack.c.h.b16 %v272
    %v1276 = vunpack.c.l.b16 %v273
    %v1277 = vunpack.c.h.b16 %v273
    %v1278 = vunpack.c.l.b16 %v274
    %v1279 = vunpack.c.h.b16 %v274
    %v1280 = vunpack.c.l.b16 %v275
    %v1281 = vunpack.c.h.b16 %v275
    %v1282 = vunpack.c.l.b16 %v276
    %v1283 = vunpack.c.h.b16 %v276
    %v1284 = vunpack.c.l.b16 %v277
    %v1285 = vunpack.c.h.b16 %v277
    %v1286 = vunpack.c.l.b16 %v278
    %v1287 = vunpack.c.h.b16 %v278
    %v1288 = vunpack.c.l.b16 %v279
    %v1289 = vunpack.c.h.b16 %v279
    %v1290 = vunpack.c.l.b16 %v280
    %v1291 = vunpack.c.h.b16 %v280
    %v1292 = vunpack.c.l.b16 %v281
    %v1293 = vunpack.c.h.b16 %v281
    %v1294 = vunpack.c.l.b16 %v282
    %v1295 = vunpack.c.h.b16 %v282
    %v1296 = vunpack.c.l.b16 %v283
    %v1297 = vunpack.c.h.b16 %v283
    %v1298 = vunpack.c.l.b16 %v284
    %v1299 = vunpack.c.h.b16 %v284
    %v1300 = vunpack.c.l.b16 %v285
    %v1301 = vunpack.c.h.b16 %v285
    %v1302 = vunpack.c.l.b16 %v286
    %v1303 = vunpack.c.h.b16 %v286
    %v1304 = vunpack.c.l.b16 %v287
    %v1305 = vunpack.c.h.b16 %v287
    %v1306 = vunpack.c.l.b16 %v288
    %v1307 = vunpack.c.h.b16 %v288
    %v1308 = vunpack.c.l.b16 %v289
    %v1309 = vunpack.c.h.b16 %v289
    %v1310 = vunpack.c.l.b16 %v290
    %v1311 = vunpack.c.h.b16 %v290
    %v1312 = vunpack.c.l.b16 %v291
    %v1313 = vunpack.c.h.b16 %v291
    %v1314 = vunpack.c.l.b16 %v292
    %v1315 = vunpack.c.h.b16 %v292
    %v1316 = vunpack.c.l.b16 %v293
    %v1317 = vunpack.c.h.b16 %v293
    %v1318 = vunpack.c.l.b16 %v294
    %v1319 = vunpack.c.h.b16 %v294
    %v1320 = vunpack.c.l.b16 %v295
    %v1321 = vunpack.c.h.b16 %v295
    %v1322 = vunpack.c.l.b16 %v296
    %v1323 = vunpack.c.h.b16 %v296
    %v1324 = vunpack.c.l.b16 %v297
    %v1325 = vunpack.c.h.b16 %v297
    %v1326 = vunpack.c.l.b16 %v298
    %v1327 = vunpack.c.h.b16 %v298
    %v1328 = vunpack.c.l.b16 %v299
    %v1329 = vunpack.c.h.b16 %v299
    %v1330 = vunpack.c.l.b16 %v300
    %v1331 = vunpack.c.h.b16 %v300
    %v1332 = vunpack.c.l.b16 %v301
    %v1333 = vunpack.c.h.b16 %v301
    %v1334 = vunpack.c.l.b16 %v302
    %v1335 = vunpack.c.h.b16 %v302
    %v1336 = vunpack.c.l.b16 %v303
    %v1337 = vunpack.c.h.b16 %v303
    %v1338 = vunpack.c.l.b16 %v304
    %v1339 = vunpack.c.h.b16 %v304
    %v1340 = vunpack.c.l.b16 %v305
    %v1341 = vunpack.c.h.b16 %v305
    %v1342 = vunpack.c.l.b16 %v306
    %v1343 = vunpack.c.h.b16 %v306
    %v1344 = vunpack.c.l.b16 %v307
    %v1345 = vunpack.c.h.b16 %v307
    %v1346 = vunpack.c.l.b16 %v308
    %v1347 = vunpack.c.h.b16 %v308
    %v1348 = vunpack.c.l.b16 %v309
    %v1349 = vunpack.c.h.b16 %v309
    %v1350 = vunpack.c.l.b16 %v310
    %v1351 = vunpack.c.h.b16 %v310
    %v1352 = vunpack.c.l.b16 %v311
    %v1353 = vunpack.c.h.b16 %v311
    %v1354 = vunpack.c.l.b16 %v312
    %v1355 = vunpack.c.h.b16 %v312
    %v1356 = vunpack.c.l.b16 %v313
    %v1357 = vunpack.c.h.b16 %v313
    %v1358 = vunpack.c.l.b16 %v314
    %v1359 = vunpack.c.h.b16 %v314
    %v1360 = vunpack.c.l.b16 %v315
    %v1361 = vunpack.c.h.b16 %v315
    %v1362 = vunpack.c.l.b16 %v316
    %v1363 = vunpack.c.h.b16 %v316
    %v1364 = vunpack.c.l.b16 %v317
    %v1365 = vunpack.c.h.b16 %v317
    %v1366 = vunpack.c.l.b16 %v318
    %v1367 = vunpack.c.h.b16 %v318
    %v1368 = vunpack.c.l.b16 %v319
    %v1369 = vunpack.c.h.b16 %v319
    %v1370 = vunpack.c.l.b16 %v320
    %v1371 = vunpack.c.h.b16 %v320
    %v1372 = vunpack.c.l.b16 %v321
    %v1373 = vunpack.c.h.b16 %v321
    %v1374 = vunpack.c.l.b16 %v322
    %v1375 = vunpack.c.h.b16 %v322
    %v1376 = vunpack.c.l.b16 %v323
    %v1377 = vunpack.c.h.b16 %v323
    %v1378 = vunpack.c.l.b16 %v324
    %v1379 = vunpack.c.h.b16 %v324
    %v1380 = vunpack.c.l.b16 %v325
    %v1381 = vunpack.c.h.b16 %v325
    %v1382 = vunpack.c.l.b16 %v326
    %v1383 = vunpack.c.h.b16 %v326
    %v1384 = vunpack.c.l.b16 %v327
    %v1385 = vunpack.c.h.b16 %v327
    %v1386 = vunpack.c.l.b16 %v328
    %v1387 = vunpack.c.h.b16 %v328
    %v1388 = vunpack.c.l.b16 %v329
    %v1389 = vunpack.c.h.b16 %v329
    %v1390 = vunpack.c.l.b16 %v330
    %v1391 = vunpack.c.h.b16 %v330
    %v1392 = vunpack.c.l.b16 %v331
    %v1393 = vunpack.c.h.b16 %v331
    %v1394 = vunpack.c.l.b16 %v332
    %v1395 = vunpack.c.h.b16 %v332
    %v1396 = vunpack.c.l.b16 %v333
    %v1397 = vunpack.c.h.b16 %v333
    %v1398 = vunpack.c.l.b16 %v334
    %v1399 = vunpack.c.h.b16 %v334
    %v1400 = vunpack.c.l.b16 %v335
    %v1401 = vunpack.c.h.b16 %v335
    %v1402 = vunpack.c.l.b16 %v336
    %v1403 = vunpack.c.h.b16 %v336
    %v1404 = vunpack.c.l.b16 %v337
    %v1405 = vunpack.c.h.b16 %v337
    %v1406 = vunpack.c.l.b16 %v338
    %v1407 = vunpack.c.h.b16 %v338
    %v1408 = vunpack.c.l.b16 %v339
    %v1409 = vunpack.c.h.b16 %v339
    %v1410 = vunpack.c.l.b16 %v340
    %v1411 = vunpack.c.h.b16 %v340
    %v1412 = vunpack.c.l.b16 %v341
    %v1413 = vunpack.c.h.b16 %v341
    %v1414 = vunpack.c.l.b16 %v342
    %v1415 = vunpack.c.h.b16 %v342
    %v1416 = vunpack.c.l.b16 %v343
    %v1417 = vunpack.c.h.b16 %v343
    %v1418 = vunpack.c.l.b16 %v344
    %v1419 = vunpack.c.h.b16 %v344
    %v1420 = vunpack.c.l.b16 %v345
    %v1421 = vunpack.c.h.b16 %v345
    %v1422 = vunpack.c.l.b16 %v346
    %v1423 = vunpack.c.h.b16 %v346
    %v1424 = vunpack.c.l.b16 %v347
    %v1425 = vunpack.c.h.b16 %v347
    %v1426 = vunpack.c.l.b16 %v348
    %v1427 = vunpack.c.h.b16 %v348
    %v1428 = vunpack.c.l.b16 %v349
    %v1429 = vunpack.c.h.b16 %v349
    %v1430 = vunpack.c.l.b16 %v350
    %v1431 = vunpack.c.h.b16 %v350
    %v1432 = vunpack.c.l.b16 %v351
    %v1433 = vunpack.c.h.b16 %v351
    %v1434 = vunpack.c.l.b16 %v352
    %v1435 = vunpack.c.h.b16 %v352
    %v1436 = vunpack.c.l.b16 %v353
    %v1437 = vunpack.c.h.b16 %v353
    %v1438 = vunpack.c.l.b16 %v354
    %v1439 = vunpack.c.h.b16 %v354
    %v1440 = vunpack.c.l.b16 %v355
    %v1441 = vunpack.c.h.b16 %v355
    %v1442 = vunpack.c.l.b16 %v356
    %v1443 = vunpack.c.h.b16 %v356
    %v1444 = vunpack.c.l.b16 %v357
    %v1445 = vunpack.c.h.b16 %v357
    %v1446 = vunpack.c.l.b16 %v358
    %v1447 = vunpack.c.h.b16 %v358
    %v1448 = vunpack.c.l.b16 %v359
    %v1449 = vunpack.c.h.b16 %v359
    %v1450 = vunpack.c.l.b16 %v360
    %v1451 = vunpack.c.h.b16 %v360
    %v1452 = vunpack.c.l.b16 %v361
    %v1453 = vunpack.c.h.b16 %v361
    %v1454 = vunpack.c.l.b16 %v362
    %v1455 = vunpack.c.h.b16 %v362
    %v1456 = vunpack.c.l.b16 %v363
    %v1457 = vunpack.c.h.b16 %v363
    %v1458 = vunpack.c.l.b16 %v364
    %v1459 = vunpack.c.h.b16 %v364
    %v1460 = vunpack.c.l.b16 %v365
    %v1461 = vunpack.c.h.b16 %v365
    %v1462 = vunpack.c.l.b16 %v366
    %v1463 = vunpack.c.h.b16 %v366
    %v1464 = vunpack.c.l.b16 %v367
    %v1465 = vunpack.c.h.b16 %v367
    %v1466 = vunpack.c.l.b16 %v368
    %v1467 = vunpack.c.h.b16 %v368
    %v1468 = vunpack.c.l.b16 %v369
    %v1469 = vunpack.c.h.b16 %v369
    %v1470 = vunpack.c.l.b16 %v370
    %v1471 = vunpack.c.h.b16 %v370
    %v1472 = vunpack.c.l.b16 %v371
    %v1473 = vunpack.c.h.b16 %v371
    %v1474 = vunpack.c.l.b16 %v372
    %v1475 = vunpack.c.h.b16 %v372
    %v1476 = vunpack.c.l.b16 %v373
    %v1477 = vunpack.c.h.b16 %v373
    %v1478 = vunpack.c.l.b16 %v374
    %v1479 = vunpack.c.h.b16 %v374
    %v1480 = vunpack.c.l.b16 %v375
    %v1481 = vunpack.c.h.b16 %v375
    %v1482 = vunpack.c.l.b16 %v376
    %v1483 = vunpack.c.h.b16 %v376
    %v1484 = vunpack.c.l.b16 %v377
    %v1485 = vunpack.c.h.b16 %v377
    %v1486 = vunpack.c.l.b16 %v378
    %v1487 = vunpack.c.h.b16 %v378
    %v1488 = vunpack.c.l.b16 %v379
    %v1489 = vunpack.c.h.b16 %v379
    %v1490 = vunpack.c.l.b16 %v380
    %v1491 = vunpack.c.h.b16 %v380
    %v1492 = vunpack.c.l.b16 %v381
    %v1493 = vunpack.c.h.b16 %v381
    %v1494 = vunpack.c.l.b16 %v382
    %v1495 = vunpack.c.h.b16 %v382
    %v1496 = vunpack.c.l.b16 %v383
    %v1497 = vunpack.c.h.b16 %v383
    %v1498 = vunpack.c.l.b16 %v384
    %v1499 = vunpack.c.h.b16 %v384
    %v1500 = vunpack.c.l.b16 %v385
    %v1501 = vunpack.c.h.b16 %v385
    %v1502 = vunpack.c.l.b16 %v386
    %v1503 = vunpack.c.h.b16 %v386
    %v1504 = vunpack.c.l.b16 %v387
    %v1505 = vunpack.c.h.b16 %v387
    %v1506 = vunpack.c.l.b16 %v388
    %v1507 = vunpack.c.h.b16 %v388
    %v1508 = vunpack.c.l.b16 %v389
    %v1509 = vunpack.c.h.b16 %v389
    %v1510 = vunpack.c.l.b16 %v390
    %v1511 = vunpack.c.h.b16 %v390
    %v1512 = vunpack.c.l.b16 %v391
    %v1513 = vunpack.c.h.b16 %v391
    %v1514 = vunpack.c.l.b16 %v392
    %v1515 = vunpack.c.h.b16 %v392
    %v1516 = vunpack.c.l.b16 %v393
    %v1517 = vunpack.c.h.b16 %v393
    %v1518 = vunpack.c.l.b16 %v394
    %v1519 = vunpack.c.h.b16 %v394
    %v1520 = vunpack.c.l.b16 %v395
    %v1521 = vunpack.c.h.b16 %v395
    %v1522 = vunpack.c.l.b16 %v396
    %v1523 = vunpack.c.h.b16 %v396
    %v1524 = vunpack.c.l.b16 %v397
    %v1525 = vunpack.c.h.b16 %v397
    %v1526 = vunpack.c.l.b16 %v398
    %v1527 = vunpack.c.h.b16 %v398
    %v1528 = vunpack.c.l.b16 %v399
    %v1529 = vunpack.c.h.b16 %v399
    %v1530 = vunpack.c.l.b16 %v400
    %v1531 = vunpack.c.h.b16 %v400
    %v1532 = vunpack.c.l.b16 %v401
    %v1533 = vunpack.c.h.b16 %v401
    %v1534 = vunpack.c.l.b16 %v402
    %v1535 = vunpack.c.h.b16 %v402
    %v1536 = vunpack.c.l.b16 %v403
    %v1537 = vunpack.c.h.b16 %v403
    %v1538 = vunpack.c.l.b16 %v404
    %v1539 = vunpack.c.h.b16 %v404
    %v1540 = vunpack.c.l.b16 %v405
    %v1541 = vunpack.c.h.b16 %v405
    %v1542 = vunpack.c.l.b16 %v406
    %v1543 = vunpack.c.h.b16 %v406
    %v1544 = vunpack.c.l.b16 %v407
    %v1545 = vunpack.c.h.b16 %v407
    %v1546 = vunpack.c.l.b16 %v408
    %v1547 = vunpack.c.h.b16 %v408
    %v1548 = vunpack.c.l.b16 %v409
    %v1549 = vunpack.c.h.b16 %v409
    %v1550 = vunpack.c.l.b16 %v410
    %v1551 = vunpack.c.h.b16 %v410
    %v1552 = vunpack.c.l.b16 %v411
    %v1553 = vunpack.c.h.b16 %v411
    %v1554 = vunpack.c.l.b16 %v412
    %v1555 = vunpack.c.h.b16 %v412
    %v1556 = vunpack.c.l.b16 %v413
    %v1557 = vunpack.c.h.b16 %v413
    %v1558 = vunpack.c.l.b16 %v414
    %v1559 = vunpack.c.h.b16 %v414
    %v1560 = vunpack.c.l.b16 %v415
    %v1561 = vunpack.c.h.b16 %v415
    %v1562 = vunpack.c.l.b16 %v416
    %v1563 = vunpack.c.h.b16 %v416
    %v1564 = vunpack.c.l.b16 %v417
    %v1565 = vunpack.c.h.b16 %v417
    %v1566 = vunpack.c.l.b16 %v418
    %v1567 = vunpack.c.h.b16 %v418
    %v1568 = vunpack.c.l.b16 %v419
    %v1569 = vunpack.c.h.b16 %v419
    %v1570 = vunpack.c.l.b16 %v420
    %v1571 = vunpack.c.h.b16 %v420
    %v1572 = vunpack.c.l.b16 %v421
    %v1573 = vunpack.c.h.b16 %v421
    %v1574 = vunpack.c.l.b16 %v422
    %v1575 = vunpack.c.h.b16 %v422
    %v1576 = vunpack.c.l.b16 %v423
    %v1577 = vunpack.c.h.b16 %v423
    %v1578 = vunpack.c.l.b16 %v424
    %v1579 = vunpack.c.h.b16 %v424
    %v1580 = vunpack.c.l.b16 %v425
    %v1581 = vunpack.c.h.b16 %v425
    %v1582 = vunpack.c.l.b16 %v426
    %v1583 = vunpack.c.h.b16 %v426
    %v1584 = vunpack.c.l.b16 %v427
    %v1585 = vunpack.c.h.b16 %v427
    %v1586 = vunpack.c.l.b16 %v428
    %v1587 = vunpack.c.h.b16 %v428
    %v1588 = vunpack.c.l.b16 %v429
    %v1589 = vunpack.c.h.b16 %v429
    %v1590 = vunpack.c.l.b16 %v430
    %v1591 = vunpack.c.h.b16 %v430
    %v1592 = vunpack.c.l.b16 %v431
    %v1593 = vunpack.c.h.b16 %v431
    %v1594 = vunpack.c.l.b16 %v432
    %v1595 = vunpack.c.h.b16 %v432
    %v1596 = vunpack.c.l.b16 %v433
    %v1597 = vunpack.c.h.b16 %v433
    %v1598 = vunpack.c.l.b16 %v434
    %v1599 = vunpack.c.h.b16 %v434
    %v1600 = vunpack.c.l.b16 %v435
    %v1601 = vunpack.c.h.b16 %v435
    %v1602 = vunpack.c.l.b16 %v436
    %v1603 = vunpack.c.h.b16 %v436
    %v1604 = vunpack.c.l.b16 %v437
    %v1605 = vunpack.c.h.b16 %v437
    %v1606 = vunpack.c.l.b16 %v438
    %v1607 = vunpack.c.h.b16 %v438
    %v1608 = vunpack.c.l.b16 %v439
    %v1609 = vunpack.c.h.b16 %v439
    %v1610 = vunpack.c.l.b16 %v440
    %v1611 = vunpack.c.h.b16 %v440
    %v1612 = vunpack.c.l.b16 %v441
    %v1613 = vunpack.c.h.b16 %v441
    %v1614 = vunpack.c.l.b16 %v442
    %v1615 = vunpack.c.h.b16 %v442
    %v1616 = vunpack.c.l.b16 %v443
    %v1617 = vunpack.c.h.b16 %v443
    %v1618 = vunpack.c.l.b16 %v444
    %v1619 = vunpack.c.h.b16 %v444
    %v1620 = vunpack.c.l.b16 %v445
    %v1621 = vunpack.c.h.b16 %v445
    %v1622 = vunpack.c.l.b16 %v446
    %v1623 = vunpack.c.h.b16 %v446
    %v1624 = vunpack.c.l.b16 %v447
    %v1625 = vunpack.c.h.b16 %v447
    %v1626 = vunpack.c.l.b16 %v448
    %v1627 = vunpack.c.h.b16 %v448
    %v1628 = vunpack.c.l.b16 %v449
    %v1629 = vunpack.c.h.b16 %v449
    %v1630 = vunpack.c.l.b16 %v450
    %v1631 = vunpack.c.h.b16 %v450
    %v1632 = vunpack.c.l.b16 %v451
    %v1633 = vunpack.c.h.b16 %v451
    %v1634 = vunpack.c.l.b16 %v452
    %v1635 = vunpack.c.h.b16 %v452
    %v1636 = vunpack.c.l.b16 %v453
    %v1637 = vunpack.c.h.b16 %v453
    %v1638 = vunpack.c.l.b16 %v454
    %v1639 = vunpack.c.h.b16 %v454
    %v1640 = vunpack.c.l.b16 %v455
    %v1641 = vunpack.c.h.b16 %v455
    %v1642 = vunpack.c.l.b16 %v456
    %v1643 = vunpack.c.h.b16 %v456
    %v1644 = vunpack.c.l.b16 %v457
    %v1645 = vunpack.c.h.b16 %v457
    %v1646 = vunpack.c.l.b16 %v458
    %v1647 = vunpack.c.h.b16 %v458
    %v1648 = vunpack.c.l.b16 %v459
    %v1649 = vunpack.c.h.b16 %v459
    %v1650 = vunpack.c.l.b16 %v460
    %v1651 = vunpack.c.h.b16 %v460
    %v1652 = vunpack.c.l.b16 %v461
    %v1653 = vunpack.c.h.b16 %v461
    %v1654 = vunpack.c.l.b16 %v462
    %v1655 = vunpack.c.h.b16 %v462
    %v1656 = vunpack.c.l.b16 %v463
    %v1657 = vunpack.c.h.b16 %v463
    %v1658 = vunpack.c.l.b16 %v464
    %v1659 = vunpack.c.h.b16 %v464
    %v1660 = vunpack.c.l.b16 %v465
    %v1661 = vunpack.c.h.b16 %v465
    %v1662 = vunpack.c.l.b16 %v466
    %v1663 = vunpack.c.h.b16 %v466
    %v1664 = vunpack.c.l.b16 %v467
    %v1665 = vunpack.c.h.b16 %v467
    %v1666 = vunpack.c.l.b16 %v468
    %v1667 = vunpack.c.h.b16 %v468
    %v1668 = vunpack.c.l.b16 %v469
    %v1669 = vunpack.c.h.b16 %v469
    %v1670 = vunpack.c.l.b16 %v470
    %v1671 = vunpack.c.h.b16 %v470
    %v1672 = vunpack.c.l.b16 %v471
    %v1673 = vunpack.c.h.b16 %v471
    %v1674 = vunpack.c.l.b16 %v472
    %v1675 = vunpack.c.h.b16 %v472
    %v1676 = vunpack.c.l.b16 %v473
    %v1677 = vunpack.c.h.b16 %v473
    %v1678 = vunpack.c.l.b16 %v474
    %v1679 = vunpack.c.h.b16 %v474
    %v1680 = vunpack.c.l.b16 %v475
    %v1681 = vunpack.c.h.b16 %v475
    %v1682 = vunpack.c.l.b16 %v476
    %v1683 = vunpack.c.h.b16 %v476
    %v1684 = vunpack.c.l.b16 %v477
    %v1685 = vunpack.c.h.b16 %v477
    %v1686 = vunpack.c.l.b16 %v478
    %v1687 = vunpack.c.h.b16 %v478
    %v1688 = vunpack.c.l.b16 %v479
    %v1689 = vunpack.c.h.b16 %v479
    %v1690 = vunpack.c.l.b16 %v480
    %v1691 = vunpack.c.h.b16 %v480
    %v1692 = vunpack.c.l.b16 %v481
    %v1693 = vunpack.c.h.b16 %v481
    %v1694 = vpack.c.b16 %v950, %v926
    %v1695 = vpack.c.b16 %v951, %v927
    %v1696 = vpack.c.b16 %v952, %v928
    %v1697 = vpack.c.b16 %v953, %v929
    %v1698 = vpack.c.b16 %v954, %v930
    %v1699 = vpack.c.b16 %v955, %v931
    %v1700 = vpack.c.b16 %v956, %v932
    %v1701 = vpack.c.b16 %v957, %v933
    %v1702 = vpack.c.b16 %v958, %v934
    %v1703 = vpack.c.b16 %v959, %v935
    %v1704 = vpack.c.b16 %v960, %v936
    %v1705 = vpack.c.b16 %v961, %v937
    %v1706 = vpack.c.b16 %v962, %v938
    %v1707 = vpack.c.b16 %v963, %v939
    %v1708 = vpack.c.b16 %v964, %v940
    %v1709 = vpack.c.b16 %v965, %v941
    %v1710 = vpack.c.b16 %v966, %v942
    %v1711 = vpack.c.b16 %v967, %v943
    %v1712 = vpack.c.b16 %v968, %v944
    %v1713 = vpack.c.b16 %v969, %v945
    %v1714 = vpack.c.b16 %v970, %v946
    %v1715 = vpack.c.b16 %v971, %v947
    %v1716 = vpack.c.b16 %v972, %v948
    %v1717 = vpack.c.b16 %v973, %v949
    %v1718 = vpack.c.b16 %v998, %v974
    %v1719 = vpack.c.b16 %v999, %v975
    %v1720 = vpack.c.b16 %v1000, %v976
    %v1721 = vpack.c.b16 %v1001, %v977
    %v1722 = vpack.c.b16 %v1002, %v978
    %v1723 = vpack.c.b16 %v1003, %v979
    %v1724 = vpack.c.b16 %v1004, %v980
    %v1725 = vpack.c.b16 %v1005, %v981
    %v1726 = vpack.c.b16 %v1006, %v982
    %v1727 = vpack.c.b16 %v1007, %v983
    %v1728 = vpack.c.b16 %v1008, %v984
    %v1729 = vpack.c.b16 %v1009, %v985
    %v1730 = vpack.c.b16 %v1010, %v986
    %v1731 = vpack.c.b16 %v1011, %v987
    %v1732 = vpack.c.b16 %v1012, %v988
    %v1733 = vpack.c.b16 %v1013, %v989
    %v1734 = vpack.c.b16 %v1014, %v990
    %v1735 = vpack.c.b16 %v1015, %v991
    %v1736 = vpack.c.b16 %v1016, %v992
    %v1737 = vpack.c.b16 %v1017, %v993
    %v1738 = vpack.c.b16 %v1018, %v994
    %v1739 = vpack.c.b16 %v1019, %v995
    %v1740 = vpack.c.b16 %v1020, %v996
    %v1741 = vpack.c.b16 %v1021, %v997
    %v1742 = vpack.c.b16 %v1046, %v1022
    %v1743 = vpack.c.b16 %v1047, %v1023
    %v1744 = vpack.c.b16 %v1048, %v1024
    %v1745 = vpack.c.b16 %v1049, %v1025
    %v1746 = vpack.c.b16 %v1050, %v1026
    %v1747 = vpack.c.b16 %v1051, %v1027
    %v1748 = vpack.c.b16 %v1052, %v1028
    %v1749 = vpack.c.b16 %v1053, %v1029
    %v1750 = vpack.c.b16 %v1054, %v1030
    %v1751 = vpack.c.b16 %v1055, %v1031
    %v1752 = vpack.c.b16 %v1056, %v1032
    %v1753 = vpack.c.b16 %v1057, %v1033
    %v1754 = vpack.c.b16 %v1058, %v1034
    %v1755 = vpack.c.b16 %v1059, %v1035
    %v1756 = vpack.c.b16 %v1060, %v1036
    %v1757 = vpack.c.b16 %v1061, %v1037
    %v1758 = vpack.c.b16 %v1062, %v1038
    %v1759 = vpack.c.b16 %v1063, %v1039
    %v1760 = vpack.c.b16 %v1064, %v1040
    %v1761 = vpack.c.b16 %v1065, %v1041
    %v1762 = vpack.c.b16 %v1066, %v1042
    %v1763 = vpack.c.b16 %v1067, %v1043
    %v1764 = vpack.c.b16 %v1068, %v1044
    %v1765 = vpack.c.b16 %v1069, %v1045
    %v1766 = vpack.c.b16 %v1094, %v1070
    %v1767 = vpack.c.b16 %v1095, %v1071
    %v1768 = vpack.c.b16 %v1096, %v1072
    %v1769 = vpack.c.b16 %v1097, %v1073
    %v1770 = vpack.c.b16 %v1098, %v1074
    %v1771 = vpack.c.b16 %v1099, %v1075
    %v1772 = vpack.c.b16 %v1100, %v1076
    %v1773 = vpack.c.b16 %v1101, %v1077
    %v1774 = vpack.c.b16 %v1102, %v1078
    %v1775 = vpack.c.b16 %v1103, %v1079
    %v1776 = vpack.c.b16 %v1104, %v1080
    %v1777 = vpack.c.b16 %v1105, %v1081
    %v1778 = vpack.c.b16 %v1106, %v1082
    %v1779 = vpack.c.b16 %v1107, %v1083
    %v1780 = vpack.c.b16 %v1108, %v1084
    %v1781 = vpack.c.b16 %v1109, %v1085
    %v1782 = vpack.c.b16 %v1110, %v1086
    %v1783 = vpack.c.b16 %v1111, %v1087
    %v1784 = vpack.c.b16 %v1112, %v1088
    %v1785 = vpack.c.b16 %v1113, %v1089
    %v1786 = vpack.c.b16 %v1114, %v1090
    %v1787 = vpack.c.b16 %v1115, %v1091
    %v1788 = vpack.c.b16 %v1116, %v1092
    %v1789 = vpack.c.b16 %v1117, %v1093
    %v1790 = vpack.c.b16 %v1142, %v1118
    %v1791 = vpack.c.b16 %v1143, %v1119
    %v1792 = vpack.c.b16 %v1144, %v1120
    %v1793 = vpack.c.b16 %v1145, %v1121
    %v1794 = vpack.c.b16 %v1146, %v1122
    %v1795 = vpack.c.b16 %v1147, %v1123
    %v1796 = vpack.c.b16 %v1148, %v1124
    %v1797 = vpack.c.b16 %v1149, %v1125
    %v1798 = vpack.c.b16 %v1150, %v1126
    %v1799 = vpack.c.b16 %v1151, %v1127
    %v1800 = vpack.c.b16 %v1152, %v1128
    %v1801 = vpack.c.b16 %v1153, %v1129
    %v1802 = vpack.c.b16 %v1154, %v1130
    %v1803 = vpack.c.b16 %v1155, %v1131
    %v1804 = vpack.c.b16 %v1156, %v1132
    %v1805 = vpack.c.b16 %v1157, %v1133
    %v1806 = vpack.c.b16 %v1158, %v1134
    %v1807 = vpack.c.b16 %v1159, %v1135
    %v1808 = vpack.c.b16 %v1160, %v1136
    %v1809 = vpack.c.b16 %v1161, %v1137
    %v1810 = vpack.c.b16 %v1162, %v1138
    %v1811 = vpack.c.b16 %v1163, %v1139
    %v1812 = vpack.c.b16 %v1164, %v1140
    %v1813 = vpack.c.b16 %v1165, %v1141
    %v1814 = vpack.c.b16 %v1190, %v1166
    %v1815 = vpack.c.b16 %v1191, %v1167
    %v1816 = vpack.c.b16 %v1192, %v1168
    %v1817 = vpack.c.b16 %v1193, %v1169
    %v1818 = vpack.c.b16 %v1194, %v1170
    %v1819 = vpack.c.b16 %v1195, %v1171
    %v1820 = vpack.c.b16 %v1196, %v1172
    %v1821 = vpack.c.b16 %v1197, %v1173
    %v1822 = vpack.c.b16 %v1198, %v1174
    %v1823 = vpack.c.b16 %v1199, %v1175
    %v1824 = vpack.c.b16 %v1200, %v1176
    %v1825 = vpack.c.b16 %v1201, %v1177
    %v1826 = vpack.c.b16 %v1202, %v1178
    %v1827 = vpack.c.b16 %v1203, %v1179
    %v1828 = vpack.c.b16 %v1204, %v1180
    %v1829 = vpack.c.b16 %v1205, %v1181
    %v1830 = vpack.c.b16 %v1206, %v1182
    %v1831 = vpack.c.b16 %v1207, %v1183
    %v1832 = vpack.c.b16 %v1208, %v1184
    %v1833 = vpack.c.b16 %v1209, %v1185
    %v1834 = vpack.c.b16 %v1210, %v1186
    %v1835 = vpack.c.b16 %v1211, %v1187
    %v1836 = vpack.c.b16 %v1212, %v1188
    %v1837 = vpack.c.b16 %v1213, %v1189
    %v1838 = vpack.c.b16 %v1238, %v1214
    %v1839 = vpack.c.b16 %v1239, %v1215
    %v1840 = vpack.c.b16 %v1240, %v1216
    %v1841 = vpack.c.b16 %v1241, %v1217
    %v1842 = vpack.c.b16 %v1242, %v1218
    %v1843 = vpack.c.b16 %v1243, %v1219
    %v1844 = vpack.c.b16 %v1244, %v1220
    %v1845 = vpack.c.b16 %v1245, %v1221
    %v1846 = vpack.c.b16 %v1246, %v1222
    %v1847 = vpack.c.b16 %v1247, %v1223
    %v1848 = vpack.c.b16 %v1248, %v1224
    %v1849 = vpack.c.b16 %v1249, %v1225
    %v1850 = vpack.c.b16 %v1250, %v1226
    %v1851 = vpack.c.b16 %v1251, %v1227
    %v1852 = vpack.c.b16 %v1252, %v1228
    %v1853 = vpack.c.b16 %v1253, %v1229
    %v1854 = vpack.c.b16 %v1254, %v1230
    %v1855 = vpack.c.b16 %v1255, %v1231
    %v1856 = vpack.c.b16 %v1256, %v1232
    %v1857 = vpack.c.b16 %v1257, %v1233
    %v1858 = vpack.c.b16 %v1258, %v1234
    %v1859 = vpack.c.b16 %v1259, %v1235
    %v1860 = vpack.c.b16 %v1260, %v1236
    %v1861 = vpack.c.b16 %v1261, %v1237
    %v1862 = vpack.c.b16 %v1286, %v1262
    %v1863 = vpack.c.b16 %v1287, %v1263
    %v1864 = vpack.c.b16 %v1288, %v1264
    %v1865 = vpack.c.b16 %v1289, %v1265
    %v1866 = vpack.c.b16 %v1290, %v1266
    %v1867 = vpack.c.b16 %v1291, %v1267
    %v1868 = vpack.c.b16 %v1292, %v1268
    %v1869 = vpack.c.b16 %v1293, %v1269
    %v1870 = vpack.c.b16 %v1294, %v1270
    %v1871 = vpack.c.b16 %v1295, %v1271
    %v1872 = vpack.c.b16 %v1296, %v1272
    %v1873 = vpack.c.b16 %v1297, %v1273
    %v1874 = vpack.c.b16 %v1298, %v1274
    %v1875 = vpack.c.b16 %v1299, %v1275
    %v1876 = vpack.c.b16 %v1300, %v1276
    %v1877 = vpack.c.b16 %v1301, %v1277
    %v1878 = vpack.c.b16 %v1302, %v1278
    %v1879 = vpack.c.b16 %v1303, %v1279
    %v1880 = vpack.c.b16 %v1304, %v1280
    %v1881 = vpack.c.b16 %v1305, %v1281
    %v1882 = vpack.c.b16 %v1306, %v1282
    %v1883 = vpack.c.b16 %v1307, %v1283
    %v1884 = vpack.c.b16 %v1308, %v1284
    %v1885 = vpack.c.b16 %v1309, %v1285
    %v1886 = vpack.c.b16 %v1334, %v1310
    %v1887 = vpack.c.b16 %v1335, %v1311
    %v1888 = vpack.c.b16 %v1336, %v1312
    %v1889 = vpack.c.b16 %v1337, %v1313
    %v1890 = vpack.c.b16 %v1338, %v1314
    %v1891 = vpack.c.b16 %v1339, %v1315
    %v1892 = vpack.c.b16 %v1340, %v1316
    %v1893 = vpack.c.b16 %v1341, %v1317
    %v1894 = vpack.c.b16 %v1342, %v1318
    %v1895 = vpack.c.b16 %v1343, %v1319
    %v1896 = vpack.c.b16 %v1344, %v1320
    %v1897 = vpack.c.b16 %v1345, %v1321
    %v1898 = vpack.c.b16 %v1346, %v1322
    %v1899 = vpack.c.b16 %v1347, %v1323
    %v1900 = vpack.c.b16 %v1348, %v1324
    %v1901 = vpack.c.b16 %v1349, %v1325
    %v1902 = vpack.c.b16 %v1350, %v1326
    %v1903 = vpack.c.b16 %v1351, %v1327
    %v1904 = vpack.c.b16 %v1352, %v1328
    %v1905 = vpack.c.b16 %v1353, %v1329
    %v1906 = vpack.c.b16 %v1354, %v1330
    %v1907 = vpack.c.b16 %v1355, %v1331
    %v1908 = vpack.c.b16 %v1356, %v1332
    %v1909 = vpack.c.b16 %v1357, %v1333
    %v1910 = vpack.c.b16 %v1382, %v1358
    %v1911 = vpack.c.b16 %v1383, %v1359
    %v1912 = vpack.c.b16 %v1384, %v1360
    %v1913 = vpack.c.b16 %v1385, %v1361
    %v1914 = vpack.c.b16 %v1386, %v1362
    %v1915 = vpack.c.b16 %v1387, %v1363
    %v1916 = vpack.c.b16 %v1388, %v1364
    %v1917 = vpack.c.b16 %v1389, %v1365
    %v1918 = vpack.c.b16 %v1390, %v1366
    %v1919 = vpack.c.b16 %v1391, %v1367
    %v1920 = vpack.c.b16 %v1392, %v1368
    %v1921 = vpack.c.b16 %v1393, %v1369
    %v1922 = vpack.c.b16 %v1394, %v1370
    %v1923 = vpack.c.b16 %v1395, %v1371
    %v1924 = vpack.c.b16 %v1396, %v1372
    %v1925 = vpack.c.b16 %v1397, %v1373
    %v1926 = vpack.c.b16 %v1398, %v1374
    %v1927 = vpack.c.b16 %v1399, %v1375
    %v1928 = vpack.c.b16 %v1400, %v1376
    %v1929 = vpack.c.b16 %v1401, %v1377
    %v1930 = vpack.c.b16 %v1402, %v1378
    %v1931 = vpack.c.b16 %v1403, %v1379
    %v1932 = vpack.c.b16 %v1404, %v1380
    %v1933 = vpack.c.b16 %v1405, %v1381
    %v1934 = vpack.c.b16 %v1430, %v1406
    %v1935 = vpack.c.b16 %v1431, %v1407
    %v1936 = vpack.c.b16 %v1432, %v1408
    %v1937 = vpack.c.b16 %v1433, %v1409
    %v1938 = vpack.c.b16 %v1434, %v1410
    %v1939 = vpack.c.b16 %v1435, %v1411
    %v1940 = vpack.c.b16 %v1436, %v1412
    %v1941 = vpack.c.b16 %v1437, %v1413
    %v1942 = vpack.c.b16 %v1438, %v1414
    %v1943 = vpack.c.b16 %v1439, %v1415
    %v1944 = vpack.c.b16 %v1440, %v1416
    %v1945 = vpack.c.b16 %v1441, %v1417
    %v1946 = vpack.c.b16 %v1442, %v1418
    %v1947 = vpack.c.b16 %v1443, %v1419
    %v1948 = vpack.c.b16 %v1444, %v1420
    %v1949 = vpack.c.b16 %v1445, %v1421
    %v1950 = vpack.c.b16 %v1446, %v1422
    %v1951 = vpack.c.b16 %v1447, %v1423
    %v1952 = vpack.c.b16 %v1448, %v1424
    %v1953 = vpack.c.b16 %v1449, %v1425
    %v1954 = vpack.c.b16 %v1450, %v1426
    %v1955 = vpack.c.b16 %v1451, %v1427
    %v1956 = vpack.c.b16 %v1452, %v1428
    %v1957 = vpack.c.b16 %v1453, %v1429
    %v1958 = vpack.c.b16 %v1478, %v1454
    %v1959 = vpack.c.b16 %v1479, %v1455
    %v1960 = vpack.c.b16 %v1480, %v1456
    %v1961 = vpack.c.b16 %v1481, %v1457
    %v1962 = vpack.c.b16 %v1482, %v1458
    %v1963 = vpack.c.b16 %v1483, %v1459
    %v1964 = vpack.c.b16 %v1484, %v1460
    %v1965 = vpack.c.b16 %v1485, %v1461
    %v1966 = vpack.c.b16 %v1486, %v1462
    %v1967 = vpack.c.b16 %v1487, %v1463
    %v1968 = vpack.c.b16 %v1488, %v1464
    %v1969 = vpack.c.b16 %v1489, %v1465
    %v1970 = vpack.c.b16 %v1490, %v1466
    %v1971 = vpack.c.b16 %v1491, %v1467
    %v1972 = vpack.c.b16 %v1492, %v1468
    %v1973 = vpack.c.b16 %v1493, %v1469
    %v1974 = vpack.c.b16 %v1494, %v1470
    %v1975 = vpack.c.b16 %v1495, %v1471
    %v1976 = vpack.c.b16 %v1496, %v1472
    %v1977 = vpack.c.b16 %v1497, %v1473
    %v1978 = vpack.c.b16 %v1498, %v1474
    %v1979 = vpack.c.b16 %v1499, %v1475
    %v1980 = vpack.c.b16 %v1500, %v1476
    %v1981 = vpack.c.b16 %v1501, %v1477
    %v1982 = vpack.c.b16 %v1526, %v1502
    %v1983 = vpack.c.b16 %v1527, %v1503
    %v1984 = vpack.c.b16 %v1528, %v1504
    %v1985 = vpack.c.b16 %v1529, %v1505
    %v1986 = vpack.c.b16 %v1530, %v1506
    %v1987 = vpack.c.b16 %v1531, %v1507
    %v1988 = vpack.c.b16 %v1532, %v1508
    %v1989 = vpack.c.b16 %v1533, %v1509
    %v1990 = vpack.c.b16 %v1534, %v1510
    %v1991 = vpack.c.b16 %v1535, %v1511
    %v1992 = vpack.c.b16 %v1536, %v1512
    %v1993 = vpack.c.b16 %v1537, %v1513
    %v1994 = vpack.c.b16 %v1538, %v1514
    %v1995 = vpack.c.b16 %v1539, %v1515
    %v1996 = vpack.c.b16 %v1540, %v1516
    %v1997 = vpack.c.b16 %v1541, %v1517
    %v1998 = vpack.c.b16 %v1542, %v1518
    %v1999 = vpack.c.b16 %v1543, %v1519
    %v2000 = vpack.c.b16 %v1544, %v1520
    %v2001 = vpack.c.b16 %v1545, %v1521
    %v2002 = vpack.c.b16 %v1546, %v1522
    %v2003 = vpack.c.b16 %v1547, %v1523
    %v2004 = vpack.c.b16 %v1548, %v1524
    %v2005 = vpack.c.b16 %v1549, %v1525
    %v2006 = vpack.c.b16 %v1574, %v1550
    %v2007 = vpack.c.b16 %v1575, %v1551
    %v2008 = vpack.c.b16 %v1576, %v1552
    %v2009 = vpack.c.b16 %v1577, %v1553
    %v2010 = vpack.c.b16 %v1578, %v1554
    %v2011 = vpack.c.b16 %v1579, %v1555
    %v2012 = vpack.c.b16 %v1580, %v1556
    %v2013 = vpack.c.b16 %v1581, %v1557
    %v2014 = vpack.c.b16 %v1582, %v1558
    %v2015 = vpack.c.b16 %v1583, %v1559
    %v2016 = vpack.c.b16 %v1584, %v1560
    %v2017 = vpack.c.b16 %v1585, %v1561
    %v2018 = vpack.c.b16 %v1586, %v1562
    %v2019 = vpack.c.b16 %v1587, %v1563
    %v2020 = vpack.c.b16 %v1588, %v1564
    %v2021 = vpack.c.b16 %v1589, %v1565
    %v2022 = vpack.c.b16 %v1590, %v1566
    %v2023 = vpack.c.b16 %v1591, %v1567
    %v2024 = vpack.c.b16 %v1592, %v1568
    %v2025 = vpack.c.b16 %v1593, %v1569
    %v2026 = vpack.c.b16 %v1594, %v1570
    %v2027 = vpack.c.b16 %v1595, %v1571
    %v2028 = vpack.c.b16 %v1596, %v1572
    %v2029 = vpack.c.b16 %v1597, %v1573
    %v2030 = vpack.c.b16 %v1622, %v1598
    %v2031 = vpack.c.b16 %v1623, %v1599
    %v2032 = vpack.c.b16 %v1624, %v1600
    %v2033 = vpack.c.b16 %v1625, %v1601
    %v2034 = vpack.c.b16 %v1626, %v1602
    %v2035 = vpack.c.b16 %v1627, %v1603
    %v2036 = vpack.c.b16 %v1628, %v1604
    %v2037 = vpack.c.b16 %v1629, %v1605
    %v2038 = vpack.c.b16 %v1630, %v1606
    %v2039 = vpack.c.b16 %v1631, %v1607
    %v2040 = vpack.c.b16 %v1632, %v1608
    %v2041 = vpack.c.b16 %v1633, %v1609
    %v2042 = vpack.c.b16 %v1634, %v1610
    %v2043 = vpack.c.b16 %v1635, %v1611
    %v2044 = vpack.c.b16 %v1636, %v1612
    %v2045 = vpack.c.b16 %v1637, %v1613
    %v2046 = vpack.c.b16 %v1638, %v1614
    %v2047 = vpack.c.b16 %v1639, %v1615
    %v2048 = vpack.c.b16 %v1640, %v1616
    %v2049 = vpack.c.b16 %v1641, %v1617
    %v2050 = vpack.c.b16 %v1642, %v1618
    %v2051 = vpack.c.b16 %v1643, %v1619
    %v2052 = vpack.c.b16 %v1644, %v1620
    %v2053 = vpack.c.b16 %v1645, %v1621
    %v2054 = vpack.c.b16 %v1670, %v1646
    %v2055 = vpack.c.b16 %v1671, %v1647
    %v2056 = vpack.c.b16 %v1672, %v1648
    %v2057 = vpack.c.b16 %v1673, %v1649
    %v2058 = vpack.c.b16 %v1674, %v1650
    %v2059 = vpack.c.b16 %v1675, %v1651
    %v2060 = vpack.c.b16 %v1676, %v1652
    %v2061 = vpack.c.b16 %v1677, %v1653
    %v2062 = vpack.c.b16 %v1678, %v1654
    %v2063 = vpack.c.b16 %v1679, %v1655
    %v2064 = vpack.c.b16 %v1680, %v1656
    %v2065 = vpack.c.b16 %v1681, %v1657
    %v2066 = vpack.c.b16 %v1682, %v1658
    %v2067 = vpack.c.b16 %v1683, %v1659
    %v2068 = vpack.c.b16 %v1684, %v1660
    %v2069 = vpack.c.b16 %v1685, %v1661
    %v2070 = vpack.c.b16 %v1686, %v1662
    %v2071 = vpack.c.b16 %v1687, %v1663
    %v2072 = vpack.c.b16 %v1688, %v1664
    %v2073 = vpack.c.b16 %v1689, %v1665
    %v2074 = vpack.c.b16 %v1690, %v1666
    %v2075 = vpack.c.b16 %v1691, %v1667
    %v2076 = vpack.c.b16 %v1692, %v1668
    %v2077 = vpack.c.b16 %v1693, %v1669
    %2462 = vmatprep.subr.bf16.mxu0 %v1695
    %2463 = vmatpush1.bf16.msra.mxu0 %v1694
    %2464 = vmatprep.subr.bf16.mxu0 %v1719
    %2465 = vmatpush1.bf16.msra.mxu0 %v1718
    %2466 = vmatprep.subr.bf16.mxu0 %v1743
    %2467 = vmatpush1.bf16.msra.mxu0 %v1742
    %2468 = vmatprep.subr.bf16.mxu0 %v1767
    %2469 = vmatpush1.bf16.msra.mxu0 %v1766
    %2470 = vmatprep.subr.bf16.mxu0 %v1791
    %2471 = vmatpush1.bf16.msra.mxu0 %v1790
    %2472 = vmatprep.subr.bf16.mxu0 %v1815
    %2473 = vmatpush1.bf16.msra.mxu0 %v1814
    %2474 = vmatprep.subr.bf16.mxu0 %v1839
    %2475 = vmatpush1.bf16.msra.mxu0 %v1838
    %2476 = vmatprep.subr.bf16.mxu0 %v1863
    %2477 = vmatpush1.bf16.msra.mxu0 %v1862
    %2478 = vmatprep.subr.bf16.mxu0 %v1887
    %2479 = vmatpush1.bf16.msra.mxu0 %v1886
    %2480 = vmatprep.subr.bf16.mxu0 %v1911
    %2481 = vmatpush1.bf16.msra.mxu0 %v1910
    %2482 = vmatprep.subr.bf16.mxu0 %v1935
    %2483 = vmatpush1.bf16.msra.mxu0 %v1934
    %2484 = vmatprep.subr.bf16.mxu0 %v1959
    %2485 = vmatpush1.bf16.msra.mxu0 %v1958
    %2486 = vmatprep.subr.bf16.mxu0 %v1983
    %2487 = vmatpush1.bf16.msra.mxu0 %v1982
    %2488 = vmatprep.subr.bf16.mxu0 %v2007
    %2489 = vmatpush1.bf16.msra.mxu0 %v2006
    %2490 = vmatprep.subr.bf16.mxu0 %v2031
    %2491 = vmatpush1.bf16.msra.mxu0 %v2030
    %2492 = vmatprep.subr.bf16.mxu0 %v2055
    %2493 = vmatpush1.bf16.msra.mxu0 %v2054
    %2494 = vmatprep.mubr.bf16.mxu0 %v519
    %2495 = vmatmul.mubr.bf16.gmra.mrb[0].mxu0 %v518
    %v2496 = vpop.f32.mrb[0].mxu0
    %v2497 = vadd.f32 0.0, %v2496
    %v2498 = vpop.f32.mrb[0].mxu0
    %v2499 = vadd.f32 0.0, %v2498
    %v2500 = vpop.f32.mrb[0].mxu0
    %v2501 = vadd.f32 0.0, %v2500
    %v2502 = vpop.f32.mrb[0].mxu0
    %v2503 = vadd.f32 0.0, %v2502
    %2504 = vmatprep.mubr.bf16.mxu0 %v521
    %2505 = vmatmul.mubr.bf16.gmra.mrb[0].mxu0 %v520
    %v2506 = vpop.f32.mrb[0].mxu0
    %v2507 = vadd.f32 0.0, %v2506
    %v2508 = vpop.f32.mrb[0].mxu0
    %v2509 = vadd.f32 0.0, %v2508
    %v2510 = vpop.f32.mrb[0].mxu0
    %v2511 = vadd.f32 0.0, %v2510
    %v2512 = vpop.f32.mrb[0].mxu0
    %v2513 = vadd.f32 0.0, %v2512
    %2514 = vmatprep.mubr.bf16.mxu0 %v523
    %2515 = vmatmul.mubr.bf16.gmra.mrb[0].mxu0 %v522
    %v2516 = vpop.f32.mrb[0].mxu0
    %v2517 = vadd.f32 0.0, %v2516
    %v2518 = vpop.f32.mrb[0].mxu0
    %v2519 = vadd.f32 0.0, %v2518
    %v2520 = vpop.f32.mrb[0].mxu0
    %v2521 = vadd.f32 0.0, %v2520
    %v2522 = vpop.f32.mrb[0].mxu0
    %v2523 = vadd.f32 0.0, %v2522
    %2524 = vmatprep.mubr.bf16.mxu0 %v525
    %2525 = vmatmul.mubr.bf16.gmra.mrb[0].mxu0 %v524
    %v2526 = vpop.f32.mrb[0].mxu0
    %v2527 = vadd.f32 0.0, %v2526
    %v2528 = vpop.f32.mrb[0].mxu0
    %v2529 = vadd.f32 0.0, %v2528
    %v2530 = vpop.f32.mrb[0].mxu0
    %v2531 = vadd.f32 0.0, %v2530
    %v2532 = vpop.f32.mrb[0].mxu0
    %v2533 = vadd.f32 0.0, %v2532
    %2534 = vmatprep.mubr.bf16.mxu0 %v527
    %2535 = vmatmul.mubr.bf16.gmra.mrb[0].mxu0 %v526
    %v2536 = vpop.f32.mrb[0].mxu0
    %v2537 = vadd.f32 0.0, %v2536
    %v2538 = vpop.f32.mrb[0].mxu0
    %v2539 = vadd.f32 0.0, %v2538
    %v2540 = vpop.f32.mrb[0].mxu0
    %v2541 = vadd.f32 0.0, %v2540
    %v2542 = vpop.f32.mrb[0].mxu0
    %v2543 = vadd.f32 0.0, %v2542
    %2544 = vmatprep.mubr.bf16.mxu0 %v529
    %2545 = vmatmul.mubr.bf16.gmra.mrb[0].mxu0 %v528
    %v2546 = vpop.f32.mrb[0].mxu0
    %v2547 = vadd.f32 0.0, %v2546
    %v2548 = vpop.f32.mrb[0].mxu0
    %v2549 = vadd.f32 0.0, %v2548
    %v2550 = vpop.f32.mrb[0].mxu0
    %v2551 = vadd.f32 0.0, %v2550
    %v2552 = vpop.f32.mrb[0].mxu0
    %v2553 = vadd.f32 0.0, %v2552
    %2554 = vdwg.mxu0
    %2555 = vmatprep.subr.bf16.mxu0 %v1697
    %2556 = vmatpush1.bf16.msra.mxu0 %v1696
    %2557 = vmatprep.subr.bf16.mxu0 %v1721
    %2558 = vmatpush1.bf16.msra.mxu0 %v1720
    %2559 = vmatprep.subr.bf16.mxu0 %v1745
    %2560 = vmatpush1.bf16.msra.mxu0 %v1744
    %2561 = vmatprep.subr.bf16.mxu0 %v1769
    %2562 = vmatpush1.bf16.msra.mxu0 %v1768
    %2563 = vmatprep.subr.bf16.mxu0 %v1793
    %2564 = vmatpush1.bf16.msra.mxu0 %v1792
    %2565 = vmatprep.subr.bf16.mxu0 %v1817
    %2566 = vmatpush1.bf16.msra.mxu0 %v1816
    %2567 = vmatprep.subr.bf16.mxu0 %v1841
    %2568 = vmatpush1.bf16.msra.mxu0 %v1840
    %2569 = vmatprep.subr.bf16.mxu0 %v1865
    %2570 = vmatpush1.bf16.msra.mxu0 %v1864
    %2571 = vmatprep.subr.bf16.mxu0 %v1889
    %2572 = vmatpush1.bf16.msra.mxu0 %v1888
    %2573 = vmatprep.subr.bf16.mxu0 %v1913
    %2574 = vmatpush1.bf16.msra.mxu0 %v1912
    %2575 = vmatprep.subr.bf16.mxu0 %v1937
    %2576 = vmatpush1.bf16.msra.mxu0 %v1936
    %2577 = vmatprep.subr.bf16.mxu0 %v1961
    %2578 = vmatpush1.bf16.msra.mxu0 %v1960
    %2579 = vmatprep.subr.bf16.mxu0 %v1985
    %2580 = vmatpush1.bf16.msra.mxu0 %v1984
    %2581 = vmatprep.subr.bf16.mxu0 %v2009
    %2582 = vmatpush1.bf16.msra.mxu0 %v2008
    %2583 = vmatprep.subr.bf16.mxu0 %v2033
    %2584 = vmatpush1.bf16.msra.mxu0 %v2032
    %2585 = vmatprep.subr.bf16.mxu0 %v2057
    %2586 = vmatpush1.bf16.msra.mxu0 %v2056
    %2587 = vmatprep.mubr.bf16.mxu0 %v519
    %2588 = vmatmul.mubr.bf16.gmra.mrb[0].mxu0 %v518
    %v2589 = vpop.f32.mrb[0].mxu0
    %v2590 = vadd.f32 0.0, %v2589
    %v2591 = vpop.f32.mrb[0].mxu0
    %v2592 = vadd.f32 0.0, %v2591
    %v2593 = vpop.f32.mrb[0].mxu0
    %v2594 = vadd.f32 0.0, %v2593
    %v2595 = vpop.f32.mrb[0].mxu0
    %v2596 = vadd.f32 0.0, %v2595
    %2597 = vmatprep.mubr.bf16.mxu0 %v521
    %2598 = vmatmul.mubr.bf16.gmra.mrb[0].mxu0 %v520
    %v2599 = vpop.f32.mrb[0].mxu0
    %v2600 = vadd.f32 0.0, %v2599
    %v2601 = vpop.f32.mrb[0].mxu0
    %v2602 = vadd.f32 0.0, %v2601
    %v2603 = vpop.f32.mrb[0].mxu0
    %v2604 = vadd.f32 0.0, %v2603
    %v2605 = vpop.f32.mrb[0].mxu0
    %v2606 = vadd.f32 0.0, %v2605
    %2607 = vmatprep.mubr.bf16.mxu0 %v523
    %2608 = vmatmul.mubr.bf16.gmra.mrb[0].mxu0 %v522
    %v2609 = vpop.f32.mrb[0].mxu0
    %v2610 = vadd.f32 0.0, %v2609
    %v2611 = vpop.f32.mrb[0].mxu0
    %v2612 = vadd.f32 0.0, %v2611
    %v2613 = vpop.f32.mrb[0].mxu0
    %v2614 = vadd.f32 0.0, %v2613
    %v2615 = vpop.f32.mrb[0].mxu0
    %v2616 = vadd.f32 0.0, %v2615
    %2617 = vmatprep.mubr.bf16.mxu0 %v525
    %2618 = vmatmul.mubr.bf16.gmra.mrb[0].mxu0 %v524
    %v2619 = vpop.f32.mrb[0].mxu0
    %v2620 = vadd.f32 0.0, %v2619
    %v2621 = vpop.f32.mrb[0].mxu0
    %v2622 = vadd.f32 0.0, %v2621
    %v2623 = vpop.f32.mrb[0].mxu0
    %v2624 = vadd.f32 0.0, %v2623
    %v2625 = vpop.f32.mrb[0].mxu0
    %v2626 = vadd.f32 0.0, %v2625
    %2627 = vmatprep.mubr.bf16.mxu0 %v527
    %2628 = vmatmul.mubr.bf16.gmra.mrb[0].mxu0 %v526
    %v2629 = vpop.f32.mrb[0].mxu0
    %v2630 = vadd.f32 0.0, %v2629
    %v2631 = vpop.f32.mrb[0].mxu0
    %v2632 = vadd.f32 0.0, %v2631
    %v2633 = vpop.f32.mrb[0].mxu0
    %v2634 = vadd.f32 0.0, %v2633
    %v2635 = vpop.f32.mrb[0].mxu0
    %v2636 = vadd.f32 0.0, %v2635
    %2637 = vmatprep.mubr.bf16.mxu0 %v529
    %2638 = vmatmul.mubr.bf16.gmra.mrb[0].mxu0 %v528
    %v2639 = vpop.f32.mrb[0].mxu0
    %v2640 = vadd.f32 0.0, %v2639
    %v2641 = vpop.f32.mrb[0].mxu0
    %v2642 = vadd.f32 0.0, %v2641
    %v2643 = vpop.f32.mrb[0].mxu0
    %v2644 = vadd.f32 0.0, %v2643
    %v2645 = vpop.f32.mrb[0].mxu0
    %v2646 = vadd.f32 0.0, %v2645
    %2647 = vdwg.mxu0
    %2648 = vmatprep.subr.bf16.mxu0 %v1699
    %2649 = vmatpush1.bf16.msra.mxu0 %v1698
    %2650 = vmatprep.subr.bf16.mxu0 %v1723
    %2651 = vmatpush1.bf16.msra.mxu0 %v1722
    %2652 = vmatprep.subr.bf16.mxu0 %v1747
    %2653 = vmatpush1.bf16.msra.mxu0 %v1746
    %2654 = vmatprep.subr.bf16.mxu0 %v1771
    %2655 = vmatpush1.bf16.msra.mxu0 %v1770
    %2656 = vmatprep.subr.bf16.mxu0 %v1795
    %2657 = vmatpush1.bf16.msra.mxu0 %v1794
    %2658 = vmatprep.subr.bf16.mxu0 %v1819
    %2659 = vmatpush1.bf16.msra.mxu0 %v1818
    %2660 = vmatprep.subr.bf16.mxu0 %v1843
    %2661 = vmatpush1.bf16.msra.mxu0 %v1842
    %2662 = vmatprep.subr.bf16.mxu0 %v1867
    %2663 = vmatpush1.bf16.msra.mxu0 %v1866
    %2664 = vmatprep.subr.bf16.mxu0 %v1891
    %2665 = vmatpush1.bf16.msra.mxu0 %v1890
    %2666 = vmatprep.subr.bf16.mxu0 %v1915
    %2667 = vmatpush1.bf16.msra.mxu0 %v1914
    %2668 = vmatprep.subr.bf16.mxu0 %v1939
    %2669 = vmatpush1.bf16.msra.mxu0 %v1938
    %2670 = vmatprep.subr.bf16.mxu0 %v1963
    %2671 = vmatpush1.bf16.msra.mxu0 %v1962
    %2672 = vmatprep.subr.bf16.mxu0 %v1987
    %2673 = vmatpush1.bf16.msra.mxu0 %v1986
    %2674 = vmatprep.subr.bf16.mxu0 %v2011
    %2675 = vmatpush1.bf16.msra.mxu0 %v2010
    %2676 = vmatprep.subr.bf16.mxu0 %v2035
    %2677 = vmatpush1.bf16.msra.mxu0 %v2034
    %2678 = vmatprep.subr.bf16.mxu0 %v2059
    %2679 = vmatpush1.bf16.msra.mxu0 %v2058
    %2680 = vmatprep.mubr.bf16.mxu0 %v519
    %2681 = vmatmul.mubr.bf16.gmra.mrb[0].mxu0 %v518
    %v2682 = vpop.f32.mrb[0].mxu0
    %v2683 = vadd.f32 0.0, %v2682
    %v2684 = vpop.f32.mrb[0].mxu0
    %v2685 = vadd.f32 0.0, %v2684
    %v2686 = vpop.f32.mrb[0].mxu0
    %v2687 = vadd.f32 0.0, %v2686
    %v2688 = vpop.f32.mrb[0].mxu0
    %v2689 = vadd.f32 0.0, %v2688
    %2690 = vmatprep.mubr.bf16.mxu0 %v521
    %2691 = vmatmul.mubr.bf16.gmra.mrb[0].mxu0 %v520
    %v2692 = vpop.f32.mrb[0].mxu0
    %v2693 = vadd.f32 0.0, %v2692
    %v2694 = vpop.f32.mrb[0].mxu0
    %v2695 = vadd.f32 0.0, %v2694
    %v2696 = vpop.f32.mrb[0].mxu0
    %v2697 = vadd.f32 0.0, %v2696
    %v2698 = vpop.f32.mrb[0].mxu0
    %v2699 = vadd.f32 0.0, %v2698
    %2700 = vmatprep.mubr.bf16.mxu0 %v523
    %2701 = vmatmul.mubr.bf16.gmra.mrb[0].mxu0 %v522
    %v2702 = vpop.f32.mrb[0].mxu0
    %v2703 = vadd.f32 0.0, %v2702
    %v2704 = vpop.f32.mrb[0].mxu0
    %v2705 = vadd.f32 0.0, %v2704
    %v2706 = vpop.f32.mrb[0].mxu0
    %v2707 = vadd.f32 0.0, %v2706
    %v2708 = vpop.f32.mrb[0].mxu0
    %v2709 = vadd.f32 0.0, %v2708
    %2710 = vmatprep.mubr.bf16.mxu0 %v525
    %2711 = vmatmul.mubr.bf16.gmra.mrb[0].mxu0 %v524
    %v2712 = vpop.f32.mrb[0].mxu0
    %v2713 = vadd.f32 0.0, %v2712
    %v2714 = vpop.f32.mrb[0].mxu0
    %v2715 = vadd.f32 0.0, %v2714
    %v2716 = vpop.f32.mrb[0].mxu0
    %v2717 = vadd.f32 0.0, %v2716
    %v2718 = vpop.f32.mrb[0].mxu0
    %v2719 = vadd.f32 0.0, %v2718
    %2720 = vmatprep.mubr.bf16.mxu0 %v527
    %2721 = vmatmul.mubr.bf16.gmra.mrb[0].mxu0 %v526
    %v2722 = vpop.f32.mrb[0].mxu0
    %v2723 = vadd.f32 0.0, %v2722
    %v2724 = vpop.f32.mrb[0].mxu0
    %v2725 = vadd.f32 0.0, %v2724
    %v2726 = vpop.f32.mrb[0].mxu0
    %v2727 = vadd.f32 0.0, %v2726
    %v2728 = vpop.f32.mrb[0].mxu0
    %v2729 = vadd.f32 0.0, %v2728
    %2730 = vmatprep.mubr.bf16.mxu0 %v529
    %2731 = vmatmul.mubr.bf16.gmra.mrb[0].mxu0 %v528
    %v2732 = vpop.f32.mrb[0].mxu0
    %v2733 = vadd.f32 0.0, %v2732
    %v2734 = vpop.f32.mrb[0].mxu0
    %v2735 = vadd.f32 0.0, %v2734
    %v2736 = vpop.f32.mrb[0].mxu0
    %v2737 = vadd.f32 0.0, %v2736
    %v2738 = vpop.f32.mrb[0].mxu0
    %v2739 = vadd.f32 0.0, %v2738
    %2740 = vdwg.mxu0
    %2741 = vmatprep.subr.bf16.mxu0 %v1701
    %2742 = vmatpush1.bf16.msra.mxu0 %v1700
    %2743 = vmatprep.subr.bf16.mxu0 %v1725
    %2744 = vmatpush1.bf16.msra.mxu0 %v1724
    %2745 = vmatprep.subr.bf16.mxu0 %v1749
    %2746 = vmatpush1.bf16.msra.mxu0 %v1748
    %2747 = vmatprep.subr.bf16.mxu0 %v1773
    %2748 = vmatpush1.bf16.msra.mxu0 %v1772
    %2749 = vmatprep.subr.bf16.mxu0 %v1797
    %2750 = vmatpush1.bf16.msra.mxu0 %v1796
    %2751 = vmatprep.subr.bf16.mxu0 %v1821
    %2752 = vmatpush1.bf16.msra.mxu0 %v1820
    %2753 = vmatprep.subr.bf16.mxu0 %v1845
    %2754 = vmatpush1.bf16.msra.mxu0 %v1844
    %2755 = vmatprep.subr.bf16.mxu0 %v1869
    %2756 = vmatpush1.bf16.msra.mxu0 %v1868
    %2757 = vmatprep.subr.bf16.mxu0 %v1893
    %2758 = vmatpush1.bf16.msra.mxu0 %v1892
    %2759 = vmatprep.subr.bf16.mxu0 %v1917
    %2760 = vmatpush1.bf16.msra.mxu0 %v1916
    %2761 = vmatprep.subr.bf16.mxu0 %v1941
    %2762 = vmatpush1.bf16.msra.mxu0 %v1940
    %2763 = vmatprep.subr.bf16.mxu0 %v1965
    %2764 = vmatpush1.bf16.msra.mxu0 %v1964
    %2765 = vmatprep.subr.bf16.mxu0 %v1989
    %2766 = vmatpush1.bf16.msra.mxu0 %v1988
    %2767 = vmatprep.subr.bf16.mxu0 %v2013
    %2768 = vmatpush1.bf16.msra.mxu0 %v2012
    %2769 = vmatprep.subr.bf16.mxu0 %v2037
    %2770 = vmatpush1.bf16.msra.mxu0 %v2036
    %2771 = vmatprep.subr.bf16.mxu0 %v2061
    %2772 = vmatpush1.bf16.msra.mxu0 %v2060
    %2773 = vmatprep.mubr.bf16.mxu0 %v519
    %2774 = vmatmul.mubr.bf16.gmra.mrb[0].mxu0 %v518
    %v2775 = vpop.f32.mrb[0].mxu0
    %v2776 = vadd.f32 0.0, %v2775
    %v2777 = vpop.f32.mrb[0].mxu0
    %v2778 = vadd.f32 0.0, %v2777
    %v2779 = vpop.f32.mrb[0].mxu0
    %v2780 = vadd.f32 0.0, %v2779
    %v2781 = vpop.f32.mrb[0].mxu0
    %v2782 = vadd.f32 0.0, %v2781
    %2783 = vmatprep.mubr.bf16.mxu0 %v521
    %2784 = vmatmul.mubr.bf16.gmra.mrb[0].mxu0 %v520
    %v2785 = vpop.f32.mrb[0].mxu0
    %v2786 = vadd.f32 0.0, %v2785
    %v2787 = vpop.f32.mrb[0].mxu0
    %v2788 = vadd.f32 0.0, %v2787
    %v2789 = vpop.f32.mrb[0].mxu0
    %v2790 = vadd.f32 0.0, %v2789
    %v2791 = vpop.f32.mrb[0].mxu0
    %v2792 = vadd.f32 0.0, %v2791
    %2793 = vmatprep.mubr.bf16.mxu0 %v523
    %2794 = vmatmul.mubr.bf16.gmra.mrb[0].mxu0 %v522
    %v2795 = vpop.f32.mrb[0].mxu0
    %v2796 = vadd.f32 0.0, %v2795
    %v2797 = vpop.f32.mrb[0].mxu0
    %v2798 = vadd.f32 0.0, %v2797
    %v2799 = vpop.f32.mrb[0].mxu0
    %v2800 = vadd.f32 0.0, %v2799
    %v2801 = vpop.f32.mrb[0].mxu0
    %v2802 = vadd.f32 0.0, %v2801
    %2803 = vmatprep.mubr.bf16.mxu0 %v525
    %2804 = vmatmul.mubr.bf16.gmra.mrb[0].mxu0 %v524
    %v2805 = vpop.f32.mrb[0].mxu0
    %v2806 = vadd.f32 0.0, %v2805
    %v2807 = vpop.f32.mrb[0].mxu0
    %v2808 = vadd.f32 0.0, %v2807
    %v2809 = vpop.f32.mrb[0].mxu0
    %v2810 = vadd.f32 0.0, %v2809
    %v2811 = vpop.f32.mrb[0].mxu0
    %v2812 = vadd.f32 0.0, %v2811
    %2813 = vmatprep.mubr.bf16.mxu0 %v527
    %2814 = vmatmul.mubr.bf16.gmra.mrb[0].mxu0 %v526
    %v2815 = vpop.f32.mrb[0].mxu0
    %v2816 = vadd.f32 0.0, %v2815
    %v2817 = vpop.f32.mrb[0].mxu0
    %v2818 = vadd.f32 0.0, %v2817
    %v2819 = vpop.f32.mrb[0].mxu0
    %v2820 = vadd.f32 0.0, %v2819
    %v2821 = vpop.f32.mrb[0].mxu0
    %v2822 = vadd.f32 0.0, %v2821
    %2823 = vmatprep.mubr.bf16.mxu0 %v529
    %2824 = vmatmul.mubr.bf16.gmra.mrb[0].mxu0 %v528
    %v2825 = vpop.f32.mrb[0].mxu0
    %v2826 = vadd.f32 0.0, %v2825
    %v2827 = vpop.f32.mrb[0].mxu0
    %v2828 = vadd.f32 0.0, %v2827
    %v2829 = vpop.f32.mrb[0].mxu0
    %v2830 = vadd.f32 0.0, %v2829
    %v2831 = vpop.f32.mrb[0].mxu0
    %v2832 = vadd.f32 0.0, %v2831
    %2833 = vdwg.mxu0
    %2834 = vmatprep.subr.bf16.mxu0 %v1703
    %2835 = vmatpush1.bf16.msra.mxu0 %v1702
    %2836 = vmatprep.subr.bf16.mxu0 %v1727
    %2837 = vmatpush1.bf16.msra.mxu0 %v1726
    %2838 = vmatprep.subr.bf16.mxu0 %v1751
    %2839 = vmatpush1.bf16.msra.mxu0 %v1750
    %2840 = vmatprep.subr.bf16.mxu0 %v1775
    %2841 = vmatpush1.bf16.msra.mxu0 %v1774
    %2842 = vmatprep.subr.bf16.mxu0 %v1799
    %2843 = vmatpush1.bf16.msra.mxu0 %v1798
    %2844 = vmatprep.subr.bf16.mxu0 %v1823
    %2845 = vmatpush1.bf16.msra.mxu0 %v1822
    %2846 = vmatprep.subr.bf16.mxu0 %v1847
    %2847 = vmatpush1.bf16.msra.mxu0 %v1846
    %2848 = vmatprep.subr.bf16.mxu0 %v1871
    %2849 = vmatpush1.bf16.msra.mxu0 %v1870
    %2850 = vmatprep.subr.bf16.mxu0 %v1895
    %2851 = vmatpush1.bf16.msra.mxu0 %v1894
    %2852 = vmatprep.subr.bf16.mxu0 %v1919
    %2853 = vmatpush1.bf16.msra.mxu0 %v1918
    %2854 = vmatprep.subr.bf16.mxu0 %v1943
    %2855 = vmatpush1.bf16.msra.mxu0 %v1942
    %2856 = vmatprep.subr.bf16.mxu0 %v1967
    %2857 = vmatpush1.bf16.msra.mxu0 %v1966
    %2858 = vmatprep.subr.bf16.mxu0 %v1991
    %2859 = vmatpush1.bf16.msra.mxu0 %v1990
    %2860 = vmatprep.subr.bf16.mxu0 %v2015
    %2861 = vmatpush1.bf16.msra.mxu0 %v2014
    %2862 = vmatprep.subr.bf16.mxu0 %v2039
    %2863 = vmatpush1.bf16.msra.mxu0 %v2038
    %2864 = vmatprep.subr.bf16.mxu0 %v2063
    %2865 = vmatpush1.bf16.msra.mxu0 %v2062
    %2866 = vmatprep.mubr.bf16.mxu0 %v519
    %2867 = vmatmul.mubr.bf16.gmra.mrb[0].mxu0 %v518
    %v2868 = vpop.f32.mrb[0].mxu0
    %v2869 = vadd.f32 0.0, %v2868
    %v2870 = vpop.f32.mrb[0].mxu0
    %v2871 = vadd.f32 0.0, %v2870
    %v2872 = vpop.f32.mrb[0].mxu0
    %v2873 = vadd.f32 0.0, %v2872
    %v2874 = vpop.f32.mrb[0].mxu0
    %v2875 = vadd.f32 0.0, %v2874
    %2876 = vmatprep.mubr.bf16.mxu0 %v521
    %2877 = vmatmul.mubr.bf16.gmra.mrb[0].mxu0 %v520
    %v2878 = vpop.f32.mrb[0].mxu0
    %v2879 = vadd.f32 0.0, %v2878
    %v2880 = vpop.f32.mrb[0].mxu0
    %v2881 = vadd.f32 0.0, %v2880
    %v2882 = vpop.f32.mrb[0].mxu0
    %v2883 = vadd.f32 0.0, %v2882
    %v2884 = vpop.f32.mrb[0].mxu0
    %v2885 = vadd.f32 0.0, %v2884
    %2886 = vmatprep.mubr.bf16.mxu0 %v523
    %2887 = vmatmul.mubr.bf16.gmra.mrb[0].mxu0 %v522
    %v2888 = vpop.f32.mrb[0].mxu0
    %v2889 = vadd.f32 0.0, %v2888
    %v2890 = vpop.f32.mrb[0].mxu0
    %v2891 = vadd.f32 0.0, %v2890
    %v2892 = vpop.f32.mrb[0].mxu0
    %v2893 = vadd.f32 0.0, %v2892
    %v2894 = vpop.f32.mrb[0].mxu0
    %v2895 = vadd.f32 0.0, %v2894
    %2896 = vmatprep.mubr.bf16.mxu0 %v525
    %2897 = vmatmul.mubr.bf16.gmra.mrb[0].mxu0 %v524
    %v2898 = vpop.f32.mrb[0].mxu0
    %v2899 = vadd.f32 0.0, %v2898
    %v2900 = vpop.f32.mrb[0].mxu0
    %v2901 = vadd.f32 0.0, %v2900
    %v2902 = vpop.f32.mrb[0].mxu0
    %v2903 = vadd.f32 0.0, %v2902
    %v2904 = vpop.f32.mrb[0].mxu0
    %v2905 = vadd.f32 0.0, %v2904
    %2906 = vmatprep.mubr.bf16.mxu0 %v527
    %2907 = vmatmul.mubr.bf16.gmra.mrb[0].mxu0 %v526
    %v2908 = vpop.f32.mrb[0].mxu0
    %v2909 = vadd.f32 0.0, %v2908
    %v2910 = vpop.f32.mrb[0].mxu0
    %v2911 = vadd.f32 0.0, %v2910
    %v2912 = vpop.f32.mrb[0].mxu0
    %v2913 = vadd.f32 0.0, %v2912
    %v2914 = vpop.f32.mrb[0].mxu0
    %v2915 = vadd.f32 0.0, %v2914
    %2916 = vmatprep.mubr.bf16.mxu0 %v529
    %2917 = vmatmul.mubr.bf16.gmra.mrb[0].mxu0 %v528
    %v2918 = vpop.f32.mrb[0].mxu0
    %v2919 = vadd.f32 0.0, %v2918
    %v2920 = vpop.f32.mrb[0].mxu0
    %v2921 = vadd.f32 0.0, %v2920
    %v2922 = vpop.f32.mrb[0].mxu0
    %v2923 = vadd.f32 0.0, %v2922
    %v2924 = vpop.f32.mrb[0].mxu0
    %v2925 = vadd.f32 0.0, %v2924
    %2926 = vdwg.mxu0
    %2927 = vmatprep.subr.bf16.mxu0 %v1705
    %2928 = vmatpush1.bf16.msra.mxu0 %v1704
    %2929 = vmatprep.subr.bf16.mxu0 %v1729
    %2930 = vmatpush1.bf16.msra.mxu0 %v1728
    %2931 = vmatprep.subr.bf16.mxu0 %v1753
    %2932 = vmatpush1.bf16.msra.mxu0 %v1752
    %2933 = vmatprep.subr.bf16.mxu0 %v1777
    %2934 = vmatpush1.bf16.msra.mxu0 %v1776
    %2935 = vmatprep.subr.bf16.mxu0 %v1801
    %2936 = vmatpush1.bf16.msra.mxu0 %v1800
    %2937 = vmatprep.subr.bf16.mxu0 %v1825
    %2938 = vmatpush1.bf16.msra.mxu0 %v1824
    %2939 = vmatprep.subr.bf16.mxu0 %v1849
    %2940 = vmatpush1.bf16.msra.mxu0 %v1848
    %2941 = vmatprep.subr.bf16.mxu0 %v1873
    %2942 = vmatpush1.bf16.msra.mxu0 %v1872
    %2943 = vmatprep.subr.bf16.mxu0 %v1897
    %2944 = vmatpush1.bf16.msra.mxu0 %v1896
    %2945 = vmatprep.subr.bf16.mxu0 %v1921
    %2946 = vmatpush1.bf16.msra.mxu0 %v1920
    %2947 = vmatprep.subr.bf16.mxu0 %v1945
    %2948 = vmatpush1.bf16.msra.mxu0 %v1944
    %2949 = vmatprep.subr.bf16.mxu0 %v1969
    %2950 = vmatpush1.bf16.msra.mxu0 %v1968
    %2951 = vmatprep.subr.bf16.mxu0 %v1993
    %2952 = vmatpush1.bf16.msra.mxu0 %v1992
    %2953 = vmatprep.subr.bf16.mxu0 %v2017
    %2954 = vmatpush1.bf16.msra.mxu0 %v2016
    %2955 = vmatprep.subr.bf16.mxu0 %v2041
    %2956 = vmatpush1.bf16.msra.mxu0 %v2040
    %2957 = vmatprep.subr.bf16.mxu0 %v2065
    %2958 = vmatpush1.bf16.msra.mxu0 %v2064
    %2959 = vmatprep.mubr.bf16.mxu0 %v519
    %2960 = vmatmul.mubr.bf16.gmra.mrb[0].mxu0 %v518
    %v2961 = vpop.f32.mrb[0].mxu0
    %v2962 = vadd.f32 0.0, %v2961
    %v2963 = vpop.f32.mrb[0].mxu0
    %v2964 = vadd.f32 0.0, %v2963
    %v2965 = vpop.f32.mrb[0].mxu0
    %v2966 = vadd.f32 0.0, %v2965
    %v2967 = vpop.f32.mrb[0].mxu0
    %v2968 = vadd.f32 0.0, %v2967
    %2969 = vmatprep.mubr.bf16.mxu0 %v521
    %2970 = vmatmul.mubr.bf16.gmra.mrb[0].mxu0 %v520
    %v2971 = vpop.f32.mrb[0].mxu0
    %v2972 = vadd.f32 0.0, %v2971
    %v2973 = vpop.f32.mrb[0].mxu0
    %v2974 = vadd.f32 0.0, %v2973
    %v2975 = vpop.f32.mrb[0].mxu0
    %v2976 = vadd.f32 0.0, %v2975
    %v2977 = vpop.f32.mrb[0].mxu0
    %v2978 = vadd.f32 0.0, %v2977
    %2979 = vmatprep.mubr.bf16.mxu0 %v523
    %2980 = vmatmul.mubr.bf16.gmra.mrb[0].mxu0 %v522
    %v2981 = vpop.f32.mrb[0].mxu0
    %v2982 = vadd.f32 0.0, %v2981
    %v2983 = vpop.f32.mrb[0].mxu0
    %v2984 = vadd.f32 0.0, %v2983
    %v2985 = vpop.f32.mrb[0].mxu0
    %v2986 = vadd.f32 0.0, %v2985
    %v2987 = vpop.f32.mrb[0].mxu0
    %v2988 = vadd.f32 0.0, %v2987
    %2989 = vmatprep.mubr.bf16.mxu0 %v525
    %2990 = vmatmul.mubr.bf16.gmra.mrb[0].mxu0 %v524
    %v2991 = vpop.f32.mrb[0].mxu0
    %v2992 = vadd.f32 0.0, %v2991
    %v2993 = vpop.f32.mrb[0].mxu0
    %v2994 = vadd.f32 0.0, %v2993
    %v2995 = vpop.f32.mrb[0].mxu0
    %v2996 = vadd.f32 0.0, %v2995
    %v2997 = vpop.f32.mrb[0].mxu0
    %v2998 = vadd.f32 0.0, %v2997
    %2999 = vmatprep.mubr.bf16.mxu0 %v527
    %3000 = vmatmul.mubr.bf16.gmra.mrb[0].mxu0 %v526
    %v3001 = vpop.f32.mrb[0].mxu0
    %v3002 = vadd.f32 0.0, %v3001
    %v3003 = vpop.f32.mrb[0].mxu0
    %v3004 = vadd.f32 0.0, %v3003
    %v3005 = vpop.f32.mrb[0].mxu0
    %v3006 = vadd.f32 0.0, %v3005
    %v3007 = vpop.f32.mrb[0].mxu0
    %v3008 = vadd.f32 0.0, %v3007
    %3009 = vmatprep.mubr.bf16.mxu0 %v529
    %3010 = vmatmul.mubr.bf16.gmra.mrb[0].mxu0 %v528
    %v3011 = vpop.f32.mrb[0].mxu0
    %v3012 = vadd.f32 0.0, %v3011
    %v3013 = vpop.f32.mrb[0].mxu0
    %v3014 = vadd.f32 0.0, %v3013
    %v3015 = vpop.f32.mrb[0].mxu0
    %v3016 = vadd.f32 0.0, %v3015
    %v3017 = vpop.f32.mrb[0].mxu0
    %v3018 = vadd.f32 0.0, %v3017
    %3019 = vdwg.mxu0
    %3020 = vmatprep.subr.bf16.mxu0 %v1707
    %3021 = vmatpush1.bf16.msra.mxu0 %v1706
    %3022 = vmatprep.subr.bf16.mxu0 %v1731
    %3023 = vmatpush1.bf16.msra.mxu0 %v1730
    %3024 = vmatprep.subr.bf16.mxu0 %v1755
    %3025 = vmatpush1.bf16.msra.mxu0 %v1754
    %3026 = vmatprep.subr.bf16.mxu0 %v1779
    %3027 = vmatpush1.bf16.msra.mxu0 %v1778
    %3028 = vmatprep.subr.bf16.mxu0 %v1803
    %3029 = vmatpush1.bf16.msra.mxu0 %v1802
    %3030 = vmatprep.subr.bf16.mxu0 %v1827
    %3031 = vmatpush1.bf16.msra.mxu0 %v1826
    %3032 = vmatprep.subr.bf16.mxu0 %v1851
    %3033 = vmatpush1.bf16.msra.mxu0 %v1850
    %3034 = vmatprep.subr.bf16.mxu0 %v1875
    %3035 = vmatpush1.bf16.msra.mxu0 %v1874
    %3036 = vmatprep.subr.bf16.mxu0 %v1899
    %3037 = vmatpush1.bf16.msra.mxu0 %v1898
    %3038 = vmatprep.subr.bf16.mxu0 %v1923
    %3039 = vmatpush1.bf16.msra.mxu0 %v1922
    %3040 = vmatprep.subr.bf16.mxu0 %v1947
    %3041 = vmatpush1.bf16.msra.mxu0 %v1946
    %3042 = vmatprep.subr.bf16.mxu0 %v1971
    %3043 = vmatpush1.bf16.msra.mxu0 %v1970
    %3044 = vmatprep.subr.bf16.mxu0 %v1995
    %3045 = vmatpush1.bf16.msra.mxu0 %v1994
    %3046 = vmatprep.subr.bf16.mxu0 %v2019
    %3047 = vmatpush1.bf16.msra.mxu0 %v2018
    %3048 = vmatprep.subr.bf16.mxu0 %v2043
    %3049 = vmatpush1.bf16.msra.mxu0 %v2042
    %3050 = vmatprep.subr.bf16.mxu0 %v2067
    %3051 = vmatpush1.bf16.msra.mxu0 %v2066
    %3052 = vmatprep.mubr.bf16.mxu0 %v519
    %3053 = vmatmul.mubr.bf16.gmra.mrb[0].mxu0 %v518
    %v3054 = vpop.f32.mrb[0].mxu0
    %v3055 = vadd.f32 0.0, %v3054
    %v3056 = vpop.f32.mrb[0].mxu0
    %v3057 = vadd.f32 0.0, %v3056
    %v3058 = vpop.f32.mrb[0].mxu0
    %v3059 = vadd.f32 0.0, %v3058
    %v3060 = vpop.f32.mrb[0].mxu0
    %v3061 = vadd.f32 0.0, %v3060
    %3062 = vmatprep.mubr.bf16.mxu0 %v521
    %3063 = vmatmul.mubr.bf16.gmra.mrb[0].mxu0 %v520
    %v3064 = vpop.f32.mrb[0].mxu0
    %v3065 = vadd.f32 0.0, %v3064
    %v3066 = vpop.f32.mrb[0].mxu0
    %v3067 = vadd.f32 0.0, %v3066
    %v3068 = vpop.f32.mrb[0].mxu0
    %v3069 = vadd.f32 0.0, %v3068
    %v3070 = vpop.f32.mrb[0].mxu0
    %v3071 = vadd.f32 0.0, %v3070
    %3072 = vmatprep.mubr.bf16.mxu0 %v523
    %3073 = vmatmul.mubr.bf16.gmra.mrb[0].mxu0 %v522
    %v3074 = vpop.f32.mrb[0].mxu0
    %v3075 = vadd.f32 0.0, %v3074
    %v3076 = vpop.f32.mrb[0].mxu0
    %v3077 = vadd.f32 0.0, %v3076
    %v3078 = vpop.f32.mrb[0].mxu0
    %v3079 = vadd.f32 0.0, %v3078
    %v3080 = vpop.f32.mrb[0].mxu0
    %v3081 = vadd.f32 0.0, %v3080
    %3082 = vmatprep.mubr.bf16.mxu0 %v525
    %3083 = vmatmul.mubr.bf16.gmra.mrb[0].mxu0 %v524
    %v3084 = vpop.f32.mrb[0].mxu0
    %v3085 = vadd.f32 0.0, %v3084
    %v3086 = vpop.f32.mrb[0].mxu0
    %v3087 = vadd.f32 0.0, %v3086
    %v3088 = vpop.f32.mrb[0].mxu0
    %v3089 = vadd.f32 0.0, %v3088
    %v3090 = vpop.f32.mrb[0].mxu0
    %v3091 = vadd.f32 0.0, %v3090
    %3092 = vmatprep.mubr.bf16.mxu0 %v527
    %3093 = vmatmul.mubr.bf16.gmra.mrb[0].mxu0 %v526
    %v3094 = vpop.f32.mrb[0].mxu0
    %v3095 = vadd.f32 0.0, %v3094
    %v3096 = vpop.f32.mrb[0].mxu0
    %v3097 = vadd.f32 0.0, %v3096
    %v3098 = vpop.f32.mrb[0].mxu0
    %v3099 = vadd.f32 0.0, %v3098
    %v3100 = vpop.f32.mrb[0].mxu0
    %v3101 = vadd.f32 0.0, %v3100
    %3102 = vmatprep.mubr.bf16.mxu0 %v529
    %3103 = vmatmul.mubr.bf16.gmra.mrb[0].mxu0 %v528
    %v3104 = vpop.f32.mrb[0].mxu0
    %v3105 = vadd.f32 0.0, %v3104
    %v3106 = vpop.f32.mrb[0].mxu0
    %v3107 = vadd.f32 0.0, %v3106
    %v3108 = vpop.f32.mrb[0].mxu0
    %v3109 = vadd.f32 0.0, %v3108
    %v3110 = vpop.f32.mrb[0].mxu0
    %v3111 = vadd.f32 0.0, %v3110
    %3112 = vdwg.mxu0
    %3113 = vmatprep.subr.bf16.mxu0 %v1709
    %3114 = vmatpush1.bf16.msra.mxu0 %v1708
    %3115 = vmatprep.subr.bf16.mxu0 %v1733
    %3116 = vmatpush1.bf16.msra.mxu0 %v1732
    %3117 = vmatprep.subr.bf16.mxu0 %v1757
    %3118 = vmatpush1.bf16.msra.mxu0 %v1756
    %3119 = vmatprep.subr.bf16.mxu0 %v1781
    %3120 = vmatpush1.bf16.msra.mxu0 %v1780
    %3121 = vmatprep.subr.bf16.mxu0 %v1805
    %3122 = vmatpush1.bf16.msra.mxu0 %v1804
    %3123 = vmatprep.subr.bf16.mxu0 %v1829
    %3124 = vmatpush1.bf16.msra.mxu0 %v1828
    %3125 = vmatprep.subr.bf16.mxu0 %v1853
    %3126 = vmatpush1.bf16.msra.mxu0 %v1852
    %3127 = vmatprep.subr.bf16.mxu0 %v1877
    %3128 = vmatpush1.bf16.msra.mxu0 %v1876
    %3129 = vmatprep.subr.bf16.mxu0 %v1901
    %3130 = vmatpush1.bf16.msra.mxu0 %v1900
    %3131 = vmatprep.subr.bf16.mxu0 %v1925
    %3132 = vmatpush1.bf16.msra.mxu0 %v1924
    %3133 = vmatprep.subr.bf16.mxu0 %v1949
    %3134 = vmatpush1.bf16.msra.mxu0 %v1948
    %3135 = vmatprep.subr.bf16.mxu0 %v1973
    %3136 = vmatpush1.bf16.msra.mxu0 %v1972
    %3137 = vmatprep.subr.bf16.mxu0 %v1997
    %3138 = vmatpush1.bf16.msra.mxu0 %v1996
    %3139 = vmatprep.subr.bf16.mxu0 %v2021
    %3140 = vmatpush1.bf16.msra.mxu0 %v2020
    %3141 = vmatprep.subr.bf16.mxu0 %v2045
    %3142 = vmatpush1.bf16.msra.mxu0 %v2044
    %3143 = vmatprep.subr.bf16.mxu0 %v2069
    %3144 = vmatpush1.bf16.msra.mxu0 %v2068
    %3145 = vmatprep.mubr.bf16.mxu0 %v519
    %3146 = vmatmul.mubr.bf16.gmra.mrb[0].mxu0 %v518
    %v3147 = vpop.f32.mrb[0].mxu0
    %v3148 = vadd.f32 0.0, %v3147
    %v3149 = vpop.f32.mrb[0].mxu0
    %v3150 = vadd.f32 0.0, %v3149
    %v3151 = vpop.f32.mrb[0].mxu0
    %v3152 = vadd.f32 0.0, %v3151
    %v3153 = vpop.f32.mrb[0].mxu0
    %v3154 = vadd.f32 0.0, %v3153
    %3155 = vmatprep.mubr.bf16.mxu0 %v521
    %3156 = vmatmul.mubr.bf16.gmra.mrb[0].mxu0 %v520
    %v3157 = vpop.f32.mrb[0].mxu0
    %v3158 = vadd.f32 0.0, %v3157
    %v3159 = vpop.f32.mrb[0].mxu0
    %v3160 = vadd.f32 0.0, %v3159
    %v3161 = vpop.f32.mrb[0].mxu0
    %v3162 = vadd.f32 0.0, %v3161
    %v3163 = vpop.f32.mrb[0].mxu0
    %v3164 = vadd.f32 0.0, %v3163
    %3165 = vmatprep.mubr.bf16.mxu0 %v523
    %3166 = vmatmul.mubr.bf16.gmra.mrb[0].mxu0 %v522
    %v3167 = vpop.f32.mrb[0].mxu0
    %v3168 = vadd.f32 0.0, %v3167
    %v3169 = vpop.f32.mrb[0].mxu0
    %v3170 = vadd.f32 0.0, %v3169
    %v3171 = vpop.f32.mrb[0].mxu0
    %v3172 = vadd.f32 0.0, %v3171
    %v3173 = vpop.f32.mrb[0].mxu0
    %v3174 = vadd.f32 0.0, %v3173
    %3175 = vmatprep.mubr.bf16.mxu0 %v525
    %3176 = vmatmul.mubr.bf16.gmra.mrb[0].mxu0 %v524
    %v3177 = vpop.f32.mrb[0].mxu0
    %v3178 = vadd.f32 0.0, %v3177
    %v3179 = vpop.f32.mrb[0].mxu0
    %v3180 = vadd.f32 0.0, %v3179
    %v3181 = vpop.f32.mrb[0].mxu0
    %v3182 = vadd.f32 0.0, %v3181
    %v3183 = vpop.f32.mrb[0].mxu0
    %v3184 = vadd.f32 0.0, %v3183
    %3185 = vmatprep.mubr.bf16.mxu0 %v527
    %3186 = vmatmul.mubr.bf16.gmra.mrb[0].mxu0 %v526
    %v3187 = vpop.f32.mrb[0].mxu0
    %v3188 = vadd.f32 0.0, %v3187
    %v3189 = vpop.f32.mrb[0].mxu0
    %v3190 = vadd.f32 0.0, %v3189
    %v3191 = vpop.f32.mrb[0].mxu0
    %v3192 = vadd.f32 0.0, %v3191
    %v3193 = vpop.f32.mrb[0].mxu0
    %v3194 = vadd.f32 0.0, %v3193
    %3195 = vmatprep.mubr.bf16.mxu0 %v529
    %3196 = vmatmul.mubr.bf16.gmra.mrb[0].mxu0 %v528
    %v3197 = vpop.f32.mrb[0].mxu0
    %v3198 = vadd.f32 0.0, %v3197
    %v3199 = vpop.f32.mrb[0].mxu0
    %v3200 = vadd.f32 0.0, %v3199
    %v3201 = vpop.f32.mrb[0].mxu0
    %v3202 = vadd.f32 0.0, %v3201
    %v3203 = vpop.f32.mrb[0].mxu0
    %v3204 = vadd.f32 0.0, %v3203
    %3205 = vdwg.mxu0
    %3206 = vmatprep.subr.bf16.mxu0 %v1711
    %3207 = vmatpush1.bf16.msra.mxu0 %v1710
    %3208 = vmatprep.subr.bf16.mxu0 %v1735
    %3209 = vmatpush1.bf16.msra.mxu0 %v1734
    %3210 = vmatprep.subr.bf16.mxu0 %v1759
    %3211 = vmatpush1.bf16.msra.mxu0 %v1758
    %3212 = vmatprep.subr.bf16.mxu0 %v1783
    %3213 = vmatpush1.bf16.msra.mxu0 %v1782
    %3214 = vmatprep.subr.bf16.mxu0 %v1807
    %3215 = vmatpush1.bf16.msra.mxu0 %v1806
    %3216 = vmatprep.subr.bf16.mxu0 %v1831
    %3217 = vmatpush1.bf16.msra.mxu0 %v1830
    %3218 = vmatprep.subr.bf16.mxu0 %v1855
    %3219 = vmatpush1.bf16.msra.mxu0 %v1854
    %3220 = vmatprep.subr.bf16.mxu0 %v1879
    %3221 = vmatpush1.bf16.msra.mxu0 %v1878
    %3222 = vmatprep.subr.bf16.mxu0 %v1903
    %3223 = vmatpush1.bf16.msra.mxu0 %v1902
    %3224 = vmatprep.subr.bf16.mxu0 %v1927
    %3225 = vmatpush1.bf16.msra.mxu0 %v1926
    %3226 = vmatprep.subr.bf16.mxu0 %v1951
    %3227 = vmatpush1.bf16.msra.mxu0 %v1950
    %3228 = vmatprep.subr.bf16.mxu0 %v1975
    %3229 = vmatpush1.bf16.msra.mxu0 %v1974
    %3230 = vmatprep.subr.bf16.mxu0 %v1999
    %3231 = vmatpush1.bf16.msra.mxu0 %v1998
    %3232 = vmatprep.subr.bf16.mxu0 %v2023
    %3233 = vmatpush1.bf16.msra.mxu0 %v2022
    %3234 = vmatprep.subr.bf16.mxu0 %v2047
    %3235 = vmatpush1.bf16.msra.mxu0 %v2046
    %3236 = vmatprep.subr.bf16.mxu0 %v2071
    %3237 = vmatpush1.bf16.msra.mxu0 %v2070
    %3238 = vmatprep.mubr.bf16.mxu0 %v519
    %3239 = vmatmul.mubr.bf16.gmra.mrb[0].mxu0 %v518
    %v3240 = vpop.f32.mrb[0].mxu0
    %v3241 = vadd.f32 0.0, %v3240
    %v3242 = vpop.f32.mrb[0].mxu0
    %v3243 = vadd.f32 0.0, %v3242
    %v3244 = vpop.f32.mrb[0].mxu0
    %v3245 = vadd.f32 0.0, %v3244
    %v3246 = vpop.f32.mrb[0].mxu0
    %v3247 = vadd.f32 0.0, %v3246
    %3248 = vmatprep.mubr.bf16.mxu0 %v521
    %3249 = vmatmul.mubr.bf16.gmra.mrb[0].mxu0 %v520
    %v3250 = vpop.f32.mrb[0].mxu0
    %v3251 = vadd.f32 0.0, %v3250
    %v3252 = vpop.f32.mrb[0].mxu0
    %v3253 = vadd.f32 0.0, %v3252
    %v3254 = vpop.f32.mrb[0].mxu0
    %v3255 = vadd.f32 0.0, %v3254
    %v3256 = vpop.f32.mrb[0].mxu0
    %v3257 = vadd.f32 0.0, %v3256
    %3258 = vmatprep.mubr.bf16.mxu0 %v523
    %3259 = vmatmul.mubr.bf16.gmra.mrb[0].mxu0 %v522
    %v3260 = vpop.f32.mrb[0].mxu0
    %v3261 = vadd.f32 0.0, %v3260
    %v3262 = vpop.f32.mrb[0].mxu0
    %v3263 = vadd.f32 0.0, %v3262
    %v3264 = vpop.f32.mrb[0].mxu0
    %v3265 = vadd.f32 0.0, %v3264
    %v3266 = vpop.f32.mrb[0].mxu0
    %v3267 = vadd.f32 0.0, %v3266
    %3268 = vmatprep.mubr.bf16.mxu0 %v525
    %3269 = vmatmul.mubr.bf16.gmra.mrb[0].mxu0 %v524
    %v3270 = vpop.f32.mrb[0].mxu0
    %v3271 = vadd.f32 0.0, %v3270
    %v3272 = vpop.f32.mrb[0].mxu0
    %v3273 = vadd.f32 0.0, %v3272
    %v3274 = vpop.f32.mrb[0].mxu0
    %v3275 = vadd.f32 0.0, %v3274
    %v3276 = vpop.f32.mrb[0].mxu0
    %v3277 = vadd.f32 0.0, %v3276
    %3278 = vmatprep.mubr.bf16.mxu0 %v527
    %3279 = vmatmul.mubr.bf16.gmra.mrb[0].mxu0 %v526
    %v3280 = vpop.f32.mrb[0].mxu0
    %v3281 = vadd.f32 0.0, %v3280
    %v3282 = vpop.f32.mrb[0].mxu0
    %v3283 = vadd.f32 0.0, %v3282
    %v3284 = vpop.f32.mrb[0].mxu0
    %v3285 = vadd.f32 0.0, %v3284
    %v3286 = vpop.f32.mrb[0].mxu0
    %v3287 = vadd.f32 0.0, %v3286
    %3288 = vmatprep.mubr.bf16.mxu0 %v529
    %3289 = vmatmul.mubr.bf16.gmra.mrb[0].mxu0 %v528
    %v3290 = vpop.f32.mrb[0].mxu0
    %v3291 = vadd.f32 0.0, %v3290
    %v3292 = vpop.f32.mrb[0].mxu0
    %v3293 = vadd.f32 0.0, %v3292
    %v3294 = vpop.f32.mrb[0].mxu0
    %v3295 = vadd.f32 0.0, %v3294
    %v3296 = vpop.f32.mrb[0].mxu0
    %v3297 = vadd.f32 0.0, %v3296
    %3298 = vdwg.mxu0
    %3299 = vmatprep.subr.bf16.mxu0 %v1713
    %3300 = vmatpush1.bf16.msra.mxu0 %v1712
    %3301 = vmatprep.subr.bf16.mxu0 %v1737
    %3302 = vmatpush1.bf16.msra.mxu0 %v1736
    %3303 = vmatprep.subr.bf16.mxu0 %v1761
    %3304 = vmatpush1.bf16.msra.mxu0 %v1760
    %3305 = vmatprep.subr.bf16.mxu0 %v1785
    %3306 = vmatpush1.bf16.msra.mxu0 %v1784
    %3307 = vmatprep.subr.bf16.mxu0 %v1809
    %3308 = vmatpush1.bf16.msra.mxu0 %v1808
    %3309 = vmatprep.subr.bf16.mxu0 %v1833
    %3310 = vmatpush1.bf16.msra.mxu0 %v1832
    %3311 = vmatprep.subr.bf16.mxu0 %v1857
    %3312 = vmatpush1.bf16.msra.mxu0 %v1856
    %3313 = vmatprep.subr.bf16.mxu0 %v1881
    %3314 = vmatpush1.bf16.msra.mxu0 %v1880
    %3315 = vmatprep.subr.bf16.mxu0 %v1905
    %3316 = vmatpush1.bf16.msra.mxu0 %v1904
    %3317 = vmatprep.subr.bf16.mxu0 %v1929
    %3318 = vmatpush1.bf16.msra.mxu0 %v1928
    %3319 = vmatprep.subr.bf16.mxu0 %v1953
    %3320 = vmatpush1.bf16.msra.mxu0 %v1952
    %3321 = vmatprep.subr.bf16.mxu0 %v1977
    %3322 = vmatpush1.bf16.msra.mxu0 %v1976
    %3323 = vmatprep.subr.bf16.mxu0 %v2001
    %3324 = vmatpush1.bf16.msra.mxu0 %v2000
    %3325 = vmatprep.subr.bf16.mxu0 %v2025
    %3326 = vmatpush1.bf16.msra.mxu0 %v2024
    %3327 = vmatprep.subr.bf16.mxu0 %v2049
    %3328 = vmatpush1.bf16.msra.mxu0 %v2048
    %3329 = vmatprep.subr.bf16.mxu0 %v2073
    %3330 = vmatpush1.bf16.msra.mxu0 %v2072
    %3331 = vmatprep.mubr.bf16.mxu0 %v519
    %3332 = vmatmul.mubr.bf16.gmra.mrb[0].mxu0 %v518
    %v3333 = vpop.f32.mrb[0].mxu0
    %v3334 = vadd.f32 0.0, %v3333
    %v3335 = vpop.f32.mrb[0].mxu0
    %v3336 = vadd.f32 0.0, %v3335
    %v3337 = vpop.f32.mrb[0].mxu0
    %v3338 = vadd.f32 0.0, %v3337
    %v3339 = vpop.f32.mrb[0].mxu0
    %v3340 = vadd.f32 0.0, %v3339
    %3341 = vmatprep.mubr.bf16.mxu0 %v521
    %3342 = vmatmul.mubr.bf16.gmra.mrb[0].mxu0 %v520
    %v3343 = vpop.f32.mrb[0].mxu0
    %v3344 = vadd.f32 0.0, %v3343
    %v3345 = vpop.f32.mrb[0].mxu0
    %v3346 = vadd.f32 0.0, %v3345
    %v3347 = vpop.f32.mrb[0].mxu0
    %v3348 = vadd.f32 0.0, %v3347
    %v3349 = vpop.f32.mrb[0].mxu0
    %v3350 = vadd.f32 0.0, %v3349
    %3351 = vmatprep.mubr.bf16.mxu0 %v523
    %3352 = vmatmul.mubr.bf16.gmra.mrb[0].mxu0 %v522
    %v3353 = vpop.f32.mrb[0].mxu0
    %v3354 = vadd.f32 0.0, %v3353
    %v3355 = vpop.f32.mrb[0].mxu0
    %v3356 = vadd.f32 0.0, %v3355
    %v3357 = vpop.f32.mrb[0].mxu0
    %v3358 = vadd.f32 0.0, %v3357
    %v3359 = vpop.f32.mrb[0].mxu0
    %v3360 = vadd.f32 0.0, %v3359
    %3361 = vmatprep.mubr.bf16.mxu0 %v525
    %3362 = vmatmul.mubr.bf16.gmra.mrb[0].mxu0 %v524
    %v3363 = vpop.f32.mrb[0].mxu0
    %v3364 = vadd.f32 0.0, %v3363
    %v3365 = vpop.f32.mrb[0].mxu0
    %v3366 = vadd.f32 0.0, %v3365
    %v3367 = vpop.f32.mrb[0].mxu0
    %v3368 = vadd.f32 0.0, %v3367
    %v3369 = vpop.f32.mrb[0].mxu0
    %v3370 = vadd.f32 0.0, %v3369
    %3371 = vmatprep.mubr.bf16.mxu0 %v527
    %3372 = vmatmul.mubr.bf16.gmra.mrb[0].mxu0 %v526
    %v3373 = vpop.f32.mrb[0].mxu0
    %v3374 = vadd.f32 0.0, %v3373
    %v3375 = vpop.f32.mrb[0].mxu0
    %v3376 = vadd.f32 0.0, %v3375
    %v3377 = vpop.f32.mrb[0].mxu0
    %v3378 = vadd.f32 0.0, %v3377
    %v3379 = vpop.f32.mrb[0].mxu0
    %v3380 = vadd.f32 0.0, %v3379
    %3381 = vmatprep.mubr.bf16.mxu0 %v529
    %3382 = vmatmul.mubr.bf16.gmra.mrb[0].mxu0 %v528
    %v3383 = vpop.f32.mrb[0].mxu0
    %v3384 = vadd.f32 0.0, %v3383
    %v3385 = vpop.f32.mrb[0].mxu0
    %v3386 = vadd.f32 0.0, %v3385
    %v3387 = vpop.f32.mrb[0].mxu0
    %v3388 = vadd.f32 0.0, %v3387
    %v3389 = vpop.f32.mrb[0].mxu0
    %v3390 = vadd.f32 0.0, %v3389
    %3391 = vdwg.mxu0
    %3392 = vmatprep.subr.bf16.mxu0 %v1715
    %3393 = vmatpush1.bf16.msra.mxu0 %v1714
    %3394 = vmatprep.subr.bf16.mxu0 %v1739
    %3395 = vmatpush1.bf16.msra.mxu0 %v1738
    %3396 = vmatprep.subr.bf16.mxu0 %v1763
    %3397 = vmatpush1.bf16.msra.mxu0 %v1762
    %3398 = vmatprep.subr.bf16.mxu0 %v1787
    %3399 = vmatpush1.bf16.msra.mxu0 %v1786
    %3400 = vmatprep.subr.bf16.mxu0 %v1811
    %3401 = vmatpush1.bf16.msra.mxu0 %v1810
    %3402 = vmatprep.subr.bf16.mxu0 %v1835
    %3403 = vmatpush1.bf16.msra.mxu0 %v1834
    %3404 = vmatprep.subr.bf16.mxu0 %v1859
    %3405 = vmatpush1.bf16.msra.mxu0 %v1858
    %3406 = vmatprep.subr.bf16.mxu0 %v1883
    %3407 = vmatpush1.bf16.msra.mxu0 %v1882
    %3408 = vmatprep.subr.bf16.mxu0 %v1907
    %3409 = vmatpush1.bf16.msra.mxu0 %v1906
    %3410 = vmatprep.subr.bf16.mxu0 %v1931
    %3411 = vmatpush1.bf16.msra.mxu0 %v1930
    %3412 = vmatprep.subr.bf16.mxu0 %v1955
    %3413 = vmatpush1.bf16.msra.mxu0 %v1954
    %3414 = vmatprep.subr.bf16.mxu0 %v1979
    %3415 = vmatpush1.bf16.msra.mxu0 %v1978
    %3416 = vmatprep.subr.bf16.mxu0 %v2003
    %3417 = vmatpush1.bf16.msra.mxu0 %v2002
    %3418 = vmatprep.subr.bf16.mxu0 %v2027
    %3419 = vmatpush1.bf16.msra.mxu0 %v2026
    %3420 = vmatprep.subr.bf16.mxu0 %v2051
    %3421 = vmatpush1.bf16.msra.mxu0 %v2050
    %3422 = vmatprep.subr.bf16.mxu0 %v2075
    %3423 = vmatpush1.bf16.msra.mxu0 %v2074
    %3424 = vmatprep.mubr.bf16.mxu0 %v519
    %3425 = vmatmul.mubr.bf16.gmra.mrb[0].mxu0 %v518
    %v3426 = vpop.f32.mrb[0].mxu0
    %v3427 = vadd.f32 0.0, %v3426
    %v3428 = vpop.f32.mrb[0].mxu0
    %v3429 = vadd.f32 0.0, %v3428
    %v3430 = vpop.f32.mrb[0].mxu0
    %v3431 = vadd.f32 0.0, %v3430
    %v3432 = vpop.f32.mrb[0].mxu0
    %v3433 = vadd.f32 0.0, %v3432
    %3434 = vmatprep.mubr.bf16.mxu0 %v521
    %3435 = vmatmul.mubr.bf16.gmra.mrb[0].mxu0 %v520
    %v3436 = vpop.f32.mrb[0].mxu0
    %v3437 = vadd.f32 0.0, %v3436
    %v3438 = vpop.f32.mrb[0].mxu0
    %v3439 = vadd.f32 0.0, %v3438
    %v3440 = vpop.f32.mrb[0].mxu0
    %v3441 = vadd.f32 0.0, %v3440
    %v3442 = vpop.f32.mrb[0].mxu0
    %v3443 = vadd.f32 0.0, %v3442
    %3444 = vmatprep.mubr.bf16.mxu0 %v523
    %3445 = vmatmul.mubr.bf16.gmra.mrb[0].mxu0 %v522
    %v3446 = vpop.f32.mrb[0].mxu0
    %v3447 = vadd.f32 0.0, %v3446
    %v3448 = vpop.f32.mrb[0].mxu0
    %v3449 = vadd.f32 0.0, %v3448
    %v3450 = vpop.f32.mrb[0].mxu0
    %v3451 = vadd.f32 0.0, %v3450
    %v3452 = vpop.f32.mrb[0].mxu0
    %v3453 = vadd.f32 0.0, %v3452
    %3454 = vmatprep.mubr.bf16.mxu0 %v525
    %3455 = vmatmul.mubr.bf16.gmra.mrb[0].mxu0 %v524
    %v3456 = vpop.f32.mrb[0].mxu0
    %v3457 = vadd.f32 0.0, %v3456
    %v3458 = vpop.f32.mrb[0].mxu0
    %v3459 = vadd.f32 0.0, %v3458
    %v3460 = vpop.f32.mrb[0].mxu0
    %v3461 = vadd.f32 0.0, %v3460
    %v3462 = vpop.f32.mrb[0].mxu0
    %v3463 = vadd.f32 0.0, %v3462
    %3464 = vmatprep.mubr.bf16.mxu0 %v527
    %3465 = vmatmul.mubr.bf16.gmra.mrb[0].mxu0 %v526
    %v3466 = vpop.f32.mrb[0].mxu0
    %v3467 = vadd.f32 0.0, %v3466
    %v3468 = vpop.f32.mrb[0].mxu0
    %v3469 = vadd.f32 0.0, %v3468
    %v3470 = vpop.f32.mrb[0].mxu0
    %v3471 = vadd.f32 0.0, %v3470
    %v3472 = vpop.f32.mrb[0].mxu0
    %v3473 = vadd.f32 0.0, %v3472
    %3474 = vmatprep.mubr.bf16.mxu0 %v529
    %3475 = vmatmul.mubr.bf16.gmra.mrb[0].mxu0 %v528
    %v3476 = vpop.f32.mrb[0].mxu0
    %v3477 = vadd.f32 0.0, %v3476
    %v3478 = vpop.f32.mrb[0].mxu0
    %v3479 = vadd.f32 0.0, %v3478
    %v3480 = vpop.f32.mrb[0].mxu0
    %v3481 = vadd.f32 0.0, %v3480
    %v3482 = vpop.f32.mrb[0].mxu0
    %v3483 = vadd.f32 0.0, %v3482
    %3484 = vdwg.mxu0
    %3485 = vmatprep.subr.bf16.mxu0 %v1717
    %3486 = vmatpush1.bf16.msra.mxu0 %v1716
    %3487 = vmatprep.subr.bf16.mxu0 %v1741
    %3488 = vmatpush1.bf16.msra.mxu0 %v1740
    %3489 = vmatprep.subr.bf16.mxu0 %v1765
    %3490 = vmatpush1.bf16.msra.mxu0 %v1764
    %3491 = vmatprep.subr.bf16.mxu0 %v1789
    %3492 = vmatpush1.bf16.msra.mxu0 %v1788
    %3493 = vmatprep.subr.bf16.mxu0 %v1813
    %3494 = vmatpush1.bf16.msra.mxu0 %v1812
    %3495 = vmatprep.subr.bf16.mxu0 %v1837
    %3496 = vmatpush1.bf16.msra.mxu0 %v1836
    %3497 = vmatprep.subr.bf16.mxu0 %v1861
    %3498 = vmatpush1.bf16.msra.mxu0 %v1860
    %3499 = vmatprep.subr.bf16.mxu0 %v1885
    %3500 = vmatpush1.bf16.msra.mxu0 %v1884
    %3501 = vmatprep.subr.bf16.mxu0 %v1909
    %3502 = vmatpush1.bf16.msra.mxu0 %v1908
    %3503 = vmatprep.subr.bf16.mxu0 %v1933
    %3504 = vmatpush1.bf16.msra.mxu0 %v1932
    %3505 = vmatprep.subr.bf16.mxu0 %v1957
    %3506 = vmatpush1.bf16.msra.mxu0 %v1956
    %3507 = vmatprep.subr.bf16.mxu0 %v1981
    %3508 = vmatpush1.bf16.msra.mxu0 %v1980
    %3509 = vmatprep.subr.bf16.mxu0 %v2005
    %3510 = vmatpush1.bf16.msra.mxu0 %v2004
    %3511 = vmatprep.subr.bf16.mxu0 %v2029
    %3512 = vmatpush1.bf16.msra.mxu0 %v2028
    %3513 = vmatprep.subr.bf16.mxu0 %v2053
    %3514 = vmatpush1.bf16.msra.mxu0 %v2052
    %3515 = vmatprep.subr.bf16.mxu0 %v2077
    %3516 = vmatpush1.bf16.msra.mxu0 %v2076
    %3517 = vmatprep.mubr.bf16.mxu0 %v519
    %3518 = vmatmul.mubr.bf16.gmra.mrb[0].mxu0 %v518
    %v3519 = vpop.f32.mrb[0].mxu0
    %v3520 = vadd.f32 0.0, %v3519
    %v3521 = vpop.f32.mrb[0].mxu0
    %v3522 = vadd.f32 0.0, %v3521
    %v3523 = vpop.f32.mrb[0].mxu0
    %v3524 = vadd.f32 0.0, %v3523
    %v3525 = vpop.f32.mrb[0].mxu0
    %v3526 = vadd.f32 0.0, %v3525
    %3527 = vmatprep.mubr.bf16.mxu0 %v521
    %3528 = vmatmul.mubr.bf16.gmra.mrb[0].mxu0 %v520
    %v3529 = vpop.f32.mrb[0].mxu0
    %v3530 = vadd.f32 0.0, %v3529
    %v3531 = vpop.f32.mrb[0].mxu0
    %v3532 = vadd.f32 0.0, %v3531
    %v3533 = vpop.f32.mrb[0].mxu0
    %v3534 = vadd.f32 0.0, %v3533
    %v3535 = vpop.f32.mrb[0].mxu0
    %v3536 = vadd.f32 0.0, %v3535
    %3537 = vmatprep.mubr.bf16.mxu0 %v523
    %3538 = vmatmul.mubr.bf16.gmra.mrb[0].mxu0 %v522
    %v3539 = vpop.f32.mrb[0].mxu0
    %v3540 = vadd.f32 0.0, %v3539
    %v3541 = vpop.f32.mrb[0].mxu0
    %v3542 = vadd.f32 0.0, %v3541
    %v3543 = vpop.f32.mrb[0].mxu0
    %v3544 = vadd.f32 0.0, %v3543
    %v3545 = vpop.f32.mrb[0].mxu0
    %v3546 = vadd.f32 0.0, %v3545
    %3547 = vmatprep.mubr.bf16.mxu0 %v525
    %3548 = vmatmul.mubr.bf16.gmra.mrb[0].mxu0 %v524
    %v3549 = vpop.f32.mrb[0].mxu0
    %v3550 = vadd.f32 0.0, %v3549
    %v3551 = vpop.f32.mrb[0].mxu0
    %v3552 = vadd.f32 0.0, %v3551
    %v3553 = vpop.f32.mrb[0].mxu0
    %v3554 = vadd.f32 0.0, %v3553
    %v3555 = vpop.f32.mrb[0].mxu0
    %v3556 = vadd.f32 0.0, %v3555
    %3557 = vmatprep.mubr.bf16.mxu0 %v527
    %3558 = vmatmul.mubr.bf16.gmra.mrb[0].mxu0 %v526
    %v3559 = vpop.f32.mrb[0].mxu0
    %v3560 = vadd.f32 0.0, %v3559
    %v3561 = vpop.f32.mrb[0].mxu0
    %v3562 = vadd.f32 0.0, %v3561
    %v3563 = vpop.f32.mrb[0].mxu0
    %v3564 = vadd.f32 0.0, %v3563
    %v3565 = vpop.f32.mrb[0].mxu0
    %v3566 = vadd.f32 0.0, %v3565
    %3567 = vmatprep.mubr.bf16.mxu0 %v529
    %3568 = vmatmul.mubr.bf16.gmra.mrb[0].mxu0 %v528
    %v3569 = vpop.f32.mrb[0].mxu0
    %v3570 = vadd.f32 0.0, %v3569
    %v3571 = vpop.f32.mrb[0].mxu0
    %v3572 = vadd.f32 0.0, %v3571
    %v3573 = vpop.f32.mrb[0].mxu0
    %v3574 = vadd.f32 0.0, %v3573
    %v3575 = vpop.f32.mrb[0].mxu0
    %v3576 = vadd.f32 0.0, %v3575
    %3577 = vdwg.mxu0
    %v3578 = vmax.f32 %v2497, %v2507
    %v3579 = vmax.f32 %v2499, %v2509
    %v3580 = vmax.f32 %v2590, %v2600
    %v3581 = vmax.f32 %v2592, %v2602
    %v3582 = vmax.f32 %v2683, %v2693
    %v3583 = vmax.f32 %v2685, %v2695
    %v3584 = vmax.f32 %v2776, %v2786
    %v3585 = vmax.f32 %v2778, %v2788
    %v3586 = vmax.f32 %v2869, %v2879
    %v3587 = vmax.f32 %v2871, %v2881
    %v3588 = vmax.f32 %v2962, %v2972
    %v3589 = vmax.f32 %v2964, %v2974
    %v3590 = vmax.f32 %v3055, %v3065
    %v3591 = vmax.f32 %v3057, %v3067
    %v3592 = vmax.f32 %v3148, %v3158
    %v3593 = vmax.f32 %v3150, %v3160
    %v3594 = vmax.f32 %v3241, %v3251
    %v3595 = vmax.f32 %v3243, %v3253
    %v3596 = vmax.f32 %v3334, %v3344
    %v3597 = vmax.f32 %v3336, %v3346
    %v3598 = vmax.f32 %v3427, %v3437
    %v3599 = vmax.f32 %v3429, %v3439
    %v3600 = vmax.f32 %v3520, %v3530
    %v3601 = vmax.f32 %v3522, %v3532
    %v3602 = vmax.f32 %v2501, %v2511
    %v3603 = vmax.f32 %v2503, %v2513
    %v3604 = vmax.f32 %v2594, %v2604
    %v3605 = vmax.f32 %v2596, %v2606
    %v3606 = vmax.f32 %v2687, %v2697
    %v3607 = vmax.f32 %v2689, %v2699
    %v3608 = vmax.f32 %v2780, %v2790
    %v3609 = vmax.f32 %v2782, %v2792
    %v3610 = vmax.f32 %v2873, %v2883
    %v3611 = vmax.f32 %v2875, %v2885
    %v3612 = vmax.f32 %v2966, %v2976
    %v3613 = vmax.f32 %v2968, %v2978
    %v3614 = vmax.f32 %v3059, %v3069
    %v3615 = vmax.f32 %v3061, %v3071
    %v3616 = vmax.f32 %v3152, %v3162
    %v3617 = vmax.f32 %v3154, %v3164
    %v3618 = vmax.f32 %v3245, %v3255
    %v3619 = vmax.f32 %v3247, %v3257
    %v3620 = vmax.f32 %v3338, %v3348
    %v3621 = vmax.f32 %v3340, %v3350
    %v3622 = vmax.f32 %v3431, %v3441
    %v3623 = vmax.f32 %v3433, %v3443
    %v3624 = vmax.f32 %v3524, %v3534
    %v3625 = vmax.f32 %v3526, %v3536
    %v3626 = vmax.f32 %v3578, %v2517
    %v3627 = vmax.f32 %v3579, %v2519
    %v3628 = vmax.f32 %v3580, %v2610
    %v3629 = vmax.f32 %v3581, %v2612
    %v3630 = vmax.f32 %v3582, %v2703
    %v3631 = vmax.f32 %v3583, %v2705
    %v3632 = vmax.f32 %v3584, %v2796
    %v3633 = vmax.f32 %v3585, %v2798
    %v3634 = vmax.f32 %v3586, %v2889
    %v3635 = vmax.f32 %v3587, %v2891
    %v3636 = vmax.f32 %v3588, %v2982
    %v3637 = vmax.f32 %v3589, %v2984
    %v3638 = vmax.f32 %v3590, %v3075
    %v3639 = vmax.f32 %v3591, %v3077
    %v3640 = vmax.f32 %v3592, %v3168
    %v3641 = vmax.f32 %v3593, %v3170
    %v3642 = vmax.f32 %v3594, %v3261
    %v3643 = vmax.f32 %v3595, %v3263
    %v3644 = vmax.f32 %v3596, %v3354
    %v3645 = vmax.f32 %v3597, %v3356
    %v3646 = vmax.f32 %v3598, %v3447
    %v3647 = vmax.f32 %v3599, %v3449
    %v3648 = vmax.f32 %v3600, %v3540
    %v3649 = vmax.f32 %v3601, %v3542
    %v3650 = vmax.f32 %v3602, %v2521
    %v3651 = vmax.f32 %v3603, %v2523
    %v3652 = vmax.f32 %v3604, %v2614
    %v3653 = vmax.f32 %v3605, %v2616
    %v3654 = vmax.f32 %v3606, %v2707
    %v3655 = vmax.f32 %v3607, %v2709
    %v3656 = vmax.f32 %v3608, %v2800
    %v3657 = vmax.f32 %v3609, %v2802
    %v3658 = vmax.f32 %v3610, %v2893
    %v3659 = vmax.f32 %v3611, %v2895
    %v3660 = vmax.f32 %v3612, %v2986
    %v3661 = vmax.f32 %v3613, %v2988
    %v3662 = vmax.f32 %v3614, %v3079
    %v3663 = vmax.f32 %v3615, %v3081
    %v3664 = vmax.f32 %v3616, %v3172
    %v3665 = vmax.f32 %v3617, %v3174
    %v3666 = vmax.f32 %v3618, %v3265
    %v3667 = vmax.f32 %v3619, %v3267
    %v3668 = vmax.f32 %v3620, %v3358
    %v3669 = vmax.f32 %v3621, %v3360
    %v3670 = vmax.f32 %v3622, %v3451
    %v3671 = vmax.f32 %v3623, %v3453
    %v3672 = vmax.f32 %v3624, %v3544
    %v3673 = vmax.f32 %v3625, %v3546
    %v3674 = vmax.f32 %v3626, %v2527
    %v3675 = vmax.f32 %v3627, %v2529
    %v3676 = vmax.f32 %v3628, %v2620
    %v3677 = vmax.f32 %v3629, %v2622
    %v3678 = vmax.f32 %v3630, %v2713
    %v3679 = vmax.f32 %v3631, %v2715
    %v3680 = vmax.f32 %v3632, %v2806
    %v3681 = vmax.f32 %v3633, %v2808
    %v3682 = vmax.f32 %v3634, %v2899
    %v3683 = vmax.f32 %v3635, %v2901
    %v3684 = vmax.f32 %v3636, %v2992
    %v3685 = vmax.f32 %v3637, %v2994
    %v3686 = vmax.f32 %v3638, %v3085
    %v3687 = vmax.f32 %v3639, %v3087
    %v3688 = vmax.f32 %v3640, %v3178
    %v3689 = vmax.f32 %v3641, %v3180
    %v3690 = vmax.f32 %v3642, %v3271
    %v3691 = vmax.f32 %v3643, %v3273
    %v3692 = vmax.f32 %v3644, %v3364
    %v3693 = vmax.f32 %v3645, %v3366
    %v3694 = vmax.f32 %v3646, %v3457
    %v3695 = vmax.f32 %v3647, %v3459
    %v3696 = vmax.f32 %v3648, %v3550
    %v3697 = vmax.f32 %v3649, %v3552
    %v3698 = vmax.f32 %v3650, %v2531
    %v3699 = vmax.f32 %v3651, %v2533
    %v3700 = vmax.f32 %v3652, %v2624
    %v3701 = vmax.f32 %v3653, %v2626
    %v3702 = vmax.f32 %v3654, %v2717
    %v3703 = vmax.f32 %v3655, %v2719
    %v3704 = vmax.f32 %v3656, %v2810
    %v3705 = vmax.f32 %v3657, %v2812
    %v3706 = vmax.f32 %v3658, %v2903
    %v3707 = vmax.f32 %v3659, %v2905
    %v3708 = vmax.f32 %v3660, %v2996
    %v3709 = vmax.f32 %v3661, %v2998
    %v3710 = vmax.f32 %v3662, %v3089
    %v3711 = vmax.f32 %v3663, %v3091
    %v3712 = vmax.f32 %v3664, %v3182
    %v3713 = vmax.f32 %v3665, %v3184
    %v3714 = vmax.f32 %v3666, %v3275
    %v3715 = vmax.f32 %v3667, %v3277
    %v3716 = vmax.f32 %v3668, %v3368
    %v3717 = vmax.f32 %v3669, %v3370
    %v3718 = vmax.f32 %v3670, %v3461
    %v3719 = vmax.f32 %v3671, %v3463
    %v3720 = vmax.f32 %v3672, %v3554
    %v3721 = vmax.f32 %v3673, %v3556
    %v3722 = vlaneseq
    %v3723 = vand.u32 %v3722, 127
    %v3724 = vadd.s32 %v3723, 128
    %v3725 = vadd.s32 %v3723, 256
    %v3726 = vadd.s32 %v3723, 384
    %v3727 = vadd.s32 %v3723, 512
    %v3728 = vadd.s32 %v3723, 640
    %v3729 = vadd.s32 %v3723, 768
    %v3730 = vadd.s32 %v3723, 896
    %v3731 = vadd.s32 %v3723, 1024
    %v3732 = vadd.s32 %v3723, 1152
    %v3733 = vadd.s32 %v3723, 1280
    %v3734 = vadd.s32 %v3723, 1408
    %v3735 = vadd.s32 %v3723, 1536
    %v3736 = vadd.s32 %v3723, 1664
    %v3737 = vadd.s32 %v3723, 1792
    %v3738 = vadd.s32 %v3723, 1920
    %v3739 = vadd.s32 %v3723, 2048
    %v3740 = vadd.s32 %v3723, 2176
    %v3741 = vadd.s32 %v3723, 2304
    %v3742 = vadd.s32 %v3723, 2432
    %v3743 = vadd.s32 %v3723, 2560
    %v3744 = vadd.s32 %v3723, 2688
    %v3745 = vadd.s32 %v3723, 2816
    %v3746 = vadd.s32 %v3723, 2944
    %vm3747 = vcmp.lt.s32.totalorder %v3723, 2048
    %vm3748 = vcmp.lt.s32.totalorder %v3724, 2048
    %vm3749 = vcmp.lt.s32.totalorder %v3725, 2048
    %vm3750 = vcmp.lt.s32.totalorder %v3726, 2048
    %vm3751 = vcmp.lt.s32.totalorder %v3727, 2048
    %vm3752 = vcmp.lt.s32.totalorder %v3728, 2048
    %vm3753 = vcmp.lt.s32.totalorder %v3729, 2048
    %vm3754 = vcmp.lt.s32.totalorder %v3730, 2048
    %vm3755 = vcmp.lt.s32.totalorder %v3731, 2048
    %vm3756 = vcmp.lt.s32.totalorder %v3732, 2048
    %vm3757 = vcmp.lt.s32.totalorder %v3733, 2048
    %vm3758 = vcmp.lt.s32.totalorder %v3734, 2048
    %vm3759 = vcmp.lt.s32.totalorder %v3735, 2048
    %vm3760 = vcmp.lt.s32.totalorder %v3736, 2048
    %vm3761 = vcmp.lt.s32.totalorder %v3737, 2048
    %vm3762 = vcmp.lt.s32.totalorder %v3738, 2048
    %vm3763 = vcmp.lt.s32.totalorder %v3739, 2048
    %vm3764 = vcmp.lt.s32.totalorder %v3740, 2048
    %vm3765 = vcmp.lt.s32.totalorder %v3741, 2048
    %vm3766 = vcmp.lt.s32.totalorder %v3742, 2048
    %vm3767 = vcmp.lt.s32.totalorder %v3743, 2048
    %vm3768 = vcmp.lt.s32.totalorder %v3744, 2048
    %vm3769 = vcmp.lt.s32.totalorder %v3745, 2048
    %vm3770 = vcmp.lt.s32.totalorder %v3746, 2048
    %v3771 = vsel %vm3747, %v2537, -1e+30
    %v3772 = vsel %vm3748, %v2539, -1e+30
    %v3773 = vsel %vm3749, %v2630, -1e+30
    %v3774 = vsel %vm3750, %v2632, -1e+30
    %v3775 = vsel %vm3751, %v2723, -1e+30
    %v3776 = vsel %vm3752, %v2725, -1e+30
    %v3777 = vsel %vm3753, %v2816, -1e+30
    %v3778 = vsel %vm3754, %v2818, -1e+30
    %v3779 = vsel %vm3755, %v2909, -1e+30
    %v3780 = vsel %vm3756, %v2911, -1e+30
    %v3781 = vsel %vm3757, %v3002, -1e+30
    %v3782 = vsel %vm3758, %v3004, -1e+30
    %v3783 = vsel %vm3759, %v3095, -1e+30
    %v3784 = vsel %vm3760, %v3097, -1e+30
    %v3785 = vsel %vm3761, %v3188, -1e+30
    %v3786 = vsel %vm3762, %v3190, -1e+30
    %v3787 = vsel %vm3763, %v3281, -1e+30
    %v3788 = vsel %vm3764, %v3283, -1e+30
    %v3789 = vsel %vm3765, %v3374, -1e+30
    %v3790 = vsel %vm3766, %v3376, -1e+30
    %v3791 = vsel %vm3767, %v3467, -1e+30
    %v3792 = vsel %vm3768, %v3469, -1e+30
    %v3793 = vsel %vm3769, %v3560, -1e+30
    %v3794 = vsel %vm3770, %v3562, -1e+30
    %v3795 = vsel %vm3747, %v2541, -1e+30
    %v3796 = vsel %vm3748, %v2543, -1e+30
    %v3797 = vsel %vm3749, %v2634, -1e+30
    %v3798 = vsel %vm3750, %v2636, -1e+30
    %v3799 = vsel %vm3751, %v2727, -1e+30
    %v3800 = vsel %vm3752, %v2729, -1e+30
    %v3801 = vsel %vm3753, %v2820, -1e+30
    %v3802 = vsel %vm3754, %v2822, -1e+30
    %v3803 = vsel %vm3755, %v2913, -1e+30
    %v3804 = vsel %vm3756, %v2915, -1e+30
    %v3805 = vsel %vm3757, %v3006, -1e+30
    %v3806 = vsel %vm3758, %v3008, -1e+30
    %v3807 = vsel %vm3759, %v3099, -1e+30
    %v3808 = vsel %vm3760, %v3101, -1e+30
    %v3809 = vsel %vm3761, %v3192, -1e+30
    %v3810 = vsel %vm3762, %v3194, -1e+30
    %v3811 = vsel %vm3763, %v3285, -1e+30
    %v3812 = vsel %vm3764, %v3287, -1e+30
    %v3813 = vsel %vm3765, %v3378, -1e+30
    %v3814 = vsel %vm3766, %v3380, -1e+30
    %v3815 = vsel %vm3767, %v3471, -1e+30
    %v3816 = vsel %vm3768, %v3473, -1e+30
    %v3817 = vsel %vm3769, %v3564, -1e+30
    %v3818 = vsel %vm3770, %v3566, -1e+30
    %v3819 = vmax.f32 %v3674, %v3771
    %v3820 = vmax.f32 %v3675, %v3772
    %v3821 = vmax.f32 %v3676, %v3773
    %v3822 = vmax.f32 %v3677, %v3774
    %v3823 = vmax.f32 %v3678, %v3775
    %v3824 = vmax.f32 %v3679, %v3776
    %v3825 = vmax.f32 %v3680, %v3777
    %v3826 = vmax.f32 %v3681, %v3778
    %v3827 = vmax.f32 %v3682, %v3779
    %v3828 = vmax.f32 %v3683, %v3780
    %v3829 = vmax.f32 %v3684, %v3781
    %v3830 = vmax.f32 %v3685, %v3782
    %v3831 = vmax.f32 %v3686, %v3783
    %v3832 = vmax.f32 %v3687, %v3784
    %v3833 = vmax.f32 %v3688, %v3785
    %v3834 = vmax.f32 %v3689, %v3786
    %v3835 = vmax.f32 %v3690, %v3787
    %v3836 = vmax.f32 %v3691, %v3788
    %v3837 = vmax.f32 %v3692, %v3789
    %v3838 = vmax.f32 %v3693, %v3790
    %v3839 = vmax.f32 %v3694, %v3791
    %v3840 = vmax.f32 %v3695, %v3792
    %v3841 = vmax.f32 %v3696, %v3793
    %v3842 = vmax.f32 %v3697, %v3794
    %v3843 = vmax.f32 %v3698, %v3795
    %v3844 = vmax.f32 %v3699, %v3796
    %v3845 = vmax.f32 %v3700, %v3797
    %v3846 = vmax.f32 %v3701, %v3798
    %v3847 = vmax.f32 %v3702, %v3799
    %v3848 = vmax.f32 %v3703, %v3800
    %v3849 = vmax.f32 %v3704, %v3801
    %v3850 = vmax.f32 %v3705, %v3802
    %v3851 = vmax.f32 %v3706, %v3803
    %v3852 = vmax.f32 %v3707, %v3804
    %v3853 = vmax.f32 %v3708, %v3805
    %v3854 = vmax.f32 %v3709, %v3806
    %v3855 = vmax.f32 %v3710, %v3807
    %v3856 = vmax.f32 %v3711, %v3808
    %v3857 = vmax.f32 %v3712, %v3809
    %v3858 = vmax.f32 %v3713, %v3810
    %v3859 = vmax.f32 %v3714, %v3811
    %v3860 = vmax.f32 %v3715, %v3812
    %v3861 = vmax.f32 %v3716, %v3813
    %v3862 = vmax.f32 %v3717, %v3814
    %v3863 = vmax.f32 %v3718, %v3815
    %v3864 = vmax.f32 %v3719, %v3816
    %v3865 = vmax.f32 %v3720, %v3817
    %v3866 = vmax.f32 %v3721, %v3818
    %vm3867 = vcmp.lt.s32.totalorder %v3723, 1024
    %vm3868 = vcmp.lt.s32.totalorder %v3724, 1024
    %vm3869 = vcmp.lt.s32.totalorder %v3725, 1024
    %vm3870 = vcmp.lt.s32.totalorder %v3726, 1024
    %vm3871 = vcmp.lt.s32.totalorder %v3727, 1024
    %vm3872 = vcmp.lt.s32.totalorder %v3728, 1024
    %vm3873 = vcmp.lt.s32.totalorder %v3729, 1024
    %vm3874 = vcmp.lt.s32.totalorder %v3730, 1024
    %vm3875 = vcmp.lt.s32.totalorder %v3731, 1024
    %vm3876 = vcmp.lt.s32.totalorder %v3732, 1024
    %vm3877 = vcmp.lt.s32.totalorder %v3733, 1024
    %vm3878 = vcmp.lt.s32.totalorder %v3734, 1024
    %vm3879 = vcmp.lt.s32.totalorder %v3735, 1024
    %vm3880 = vcmp.lt.s32.totalorder %v3736, 1024
    %vm3881 = vcmp.lt.s32.totalorder %v3737, 1024
    %vm3882 = vcmp.lt.s32.totalorder %v3738, 1024
    %vm3883 = vcmp.lt.s32.totalorder %v3739, 1024
    %vm3884 = vcmp.lt.s32.totalorder %v3740, 1024
    %vm3885 = vcmp.lt.s32.totalorder %v3741, 1024
    %vm3886 = vcmp.lt.s32.totalorder %v3742, 1024
    %vm3887 = vcmp.lt.s32.totalorder %v3743, 1024
    %vm3888 = vcmp.lt.s32.totalorder %v3744, 1024
    %vm3889 = vcmp.lt.s32.totalorder %v3745, 1024
    %vm3890 = vcmp.lt.s32.totalorder %v3746, 1024
    %v3891 = vsel %vm3867, %v2547, -1e+30
    %v3892 = vsel %vm3868, %v2549, -1e+30
    %v3893 = vsel %vm3869, %v2640, -1e+30
    %v3894 = vsel %vm3870, %v2642, -1e+30
    %v3895 = vsel %vm3871, %v2733, -1e+30
    %v3896 = vsel %vm3872, %v2735, -1e+30
    %v3897 = vsel %vm3873, %v2826, -1e+30
    %v3898 = vsel %vm3874, %v2828, -1e+30
    %v3899 = vsel %vm3875, %v2919, -1e+30
    %v3900 = vsel %vm3876, %v2921, -1e+30
    %v3901 = vsel %vm3877, %v3012, -1e+30
    %v3902 = vsel %vm3878, %v3014, -1e+30
    %v3903 = vsel %vm3879, %v3105, -1e+30
    %v3904 = vsel %vm3880, %v3107, -1e+30
    %v3905 = vsel %vm3881, %v3198, -1e+30
    %v3906 = vsel %vm3882, %v3200, -1e+30
    %v3907 = vsel %vm3883, %v3291, -1e+30
    %v3908 = vsel %vm3884, %v3293, -1e+30
    %v3909 = vsel %vm3885, %v3384, -1e+30
    %v3910 = vsel %vm3886, %v3386, -1e+30
    %v3911 = vsel %vm3887, %v3477, -1e+30
    %v3912 = vsel %vm3888, %v3479, -1e+30
    %v3913 = vsel %vm3889, %v3570, -1e+30
    %v3914 = vsel %vm3890, %v3572, -1e+30
    %v3915 = vsel %vm3867, %v2551, -1e+30
    %v3916 = vsel %vm3868, %v2553, -1e+30
    %v3917 = vsel %vm3869, %v2644, -1e+30
    %v3918 = vsel %vm3870, %v2646, -1e+30
    %v3919 = vsel %vm3871, %v2737, -1e+30
    %v3920 = vsel %vm3872, %v2739, -1e+30
    %v3921 = vsel %vm3873, %v2830, -1e+30
    %v3922 = vsel %vm3874, %v2832, -1e+30
    %v3923 = vsel %vm3875, %v2923, -1e+30
    %v3924 = vsel %vm3876, %v2925, -1e+30
    %v3925 = vsel %vm3877, %v3016, -1e+30
    %v3926 = vsel %vm3878, %v3018, -1e+30
    %v3927 = vsel %vm3879, %v3109, -1e+30
    %v3928 = vsel %vm3880, %v3111, -1e+30
    %v3929 = vsel %vm3881, %v3202, -1e+30
    %v3930 = vsel %vm3882, %v3204, -1e+30
    %v3931 = vsel %vm3883, %v3295, -1e+30
    %v3932 = vsel %vm3884, %v3297, -1e+30
    %v3933 = vsel %vm3885, %v3388, -1e+30
    %v3934 = vsel %vm3886, %v3390, -1e+30
    %v3935 = vsel %vm3887, %v3481, -1e+30
    %v3936 = vsel %vm3888, %v3483, -1e+30
    %v3937 = vsel %vm3889, %v3574, -1e+30
    %v3938 = vsel %vm3890, %v3576, -1e+30
    %v3939 = vmax.f32 %v3819, %v3891
    %v3940 = vmax.f32 %v3820, %v3892
    %v3941 = vmax.f32 %v3821, %v3893
    %v3942 = vmax.f32 %v3822, %v3894
    %v3943 = vmax.f32 %v3823, %v3895
    %v3944 = vmax.f32 %v3824, %v3896
    %v3945 = vmax.f32 %v3825, %v3897
    %v3946 = vmax.f32 %v3826, %v3898
    %v3947 = vmax.f32 %v3827, %v3899
    %v3948 = vmax.f32 %v3828, %v3900
    %v3949 = vmax.f32 %v3829, %v3901
    %v3950 = vmax.f32 %v3830, %v3902
    %v3951 = vmax.f32 %v3831, %v3903
    %v3952 = vmax.f32 %v3832, %v3904
    %v3953 = vmax.f32 %v3833, %v3905
    %v3954 = vmax.f32 %v3834, %v3906
    %v3955 = vmax.f32 %v3835, %v3907
    %v3956 = vmax.f32 %v3836, %v3908
    %v3957 = vmax.f32 %v3837, %v3909
    %v3958 = vmax.f32 %v3838, %v3910
    %v3959 = vmax.f32 %v3839, %v3911
    %v3960 = vmax.f32 %v3840, %v3912
    %v3961 = vmax.f32 %v3841, %v3913
    %v3962 = vmax.f32 %v3842, %v3914
    %v3963 = vmax.f32 %v3843, %v3915
    %v3964 = vmax.f32 %v3844, %v3916
    %v3965 = vmax.f32 %v3845, %v3917
    %v3966 = vmax.f32 %v3846, %v3918
    %v3967 = vmax.f32 %v3847, %v3919
    %v3968 = vmax.f32 %v3848, %v3920
    %v3969 = vmax.f32 %v3849, %v3921
    %v3970 = vmax.f32 %v3850, %v3922
    %v3971 = vmax.f32 %v3851, %v3923
    %v3972 = vmax.f32 %v3852, %v3924
    %v3973 = vmax.f32 %v3853, %v3925
    %v3974 = vmax.f32 %v3854, %v3926
    %v3975 = vmax.f32 %v3855, %v3927
    %v3976 = vmax.f32 %v3856, %v3928
    %v3977 = vmax.f32 %v3857, %v3929
    %v3978 = vmax.f32 %v3858, %v3930
    %v3979 = vmax.f32 %v3859, %v3931
    %v3980 = vmax.f32 %v3860, %v3932
    %v3981 = vmax.f32 %v3861, %v3933
    %v3982 = vmax.f32 %v3862, %v3934
    %v3983 = vmax.f32 %v3863, %v3935
    %v3984 = vmax.f32 %v3864, %v3936
    %v3985 = vmax.f32 %v3865, %v3937
    %v3986 = vmax.f32 %v3866, %v3938
    %v3987 = vld [vmem:[#allocation7] sm:$0xff]
    %v3988 = vld [vmem:[#allocation7 + $0x8] sm:$0xff]
    %v3989 = vld [vmem:[#allocation7 + $0x10] sm:$0xff]
    %v3993 = vlaneseq
    %v3994 = vshrl.u32 %v3993, 7
    %v3995 = vsub.s32 0, %v3994
    %v3996 = vrot.slane %v3987, %v3995
    %v3997 = vlaneseq
    %v3998 = vshrl.u32 %v3997, 7
    %v3999 = vsub.s32 1, %v3998
    %v4000 = vrot.slane %v3987, %v3999
    %v4001 = vlaneseq
    %v4002 = vshrl.u32 %v4001, 7
    %v4003 = vsub.s32 2, %v4002
    %v4004 = vrot.slane %v3987, %v4003
    %v4005 = vlaneseq
    %v4006 = vshrl.u32 %v4005, 7
    %v4007 = vsub.s32 3, %v4006
    %v4008 = vrot.slane %v3987, %v4007
    %v4009 = vlaneseq
    %v4010 = vshrl.u32 %v4009, 7
    %v4011 = vsub.s32 4, %v4010
    %v4012 = vrot.slane %v3987, %v4011
    %v4013 = vlaneseq
    %v4014 = vshrl.u32 %v4013, 7
    %v4015 = vsub.s32 5, %v4014
    %v4016 = vrot.slane %v3987, %v4015
    %v4017 = vlaneseq
    %v4018 = vshrl.u32 %v4017, 7
    %v4019 = vsub.s32 6, %v4018
    %v4020 = vrot.slane %v3987, %v4019
    %v4021 = vlaneseq
    %v4022 = vshrl.u32 %v4021, 7
    %v4023 = vsub.s32 7, %v4022
    %v4024 = vrot.slane %v3987, %v4023
    %v4025 = vlaneseq
    %v4026 = vshrl.u32 %v4025, 7
    %v4027 = vsub.s32 0, %v4026
    %v4028 = vrot.slane %v3988, %v4027
    %v4029 = vlaneseq
    %v4030 = vshrl.u32 %v4029, 7
    %v4031 = vsub.s32 1, %v4030
    %v4032 = vrot.slane %v3988, %v4031
    %v4033 = vlaneseq
    %v4034 = vshrl.u32 %v4033, 7
    %v4035 = vsub.s32 2, %v4034
    %v4036 = vrot.slane %v3988, %v4035
    %v4037 = vlaneseq
    %v4038 = vshrl.u32 %v4037, 7
    %v4039 = vsub.s32 3, %v4038
    %v4040 = vrot.slane %v3988, %v4039
    %v4041 = vlaneseq
    %v4042 = vshrl.u32 %v4041, 7
    %v4043 = vsub.s32 4, %v4042
    %v4044 = vrot.slane %v3988, %v4043
    %v4045 = vlaneseq
    %v4046 = vshrl.u32 %v4045, 7
    %v4047 = vsub.s32 5, %v4046
    %v4048 = vrot.slane %v3988, %v4047
    %v4049 = vlaneseq
    %v4050 = vshrl.u32 %v4049, 7
    %v4051 = vsub.s32 6, %v4050
    %v4052 = vrot.slane %v3988, %v4051
    %v4053 = vlaneseq
    %v4054 = vshrl.u32 %v4053, 7
    %v4055 = vsub.s32 7, %v4054
    %v4056 = vrot.slane %v3988, %v4055
    %v4057 = vlaneseq
    %v4058 = vshrl.u32 %v4057, 7
    %v4059 = vsub.s32 0, %v4058
    %v4060 = vrot.slane %v3989, %v4059
    %v4061 = vlaneseq
    %v4062 = vshrl.u32 %v4061, 7
    %v4063 = vsub.s32 1, %v4062
    %v4064 = vrot.slane %v3989, %v4063
    %v4065 = vlaneseq
    %v4066 = vshrl.u32 %v4065, 7
    %v4067 = vsub.s32 2, %v4066
    %v4068 = vrot.slane %v3989, %v4067
    %v4069 = vlaneseq
    %v4070 = vshrl.u32 %v4069, 7
    %v4071 = vsub.s32 3, %v4070
    %v4072 = vrot.slane %v3989, %v4071
    %v4073 = vlaneseq
    %v4074 = vshrl.u32 %v4073, 7
    %v4075 = vsub.s32 4, %v4074
    %v4076 = vrot.slane %v3989, %v4075
    %v4077 = vlaneseq
    %v4078 = vshrl.u32 %v4077, 7
    %v4079 = vsub.s32 5, %v4078
    %v4080 = vrot.slane %v3989, %v4079
    %v4081 = vlaneseq
    %v4082 = vshrl.u32 %v4081, 7
    %v4083 = vsub.s32 6, %v4082
    %v4084 = vrot.slane %v3989, %v4083
    %v4085 = vlaneseq
    %v4086 = vshrl.u32 %v4085, 7
    %v4087 = vsub.s32 7, %v4086
    %v4088 = vrot.slane %v3989, %v4087
    %v4113 = vadd.f32 %v3939, %v3996
    %v4114 = vadd.f32 %v3940, %v4000
    %v4115 = vadd.f32 %v3941, %v4004
    %v4116 = vadd.f32 %v3942, %v4008
    %v4117 = vadd.f32 %v3943, %v4012
    %v4118 = vadd.f32 %v3944, %v4016
    %v4119 = vadd.f32 %v3945, %v4020
    %v4120 = vadd.f32 %v3946, %v4024
    %v4121 = vadd.f32 %v3947, %v4028
    %v4122 = vadd.f32 %v3948, %v4032
    %v4123 = vadd.f32 %v3949, %v4036
    %v4124 = vadd.f32 %v3950, %v4040
    %v4125 = vadd.f32 %v3951, %v4044
    %v4126 = vadd.f32 %v3952, %v4048
    %v4127 = vadd.f32 %v3953, %v4052
    %v4128 = vadd.f32 %v3954, %v4056
    %v4129 = vadd.f32 %v3955, %v4060
    %v4130 = vadd.f32 %v3956, %v4064
    %v4131 = vadd.f32 %v3957, %v4068
    %v4132 = vadd.f32 %v3958, %v4072
    %v4133 = vadd.f32 %v3959, %v4076
    %v4134 = vadd.f32 %v3960, %v4080
    %v4135 = vadd.f32 %v3961, %v4084
    %v4136 = vadd.f32 %v3962, %v4088
    %v4137 = vadd.f32 %v3963, %v3996
    %v4138 = vadd.f32 %v3964, %v4000
    %v4139 = vadd.f32 %v3965, %v4004
    %v4140 = vadd.f32 %v3966, %v4008
    %v4141 = vadd.f32 %v3967, %v4012
    %v4142 = vadd.f32 %v3968, %v4016
    %v4143 = vadd.f32 %v3969, %v4020
    %v4144 = vadd.f32 %v3970, %v4024
    %v4145 = vadd.f32 %v3971, %v4028
    %v4146 = vadd.f32 %v3972, %v4032
    %v4147 = vadd.f32 %v3973, %v4036
    %v4148 = vadd.f32 %v3974, %v4040
    %v4149 = vadd.f32 %v3975, %v4044
    %v4150 = vadd.f32 %v3976, %v4048
    %v4151 = vadd.f32 %v3977, %v4052
    %v4152 = vadd.f32 %v3978, %v4056
    %v4153 = vadd.f32 %v3979, %v4060
    %v4154 = vadd.f32 %v3980, %v4064
    %v4155 = vadd.f32 %v3981, %v4068
    %v4156 = vadd.f32 %v3982, %v4072
    %v4157 = vadd.f32 %v3983, %v4076
    %v4158 = vadd.f32 %v3984, %v4080
    %v4159 = vadd.f32 %v3985, %v4084
    %v4160 = vadd.f32 %v3986, %v4088
    %v4161 = vmax.f32 %v4113, 0.0
    %v4162 = vmax.f32 %v4114, 0.0
    %v4163 = vmax.f32 %v4115, 0.0
    %v4164 = vmax.f32 %v4116, 0.0
    %v4165 = vmax.f32 %v4117, 0.0
    %v4166 = vmax.f32 %v4118, 0.0
    %v4167 = vmax.f32 %v4119, 0.0
    %v4168 = vmax.f32 %v4120, 0.0
    %v4169 = vmax.f32 %v4121, 0.0
    %v4170 = vmax.f32 %v4122, 0.0
    %v4171 = vmax.f32 %v4123, 0.0
    %v4172 = vmax.f32 %v4124, 0.0
    %v4173 = vmax.f32 %v4125, 0.0
    %v4174 = vmax.f32 %v4126, 0.0
    %v4175 = vmax.f32 %v4127, 0.0
    %v4176 = vmax.f32 %v4128, 0.0
    %v4177 = vmax.f32 %v4129, 0.0
    %v4178 = vmax.f32 %v4130, 0.0
    %v4179 = vmax.f32 %v4131, 0.0
    %v4180 = vmax.f32 %v4132, 0.0
    %v4181 = vmax.f32 %v4133, 0.0
    %v4182 = vmax.f32 %v4134, 0.0
    %v4183 = vmax.f32 %v4135, 0.0
    %v4184 = vmax.f32 %v4136, 0.0
    %v4185 = vmax.f32 %v4137, 0.0
    %v4186 = vmax.f32 %v4138, 0.0
    %v4187 = vmax.f32 %v4139, 0.0
    %v4188 = vmax.f32 %v4140, 0.0
    %v4189 = vmax.f32 %v4141, 0.0
    %v4190 = vmax.f32 %v4142, 0.0
    %v4191 = vmax.f32 %v4143, 0.0
    %v4192 = vmax.f32 %v4144, 0.0
    %v4193 = vmax.f32 %v4145, 0.0
    %v4194 = vmax.f32 %v4146, 0.0
    %v4195 = vmax.f32 %v4147, 0.0
    %v4196 = vmax.f32 %v4148, 0.0
    %v4197 = vmax.f32 %v4149, 0.0
    %v4198 = vmax.f32 %v4150, 0.0
    %v4199 = vmax.f32 %v4151, 0.0
    %v4200 = vmax.f32 %v4152, 0.0
    %v4201 = vmax.f32 %v4153, 0.0
    %v4202 = vmax.f32 %v4154, 0.0
    %v4203 = vmax.f32 %v4155, 0.0
    %v4204 = vmax.f32 %v4156, 0.0
    %v4205 = vmax.f32 %v4157, 0.0
    %v4206 = vmax.f32 %v4158, 0.0
    %v4207 = vmax.f32 %v4159, 0.0
    %v4208 = vmax.f32 %v4160, 0.0
    %v4209 = vpack.c.bf16 %v4185, %v4161
    %v4210 = vpack.c.bf16 %v4186, %v4162
    %v4211 = vpack.c.bf16 %v4187, %v4163
    %v4212 = vpack.c.bf16 %v4188, %v4164
    %v4213 = vpack.c.bf16 %v4189, %v4165
    %v4214 = vpack.c.bf16 %v4190, %v4166
    %v4215 = vpack.c.bf16 %v4191, %v4167
    %v4216 = vpack.c.bf16 %v4192, %v4168
    %v4217 = vpack.c.bf16 %v4193, %v4169
    %v4218 = vpack.c.bf16 %v4194, %v4170
    %v4219 = vpack.c.bf16 %v4195, %v4171
    %v4220 = vpack.c.bf16 %v4196, %v4172
    %v4221 = vpack.c.bf16 %v4197, %v4173
    %v4222 = vpack.c.bf16 %v4198, %v4174
    %v4223 = vpack.c.bf16 %v4199, %v4175
    %v4224 = vpack.c.bf16 %v4200, %v4176
    %v4225 = vpack.c.bf16 %v4201, %v4177
    %v4226 = vpack.c.bf16 %v4202, %v4178
    %v4227 = vpack.c.bf16 %v4203, %v4179
    %v4228 = vpack.c.bf16 %v4204, %v4180
    %v4229 = vpack.c.bf16 %v4205, %v4181
    %v4230 = vpack.c.bf16 %v4206, %v4182
    %v4231 = vpack.c.bf16 %v4207, %v4183
    %v4232 = vpack.c.bf16 %v4208, %v4184
    %v4233 = vld [vmem:[#allocation8] sm:$0xf]
    %v4234 = vld [vmem:[#allocation8 + $0x4] sm:$0xf]
    %v4235 = vld [vmem:[#allocation8 + $0x8] sm:$0xf]
    %v4236 = vld [vmem:[#allocation8 + $0xc] sm:$0xf]
    %v4237 = vld [vmem:[#allocation8 + $0x10] sm:$0xf]
    %v4238 = vld [vmem:[#allocation8 + $0x14] sm:$0xf]
    %v4239 = vld [vmem:[#allocation8 + $0x18] sm:$0xf]
    %v4240 = vld [vmem:[#allocation8 + $0x1c] sm:$0xf]
    %v4241 = vld [vmem:[#allocation8 + $0x20] sm:$0xf]
    %v4242 = vld [vmem:[#allocation8 + $0x24] sm:$0xf]
    %v4243 = vld [vmem:[#allocation8 + $0x28] sm:$0xf]
    %v4244 = vld [vmem:[#allocation8 + $0x2c] sm:$0xf]
    %v4245 = vld [vmem:[#allocation8 + $0x30] sm:$0xf]
    %v4246 = vld [vmem:[#allocation8 + $0x34] sm:$0xf]
    %v4247 = vld [vmem:[#allocation8 + $0x38] sm:$0xf]
    %v4248 = vld [vmem:[#allocation8 + $0x3c] sm:$0xf]
    %v4249 = vld [vmem:[#allocation8 + $0x40] sm:$0xf]
    %v4250 = vld [vmem:[#allocation8 + $0x44] sm:$0xf]
    %v4251 = vld [vmem:[#allocation8 + $0x48] sm:$0xf]
    %v4252 = vld [vmem:[#allocation8 + $0x4c] sm:$0xf]
    %v4253 = vld [vmem:[#allocation8 + $0x50] sm:$0xf]
    %v4254 = vld [vmem:[#allocation8 + $0x54] sm:$0xf]
    %v4255 = vld [vmem:[#allocation8 + $0x58] sm:$0xf]
    %v4256 = vld [vmem:[#allocation8 + $0x5c] sm:$0xf]
    %v4257 = vld [vmem:[#allocation8 + $0x60] sm:$0xf]
    %v4258 = vld [vmem:[#allocation8 + $0x64] sm:$0xf]
    %v4259 = vld [vmem:[#allocation8 + $0x68] sm:$0xf]
    %v4260 = vld [vmem:[#allocation8 + $0x6c] sm:$0xf]
    %v4261 = vld [vmem:[#allocation8 + $0x70] sm:$0xf]
    %v4262 = vld [vmem:[#allocation8 + $0x74] sm:$0xf]
    %v4263 = vld [vmem:[#allocation8 + $0x78] sm:$0xf]
    %v4264 = vld [vmem:[#allocation8 + $0x7c] sm:$0xf]
    %v4265 = vld [vmem:[#allocation8 + $0x80] sm:$0xf]
    %v4266 = vld [vmem:[#allocation8 + $0x84] sm:$0xf]
    %v4267 = vld [vmem:[#allocation8 + $0x88] sm:$0xf]
    %v4268 = vld [vmem:[#allocation8 + $0x8c] sm:$0xf]
    %v4269 = vld [vmem:[#allocation8 + $0x90] sm:$0xf]
    %v4270 = vld [vmem:[#allocation8 + $0x94] sm:$0xf]
    %v4271 = vld [vmem:[#allocation8 + $0x98] sm:$0xf]
    %v4272 = vld [vmem:[#allocation8 + $0x9c] sm:$0xf]
    %v4273 = vld [vmem:[#allocation8 + $0xa0] sm:$0xf]
    %v4274 = vld [vmem:[#allocation8 + $0xa4] sm:$0xf]
    %v4275 = vld [vmem:[#allocation8 + $0xa8] sm:$0xf]
    %v4276 = vld [vmem:[#allocation8 + $0xac] sm:$0xf]
    %v4277 = vld [vmem:[#allocation8 + $0xb0] sm:$0xf]
    %v4278 = vld [vmem:[#allocation8 + $0xb4] sm:$0xf]
    %v4279 = vld [vmem:[#allocation8 + $0xb8] sm:$0xf]
    %v4280 = vld [vmem:[#allocation8 + $0xbc] sm:$0xf]
    %v4281 = vld [vmem:[#allocation8 + $0xc0] sm:$0xf]
    %v4282 = vld [vmem:[#allocation8 + $0xc4] sm:$0xf]
    %v4283 = vld [vmem:[#allocation8 + $0xc8] sm:$0xf]
    %v4284 = vld [vmem:[#allocation8 + $0xcc] sm:$0xf]
    %v4285 = vld [vmem:[#allocation8 + $0xd0] sm:$0xf]
    %v4286 = vld [vmem:[#allocation8 + $0xd4] sm:$0xf]
    %v4287 = vld [vmem:[#allocation8 + $0xd8] sm:$0xf]
    %v4288 = vld [vmem:[#allocation8 + $0xdc] sm:$0xf]
    %v4289 = vld [vmem:[#allocation8 + $0xe0] sm:$0xf]
    %v4290 = vld [vmem:[#allocation8 + $0xe4] sm:$0xf]
    %v4291 = vld [vmem:[#allocation8 + $0xe8] sm:$0xf]
    %v4292 = vld [vmem:[#allocation8 + $0xec] sm:$0xf]
    %v4293 = vld [vmem:[#allocation8 + $0xf0] sm:$0xf]
    %v4294 = vld [vmem:[#allocation8 + $0xf4] sm:$0xf]
    %v4295 = vld [vmem:[#allocation8 + $0xf8] sm:$0xf]
    %v4296 = vld [vmem:[#allocation8 + $0xfc] sm:$0xf]
    %v4297 = vld [vmem:[#allocation8 + $0x100] sm:$0xf]
    %v4298 = vld [vmem:[#allocation8 + $0x104] sm:$0xf]
    %v4299 = vld [vmem:[#allocation8 + $0x108] sm:$0xf]
    %v4300 = vld [vmem:[#allocation8 + $0x10c] sm:$0xf]
    %v4301 = vld [vmem:[#allocation8 + $0x110] sm:$0xf]
    %v4302 = vld [vmem:[#allocation8 + $0x114] sm:$0xf]
    %v4303 = vld [vmem:[#allocation8 + $0x118] sm:$0xf]
    %v4304 = vld [vmem:[#allocation8 + $0x11c] sm:$0xf]
    %v4305 = vld [vmem:[#allocation8 + $0x120] sm:$0xf]
    %v4306 = vld [vmem:[#allocation8 + $0x124] sm:$0xf]
    %v4307 = vld [vmem:[#allocation8 + $0x128] sm:$0xf]
    %v4308 = vld [vmem:[#allocation8 + $0x12c] sm:$0xf]
    %v4309 = vld [vmem:[#allocation8 + $0x130] sm:$0xf]
    %v4310 = vld [vmem:[#allocation8 + $0x134] sm:$0xf]
    %v4311 = vld [vmem:[#allocation8 + $0x138] sm:$0xf]
    %v4312 = vld [vmem:[#allocation8 + $0x13c] sm:$0xf]
    %v4313 = vld [vmem:[#allocation8 + $0x140] sm:$0xf]
    %v4314 = vld [vmem:[#allocation8 + $0x144] sm:$0xf]
    %v4315 = vld [vmem:[#allocation8 + $0x148] sm:$0xf]
    %v4316 = vld [vmem:[#allocation8 + $0x14c] sm:$0xf]
    %v4317 = vld [vmem:[#allocation8 + $0x150] sm:$0xf]
    %v4318 = vld [vmem:[#allocation8 + $0x154] sm:$0xf]
    %v4319 = vld [vmem:[#allocation8 + $0x158] sm:$0xf]
    %v4320 = vld [vmem:[#allocation8 + $0x15c] sm:$0xf]
    %v4321 = vld [vmem:[#allocation8 + $0x160] sm:$0xf]
    %v4322 = vld [vmem:[#allocation8 + $0x164] sm:$0xf]
    %v4323 = vld [vmem:[#allocation8 + $0x168] sm:$0xf]
    %v4324 = vld [vmem:[#allocation8 + $0x16c] sm:$0xf]
    %v4325 = vld [vmem:[#allocation8 + $0x170] sm:$0xf]
    %v4326 = vld [vmem:[#allocation8 + $0x174] sm:$0xf]
    %v4327 = vld [vmem:[#allocation8 + $0x178] sm:$0xf]
    %v4328 = vld [vmem:[#allocation8 + $0x17c] sm:$0xf]
    %v4329 = vld [vmem:[#allocation8 + $0x180] sm:$0xf]
    %v4330 = vld [vmem:[#allocation8 + $0x184] sm:$0xf]
    %v4331 = vld [vmem:[#allocation8 + $0x188] sm:$0xf]
    %v4332 = vld [vmem:[#allocation8 + $0x18c] sm:$0xf]
    %v4333 = vld [vmem:[#allocation8 + $0x190] sm:$0xf]
    %v4334 = vld [vmem:[#allocation8 + $0x194] sm:$0xf]
    %v4335 = vld [vmem:[#allocation8 + $0x198] sm:$0xf]
    %v4336 = vld [vmem:[#allocation8 + $0x19c] sm:$0xf]
    %v4337 = vld [vmem:[#allocation8 + $0x1a0] sm:$0xf]
    %v4338 = vld [vmem:[#allocation8 + $0x1a4] sm:$0xf]
    %v4339 = vld [vmem:[#allocation8 + $0x1a8] sm:$0xf]
    %v4340 = vld [vmem:[#allocation8 + $0x1ac] sm:$0xf]
    %v4341 = vld [vmem:[#allocation8 + $0x1b0] sm:$0xf]
    %v4342 = vld [vmem:[#allocation8 + $0x1b4] sm:$0xf]
    %v4343 = vld [vmem:[#allocation8 + $0x1b8] sm:$0xf]
    %v4344 = vld [vmem:[#allocation8 + $0x1bc] sm:$0xf]
    %v4345 = vld [vmem:[#allocation8 + $0x1c0] sm:$0xf]
    %v4346 = vld [vmem:[#allocation8 + $0x1c4] sm:$0xf]
    %v4347 = vld [vmem:[#allocation8 + $0x1c8] sm:$0xf]
    %v4348 = vld [vmem:[#allocation8 + $0x1cc] sm:$0xf]
    %v4349 = vld [vmem:[#allocation8 + $0x1d0] sm:$0xf]
    %v4350 = vld [vmem:[#allocation8 + $0x1d4] sm:$0xf]
    %v4351 = vld [vmem:[#allocation8 + $0x1d8] sm:$0xf]
    %v4352 = vld [vmem:[#allocation8 + $0x1dc] sm:$0xf]
    %v4353 = vld [vmem:[#allocation8 + $0x1e0] sm:$0xf]
    %v4354 = vld [vmem:[#allocation8 + $0x1e4] sm:$0xf]
    %v4355 = vld [vmem:[#allocation8 + $0x1e8] sm:$0xf]
    %v4356 = vld [vmem:[#allocation8 + $0x1ec] sm:$0xf]
    %v4357 = vld [vmem:[#allocation8 + $0x1f0] sm:$0xf]
    %v4358 = vld [vmem:[#allocation8 + $0x1f4] sm:$0xf]
    %v4359 = vld [vmem:[#allocation8 + $0x1f8] sm:$0xf]
    %v4360 = vld [vmem:[#allocation8 + $0x1fc] sm:$0xf]
    %v4361 = vld [vmem:[#allocation8 + $0x200] sm:$0xf]
    %v4362 = vld [vmem:[#allocation8 + $0x204] sm:$0xf]
    %v4363 = vld [vmem:[#allocation8 + $0x208] sm:$0xf]
    %v4364 = vld [vmem:[#allocation8 + $0x20c] sm:$0xf]
    %v4365 = vld [vmem:[#allocation8 + $0x210] sm:$0xf]
    %v4366 = vld [vmem:[#allocation8 + $0x214] sm:$0xf]
    %v4367 = vld [vmem:[#allocation8 + $0x218] sm:$0xf]
    %v4368 = vld [vmem:[#allocation8 + $0x21c] sm:$0xf]
    %v4369 = vld [vmem:[#allocation8 + $0x220] sm:$0xf]
    %v4370 = vld [vmem:[#allocation8 + $0x224] sm:$0xf]
    %v4371 = vld [vmem:[#allocation8 + $0x228] sm:$0xf]
    %v4372 = vld [vmem:[#allocation8 + $0x22c] sm:$0xf]
    %v4373 = vld [vmem:[#allocation8 + $0x230] sm:$0xf]
    %v4374 = vld [vmem:[#allocation8 + $0x234] sm:$0xf]
    %v4375 = vld [vmem:[#allocation8 + $0x238] sm:$0xf]
    %v4376 = vld [vmem:[#allocation8 + $0x23c] sm:$0xf]
    %v4377 = vld [vmem:[#allocation8 + $0x240] sm:$0xf]
    %v4378 = vld [vmem:[#allocation8 + $0x244] sm:$0xf]
    %v4379 = vld [vmem:[#allocation8 + $0x248] sm:$0xf]
    %v4380 = vld [vmem:[#allocation8 + $0x24c] sm:$0xf]
    %v4381 = vld [vmem:[#allocation8 + $0x250] sm:$0xf]
    %v4382 = vld [vmem:[#allocation8 + $0x254] sm:$0xf]
    %v4383 = vld [vmem:[#allocation8 + $0x258] sm:$0xf]
    %v4384 = vld [vmem:[#allocation8 + $0x25c] sm:$0xf]
    %v4385 = vld [vmem:[#allocation8 + $0x260] sm:$0xf]
    %v4386 = vld [vmem:[#allocation8 + $0x264] sm:$0xf]
    %v4387 = vld [vmem:[#allocation8 + $0x268] sm:$0xf]
    %v4388 = vld [vmem:[#allocation8 + $0x26c] sm:$0xf]
    %v4389 = vld [vmem:[#allocation8 + $0x270] sm:$0xf]
    %v4390 = vld [vmem:[#allocation8 + $0x274] sm:$0xf]
    %v4391 = vld [vmem:[#allocation8 + $0x278] sm:$0xf]
    %v4392 = vld [vmem:[#allocation8 + $0x27c] sm:$0xf]
    %v4393 = vld [vmem:[#allocation8 + $0x280] sm:$0xf]
    %v4394 = vld [vmem:[#allocation8 + $0x284] sm:$0xf]
    %v4395 = vld [vmem:[#allocation8 + $0x288] sm:$0xf]
    %v4396 = vld [vmem:[#allocation8 + $0x28c] sm:$0xf]
    %v4397 = vld [vmem:[#allocation8 + $0x290] sm:$0xf]
    %v4398 = vld [vmem:[#allocation8 + $0x294] sm:$0xf]
    %v4399 = vld [vmem:[#allocation8 + $0x298] sm:$0xf]
    %v4400 = vld [vmem:[#allocation8 + $0x29c] sm:$0xf]
    %v4401 = vld [vmem:[#allocation8 + $0x2a0] sm:$0xf]
    %v4402 = vld [vmem:[#allocation8 + $0x2a4] sm:$0xf]
    %v4403 = vld [vmem:[#allocation8 + $0x2a8] sm:$0xf]
    %v4404 = vld [vmem:[#allocation8 + $0x2ac] sm:$0xf]
    %v4405 = vld [vmem:[#allocation8 + $0x2b0] sm:$0xf]
    %v4406 = vld [vmem:[#allocation8 + $0x2b4] sm:$0xf]
    %v4407 = vld [vmem:[#allocation8 + $0x2b8] sm:$0xf]
    %v4408 = vld [vmem:[#allocation8 + $0x2bc] sm:$0xf]
    %v4409 = vld [vmem:[#allocation8 + $0x2c0] sm:$0xf]
    %v4410 = vld [vmem:[#allocation8 + $0x2c4] sm:$0xf]
    %v4411 = vld [vmem:[#allocation8 + $0x2c8] sm:$0xf]
    %v4412 = vld [vmem:[#allocation8 + $0x2cc] sm:$0xf]
    %v4413 = vld [vmem:[#allocation8 + $0x2d0] sm:$0xf]
    %v4414 = vld [vmem:[#allocation8 + $0x2d4] sm:$0xf]
    %v4415 = vld [vmem:[#allocation8 + $0x2d8] sm:$0xf]
    %v4416 = vld [vmem:[#allocation8 + $0x2dc] sm:$0xf]
    %v4417 = vld [vmem:[#allocation8 + $0x2e0] sm:$0xf]
    %v4418 = vld [vmem:[#allocation8 + $0x2e4] sm:$0xf]
    %v4419 = vld [vmem:[#allocation8 + $0x2e8] sm:$0xf]
    %v4420 = vld [vmem:[#allocation8 + $0x2ec] sm:$0xf]
    %v4421 = vld [vmem:[#allocation8 + $0x2f0] sm:$0xf]
    %v4422 = vld [vmem:[#allocation8 + $0x2f4] sm:$0xf]
    %v4423 = vld [vmem:[#allocation8 + $0x2f8] sm:$0xf]
    %v4424 = vld [vmem:[#allocation8 + $0x2fc] sm:$0xf]
    %v4425 = vld [vmem:[#allocation8 + $0x300] sm:$0xf]
    %v4426 = vld [vmem:[#allocation8 + $0x304] sm:$0xf]
    %v4427 = vld [vmem:[#allocation8 + $0x308] sm:$0xf]
    %v4428 = vld [vmem:[#allocation8 + $0x30c] sm:$0xf]
    %v4429 = vld [vmem:[#allocation8 + $0x310] sm:$0xf]
    %v4430 = vld [vmem:[#allocation8 + $0x314] sm:$0xf]
    %v4431 = vld [vmem:[#allocation8 + $0x318] sm:$0xf]
    %v4432 = vld [vmem:[#allocation8 + $0x31c] sm:$0xf]
    %v4433 = vld [vmem:[#allocation8 + $0x320] sm:$0xf]
    %v4434 = vld [vmem:[#allocation8 + $0x324] sm:$0xf]
    %v4435 = vld [vmem:[#allocation8 + $0x328] sm:$0xf]
    %v4436 = vld [vmem:[#allocation8 + $0x32c] sm:$0xf]
    %v4437 = vld [vmem:[#allocation8 + $0x330] sm:$0xf]
    %v4438 = vld [vmem:[#allocation8 + $0x334] sm:$0xf]
    %v4439 = vld [vmem:[#allocation8 + $0x338] sm:$0xf]
    %v4440 = vld [vmem:[#allocation8 + $0x33c] sm:$0xf]
    %v4441 = vld [vmem:[#allocation8 + $0x340] sm:$0xf]
    %v4442 = vld [vmem:[#allocation8 + $0x344] sm:$0xf]
    %v4443 = vld [vmem:[#allocation8 + $0x348] sm:$0xf]
    %v4444 = vld [vmem:[#allocation8 + $0x34c] sm:$0xf]
    %v4445 = vld [vmem:[#allocation8 + $0x350] sm:$0xf]
    %v4446 = vld [vmem:[#allocation8 + $0x354] sm:$0xf]
    %v4447 = vld [vmem:[#allocation8 + $0x358] sm:$0xf]
    %v4448 = vld [vmem:[#allocation8 + $0x35c] sm:$0xf]
    %v4449 = vld [vmem:[#allocation8 + $0x360] sm:$0xf]
    %v4450 = vld [vmem:[#allocation8 + $0x364] sm:$0xf]
    %v4451 = vld [vmem:[#allocation8 + $0x368] sm:$0xf]
    %v4452 = vld [vmem:[#allocation8 + $0x36c] sm:$0xf]
    %v4453 = vld [vmem:[#allocation8 + $0x370] sm:$0xf]
    %v4454 = vld [vmem:[#allocation8 + $0x374] sm:$0xf]
    %v4455 = vld [vmem:[#allocation8 + $0x378] sm:$0xf]
    %v4456 = vld [vmem:[#allocation8 + $0x37c] sm:$0xf]
    %v4457 = vld [vmem:[#allocation8 + $0x380] sm:$0xf]
    %v4458 = vld [vmem:[#allocation8 + $0x384] sm:$0xf]
    %v4459 = vld [vmem:[#allocation8 + $0x388] sm:$0xf]
    %v4460 = vld [vmem:[#allocation8 + $0x38c] sm:$0xf]
    %v4461 = vld [vmem:[#allocation8 + $0x390] sm:$0xf]
    %v4462 = vld [vmem:[#allocation8 + $0x394] sm:$0xf]
    %v4463 = vld [vmem:[#allocation8 + $0x398] sm:$0xf]
    %v4464 = vld [vmem:[#allocation8 + $0x39c] sm:$0xf]
    %v4465 = vld [vmem:[#allocation8 + $0x3a0] sm:$0xf]
    %v4466 = vld [vmem:[#allocation8 + $0x3a4] sm:$0xf]
    %v4467 = vld [vmem:[#allocation8 + $0x3a8] sm:$0xf]
    %v4468 = vld [vmem:[#allocation8 + $0x3ac] sm:$0xf]
    %v4469 = vld [vmem:[#allocation8 + $0x3b0] sm:$0xf]
    %v4470 = vld [vmem:[#allocation8 + $0x3b4] sm:$0xf]
    %v4471 = vld [vmem:[#allocation8 + $0x3b8] sm:$0xf]
    %v4472 = vld [vmem:[#allocation8 + $0x3bc] sm:$0xf]
    %v4473 = vld [vmem:[#allocation8 + $0x3c0] sm:$0xf]
    %v4474 = vld [vmem:[#allocation8 + $0x3c4] sm:$0xf]
    %v4475 = vld [vmem:[#allocation8 + $0x3c8] sm:$0xf]
    %v4476 = vld [vmem:[#allocation8 + $0x3cc] sm:$0xf]
    %v4477 = vld [vmem:[#allocation8 + $0x3d0] sm:$0xf]
    %v4478 = vld [vmem:[#allocation8 + $0x3d4] sm:$0xf]
    %v4479 = vld [vmem:[#allocation8 + $0x3d8] sm:$0xf]
    %v4480 = vld [vmem:[#allocation8 + $0x3dc] sm:$0xf]
    %v4481 = vld [vmem:[#allocation8 + $0x3e0] sm:$0xf]
    %v4482 = vld [vmem:[#allocation8 + $0x3e4] sm:$0xf]
    %v4483 = vld [vmem:[#allocation8 + $0x3e8] sm:$0xf]
    %v4484 = vld [vmem:[#allocation8 + $0x3ec] sm:$0xf]
    %v4485 = vld [vmem:[#allocation8 + $0x3f0] sm:$0xf]
    %v4486 = vld [vmem:[#allocation8 + $0x3f4] sm:$0xf]
    %v4487 = vld [vmem:[#allocation8 + $0x3f8] sm:$0xf]
    %v4488 = vld [vmem:[#allocation8 + $0x3fc] sm:$0xf]
    %v4489 = vld [vmem:[#allocation8 + $0x400] sm:$0xf]
    %v4490 = vld [vmem:[#allocation8 + $0x404] sm:$0xf]
    %v4491 = vld [vmem:[#allocation8 + $0x408] sm:$0xf]
    %v4492 = vld [vmem:[#allocation8 + $0x40c] sm:$0xf]
    %v4493 = vld [vmem:[#allocation8 + $0x410] sm:$0xf]
    %v4494 = vld [vmem:[#allocation8 + $0x414] sm:$0xf]
    %v4495 = vld [vmem:[#allocation8 + $0x418] sm:$0xf]
    %v4496 = vld [vmem:[#allocation8 + $0x41c] sm:$0xf]
    %v4497 = vld [vmem:[#allocation8 + $0x420] sm:$0xf]
    %v4498 = vld [vmem:[#allocation8 + $0x424] sm:$0xf]
    %v4499 = vld [vmem:[#allocation8 + $0x428] sm:$0xf]
    %v4500 = vld [vmem:[#allocation8 + $0x42c] sm:$0xf]
    %v4501 = vld [vmem:[#allocation8 + $0x430] sm:$0xf]
    %v4502 = vld [vmem:[#allocation8 + $0x434] sm:$0xf]
    %v4503 = vld [vmem:[#allocation8 + $0x438] sm:$0xf]
    %v4504 = vld [vmem:[#allocation8 + $0x43c] sm:$0xf]
    %v4505 = vld [vmem:[#allocation8 + $0x440] sm:$0xf]
    %v4506 = vld [vmem:[#allocation8 + $0x444] sm:$0xf]
    %v4507 = vld [vmem:[#allocation8 + $0x448] sm:$0xf]
    %v4508 = vld [vmem:[#allocation8 + $0x44c] sm:$0xf]
    %v4509 = vld [vmem:[#allocation8 + $0x450] sm:$0xf]
    %v4510 = vld [vmem:[#allocation8 + $0x454] sm:$0xf]
    %v4511 = vld [vmem:[#allocation8 + $0x458] sm:$0xf]
    %v4512 = vld [vmem:[#allocation8 + $0x45c] sm:$0xf]
    %v4513 = vld [vmem:[#allocation8 + $0x460] sm:$0xf]
    %v4514 = vld [vmem:[#allocation8 + $0x464] sm:$0xf]
    %v4515 = vld [vmem:[#allocation8 + $0x468] sm:$0xf]
    %v4516 = vld [vmem:[#allocation8 + $0x46c] sm:$0xf]
    %v4517 = vld [vmem:[#allocation8 + $0x470] sm:$0xf]
    %v4518 = vld [vmem:[#allocation8 + $0x474] sm:$0xf]
    %v4519 = vld [vmem:[#allocation8 + $0x478] sm:$0xf]
    %v4520 = vld [vmem:[#allocation8 + $0x47c] sm:$0xf]
    %v4521 = vld [vmem:[#allocation8 + $0x480] sm:$0xf]
    %v4522 = vld [vmem:[#allocation8 + $0x484] sm:$0xf]
    %v4523 = vld [vmem:[#allocation8 + $0x488] sm:$0xf]
    %v4524 = vld [vmem:[#allocation8 + $0x48c] sm:$0xf]
    %v4525 = vld [vmem:[#allocation8 + $0x490] sm:$0xf]
    %v4526 = vld [vmem:[#allocation8 + $0x494] sm:$0xf]
    %v4527 = vld [vmem:[#allocation8 + $0x498] sm:$0xf]
    %v4528 = vld [vmem:[#allocation8 + $0x49c] sm:$0xf]
    %v4529 = vld [vmem:[#allocation8 + $0x4a0] sm:$0xf]
    %v4530 = vld [vmem:[#allocation8 + $0x4a4] sm:$0xf]
    %v4531 = vld [vmem:[#allocation8 + $0x4a8] sm:$0xf]
    %v4532 = vld [vmem:[#allocation8 + $0x4ac] sm:$0xf]
    %v4533 = vld [vmem:[#allocation8 + $0x4b0] sm:$0xf]
    %v4534 = vld [vmem:[#allocation8 + $0x4b4] sm:$0xf]
    %v4535 = vld [vmem:[#allocation8 + $0x4b8] sm:$0xf]
    %v4536 = vld [vmem:[#allocation8 + $0x4bc] sm:$0xf]
    %v4537 = vld [vmem:[#allocation8 + $0x4c0] sm:$0xf]
    %v4538 = vld [vmem:[#allocation8 + $0x4c4] sm:$0xf]
    %v4539 = vld [vmem:[#allocation8 + $0x4c8] sm:$0xf]
    %v4540 = vld [vmem:[#allocation8 + $0x4cc] sm:$0xf]
    %v4541 = vld [vmem:[#allocation8 + $0x4d0] sm:$0xf]
    %v4542 = vld [vmem:[#allocation8 + $0x4d4] sm:$0xf]
    %v4543 = vld [vmem:[#allocation8 + $0x4d8] sm:$0xf]
    %v4544 = vld [vmem:[#allocation8 + $0x4dc] sm:$0xf]
    %v4545 = vld [vmem:[#allocation8 + $0x4e0] sm:$0xf]
    %v4546 = vld [vmem:[#allocation8 + $0x4e4] sm:$0xf]
    %v4547 = vld [vmem:[#allocation8 + $0x4e8] sm:$0xf]
    %v4548 = vld [vmem:[#allocation8 + $0x4ec] sm:$0xf]
    %v4549 = vld [vmem:[#allocation8 + $0x4f0] sm:$0xf]
    %v4550 = vld [vmem:[#allocation8 + $0x4f4] sm:$0xf]
    %v4551 = vld [vmem:[#allocation8 + $0x4f8] sm:$0xf]
    %v4552 = vld [vmem:[#allocation8 + $0x4fc] sm:$0xf]
    %v4553 = vld [vmem:[#allocation8 + $0x500] sm:$0xf]
    %v4554 = vld [vmem:[#allocation8 + $0x504] sm:$0xf]
    %v4555 = vld [vmem:[#allocation8 + $0x508] sm:$0xf]
    %v4556 = vld [vmem:[#allocation8 + $0x50c] sm:$0xf]
    %v4557 = vld [vmem:[#allocation8 + $0x510] sm:$0xf]
    %v4558 = vld [vmem:[#allocation8 + $0x514] sm:$0xf]
    %v4559 = vld [vmem:[#allocation8 + $0x518] sm:$0xf]
    %v4560 = vld [vmem:[#allocation8 + $0x51c] sm:$0xf]
    %v4561 = vld [vmem:[#allocation8 + $0x520] sm:$0xf]
    %v4562 = vld [vmem:[#allocation8 + $0x524] sm:$0xf]
    %v4563 = vld [vmem:[#allocation8 + $0x528] sm:$0xf]
    %v4564 = vld [vmem:[#allocation8 + $0x52c] sm:$0xf]
    %v4565 = vld [vmem:[#allocation8 + $0x530] sm:$0xf]
    %v4566 = vld [vmem:[#allocation8 + $0x534] sm:$0xf]
    %v4567 = vld [vmem:[#allocation8 + $0x538] sm:$0xf]
    %v4568 = vld [vmem:[#allocation8 + $0x53c] sm:$0xf]
    %v4569 = vld [vmem:[#allocation8 + $0x540] sm:$0xf]
    %v4570 = vld [vmem:[#allocation8 + $0x544] sm:$0xf]
    %v4571 = vld [vmem:[#allocation8 + $0x548] sm:$0xf]
    %v4572 = vld [vmem:[#allocation8 + $0x54c] sm:$0xf]
    %v4573 = vld [vmem:[#allocation8 + $0x550] sm:$0xf]
    %v4574 = vld [vmem:[#allocation8 + $0x554] sm:$0xf]
    %v4575 = vld [vmem:[#allocation8 + $0x558] sm:$0xf]
    %v4576 = vld [vmem:[#allocation8 + $0x55c] sm:$0xf]
    %v4577 = vld [vmem:[#allocation8 + $0x560] sm:$0xf]
    %v4578 = vld [vmem:[#allocation8 + $0x564] sm:$0xf]
    %v4579 = vld [vmem:[#allocation8 + $0x568] sm:$0xf]
    %v4580 = vld [vmem:[#allocation8 + $0x56c] sm:$0xf]
    %v4581 = vld [vmem:[#allocation8 + $0x570] sm:$0xf]
    %v4582 = vld [vmem:[#allocation8 + $0x574] sm:$0xf]
    %v4583 = vld [vmem:[#allocation8 + $0x578] sm:$0xf]
    %v4584 = vld [vmem:[#allocation8 + $0x57c] sm:$0xf]
    %v4585 = vld [vmem:[#allocation8 + $0x580] sm:$0xf]
    %v4586 = vld [vmem:[#allocation8 + $0x584] sm:$0xf]
    %v4587 = vld [vmem:[#allocation8 + $0x588] sm:$0xf]
    %v4588 = vld [vmem:[#allocation8 + $0x58c] sm:$0xf]
    %v4589 = vld [vmem:[#allocation8 + $0x590] sm:$0xf]
    %v4590 = vld [vmem:[#allocation8 + $0x594] sm:$0xf]
    %v4591 = vld [vmem:[#allocation8 + $0x598] sm:$0xf]
    %v4592 = vld [vmem:[#allocation8 + $0x59c] sm:$0xf]
    %v4593 = vld [vmem:[#allocation8 + $0x5a0] sm:$0xf]
    %v4594 = vld [vmem:[#allocation8 + $0x5a4] sm:$0xf]
    %v4595 = vld [vmem:[#allocation8 + $0x5a8] sm:$0xf]
    %v4596 = vld [vmem:[#allocation8 + $0x5ac] sm:$0xf]
    %v4597 = vld [vmem:[#allocation8 + $0x5b0] sm:$0xf]
    %v4598 = vld [vmem:[#allocation8 + $0x5b4] sm:$0xf]
    %v4599 = vld [vmem:[#allocation8 + $0x5b8] sm:$0xf]
    %v4600 = vld [vmem:[#allocation8 + $0x5bc] sm:$0xf]
    %v4601 = vld [vmem:[#allocation8 + $0x5c0] sm:$0xf]
    %v4602 = vld [vmem:[#allocation8 + $0x5c4] sm:$0xf]
    %v4603 = vld [vmem:[#allocation8 + $0x5c8] sm:$0xf]
    %v4604 = vld [vmem:[#allocation8 + $0x5cc] sm:$0xf]
    %v4605 = vld [vmem:[#allocation8 + $0x5d0] sm:$0xf]
    %v4606 = vld [vmem:[#allocation8 + $0x5d4] sm:$0xf]
    %v4607 = vld [vmem:[#allocation8 + $0x5d8] sm:$0xf]
    %v4608 = vld [vmem:[#allocation8 + $0x5dc] sm:$0xf]
    %v4609 = vld [vmem:[#allocation8 + $0x5e0] sm:$0xf]
    %v4610 = vld [vmem:[#allocation8 + $0x5e4] sm:$0xf]
    %v4611 = vld [vmem:[#allocation8 + $0x5e8] sm:$0xf]
    %v4612 = vld [vmem:[#allocation8 + $0x5ec] sm:$0xf]
    %v4613 = vld [vmem:[#allocation8 + $0x5f0] sm:$0xf]
    %v4614 = vld [vmem:[#allocation8 + $0x5f4] sm:$0xf]
    %v4615 = vld [vmem:[#allocation8 + $0x5f8] sm:$0xf]
    %v4616 = vld [vmem:[#allocation8 + $0x5fc] sm:$0xf]
    %v4617 = vld [vmem:[#allocation10] sm:$0x1]
    %v4619 = vlaneseq
    %v4620 = vshrl.u32 %v4619, 7
    %v4621 = vsub.s32 0, %v4620
    %v4622 = vrot.slane %v4617, %v4621
    %v5008 = vunpack.c.l.b16 %v4233
    %v5009 = vunpack.c.l.b16 %v4234
    %v5010 = vunpack.c.l.b16 %v4235
    %v5011 = vunpack.c.l.b16 %v4236
    %v5012 = vunpack.c.l.b16 %v4237
    %v5013 = vunpack.c.l.b16 %v4238
    %v5014 = vunpack.c.l.b16 %v4239
    %v5015 = vunpack.c.l.b16 %v4240
    %v5016 = vunpack.c.l.b16 %v4241
    %v5017 = vunpack.c.l.b16 %v4242
    %v5018 = vunpack.c.l.b16 %v4243
    %v5019 = vunpack.c.l.b16 %v4244
    %v5020 = vunpack.c.l.b16 %v4245
    %v5021 = vunpack.c.l.b16 %v4246
    %v5022 = vunpack.c.l.b16 %v4247
    %v5023 = vunpack.c.l.b16 %v4248
    %v5024 = vunpack.c.l.b16 %v4249
    %v5025 = vunpack.c.l.b16 %v4250
    %v5026 = vunpack.c.l.b16 %v4251
    %v5027 = vunpack.c.l.b16 %v4252
    %v5028 = vunpack.c.l.b16 %v4253
    %v5029 = vunpack.c.l.b16 %v4254
    %v5030 = vunpack.c.l.b16 %v4255
    %v5031 = vunpack.c.l.b16 %v4256
    %v5032 = vunpack.c.l.b16 %v4257
    %v5033 = vunpack.c.l.b16 %v4258
    %v5034 = vunpack.c.l.b16 %v4259
    %v5035 = vunpack.c.l.b16 %v4260
    %v5036 = vunpack.c.l.b16 %v4261
    %v5037 = vunpack.c.l.b16 %v4262
    %v5038 = vunpack.c.l.b16 %v4263
    %v5039 = vunpack.c.l.b16 %v4264
    %v5040 = vunpack.c.l.b16 %v4265
    %v5041 = vunpack.c.l.b16 %v4266
    %v5042 = vunpack.c.l.b16 %v4267
    %v5043 = vunpack.c.l.b16 %v4268
    %v5044 = vunpack.c.l.b16 %v4269
    %v5045 = vunpack.c.l.b16 %v4270
    %v5046 = vunpack.c.l.b16 %v4271
    %v5047 = vunpack.c.l.b16 %v4272
    %v5048 = vunpack.c.l.b16 %v4273
    %v5049 = vunpack.c.l.b16 %v4274
    %v5050 = vunpack.c.l.b16 %v4275
    %v5051 = vunpack.c.l.b16 %v4276
    %v5052 = vunpack.c.l.b16 %v4277
    %v5053 = vunpack.c.l.b16 %v4278
    %v5054 = vunpack.c.l.b16 %v4279
    %v5055 = vunpack.c.l.b16 %v4280
    %v5056 = vunpack.c.l.b16 %v4281
    %v5057 = vunpack.c.l.b16 %v4282
    %v5058 = vunpack.c.l.b16 %v4283
    %v5059 = vunpack.c.l.b16 %v4284
    %v5060 = vunpack.c.l.b16 %v4285
    %v5061 = vunpack.c.l.b16 %v4286
    %v5062 = vunpack.c.l.b16 %v4287
    %v5063 = vunpack.c.l.b16 %v4288
    %v5064 = vunpack.c.l.b16 %v4289
    %v5065 = vunpack.c.l.b16 %v4290
    %v5066 = vunpack.c.l.b16 %v4291
    %v5067 = vunpack.c.l.b16 %v4292
    %v5068 = vunpack.c.l.b16 %v4293
    %v5069 = vunpack.c.l.b16 %v4294
    %v5070 = vunpack.c.l.b16 %v4295
    %v5071 = vunpack.c.l.b16 %v4296
    %v5072 = vunpack.c.l.b16 %v4297
    %v5073 = vunpack.c.l.b16 %v4298
    %v5074 = vunpack.c.l.b16 %v4299
    %v5075 = vunpack.c.l.b16 %v4300
    %v5076 = vunpack.c.l.b16 %v4301
    %v5077 = vunpack.c.l.b16 %v4302
    %v5078 = vunpack.c.l.b16 %v4303
    %v5079 = vunpack.c.l.b16 %v4304
    %v5080 = vunpack.c.l.b16 %v4305
    %v5081 = vunpack.c.l.b16 %v4306
    %v5082 = vunpack.c.l.b16 %v4307
    %v5083 = vunpack.c.l.b16 %v4308
    %v5084 = vunpack.c.l.b16 %v4309
    %v5085 = vunpack.c.l.b16 %v4310
    %v5086 = vunpack.c.l.b16 %v4311
    %v5087 = vunpack.c.l.b16 %v4312
    %v5088 = vunpack.c.l.b16 %v4313
    %v5089 = vunpack.c.l.b16 %v4314
    %v5090 = vunpack.c.l.b16 %v4315
    %v5091 = vunpack.c.l.b16 %v4316
    %v5092 = vunpack.c.l.b16 %v4317
    %v5093 = vunpack.c.l.b16 %v4318
    %v5094 = vunpack.c.l.b16 %v4319
    %v5095 = vunpack.c.l.b16 %v4320
    %v5096 = vunpack.c.l.b16 %v4321
    %v5097 = vunpack.c.l.b16 %v4322
    %v5098 = vunpack.c.l.b16 %v4323
    %v5099 = vunpack.c.l.b16 %v4324
    %v5100 = vunpack.c.l.b16 %v4325
    %v5101 = vunpack.c.l.b16 %v4326
    %v5102 = vunpack.c.l.b16 %v4327
    %v5103 = vunpack.c.l.b16 %v4328
    %v5104 = vunpack.c.l.b16 %v4329
    %v5105 = vunpack.c.l.b16 %v4330
    %v5106 = vunpack.c.l.b16 %v4331
    %v5107 = vunpack.c.l.b16 %v4332
    %v5108 = vunpack.c.l.b16 %v4333
    %v5109 = vunpack.c.l.b16 %v4334
    %v5110 = vunpack.c.l.b16 %v4335
    %v5111 = vunpack.c.l.b16 %v4336
    %v5112 = vunpack.c.l.b16 %v4337
    %v5113 = vunpack.c.l.b16 %v4338
    %v5114 = vunpack.c.l.b16 %v4339
    %v5115 = vunpack.c.l.b16 %v4340
    %v5116 = vunpack.c.l.b16 %v4341
    %v5117 = vunpack.c.l.b16 %v4342
    %v5118 = vunpack.c.l.b16 %v4343
    %v5119 = vunpack.c.l.b16 %v4344
    %v5120 = vunpack.c.l.b16 %v4345
    %v5121 = vunpack.c.l.b16 %v4346
    %v5122 = vunpack.c.l.b16 %v4347
    %v5123 = vunpack.c.l.b16 %v4348
    %v5124 = vunpack.c.l.b16 %v4349
    %v5125 = vunpack.c.l.b16 %v4350
    %v5126 = vunpack.c.l.b16 %v4351
    %v5127 = vunpack.c.l.b16 %v4352
    %v5128 = vunpack.c.l.b16 %v4353
    %v5129 = vunpack.c.l.b16 %v4354
    %v5130 = vunpack.c.l.b16 %v4355
    %v5131 = vunpack.c.l.b16 %v4356
    %v5132 = vunpack.c.l.b16 %v4357
    %v5133 = vunpack.c.l.b16 %v4358
    %v5134 = vunpack.c.l.b16 %v4359
    %v5135 = vunpack.c.l.b16 %v4360
    %v5136 = vunpack.c.l.b16 %v4361
    %v5137 = vunpack.c.l.b16 %v4362
    %v5138 = vunpack.c.l.b16 %v4363
    %v5139 = vunpack.c.l.b16 %v4364
    %v5140 = vunpack.c.l.b16 %v4365
    %v5141 = vunpack.c.l.b16 %v4366
    %v5142 = vunpack.c.l.b16 %v4367
    %v5143 = vunpack.c.l.b16 %v4368
    %v5144 = vunpack.c.l.b16 %v4369
    %v5145 = vunpack.c.l.b16 %v4370
    %v5146 = vunpack.c.l.b16 %v4371
    %v5147 = vunpack.c.l.b16 %v4372
    %v5148 = vunpack.c.l.b16 %v4373
    %v5149 = vunpack.c.l.b16 %v4374
    %v5150 = vunpack.c.l.b16 %v4375
    %v5151 = vunpack.c.l.b16 %v4376
    %v5152 = vunpack.c.l.b16 %v4377
    %v5153 = vunpack.c.l.b16 %v4378
    %v5154 = vunpack.c.l.b16 %v4379
    %v5155 = vunpack.c.l.b16 %v4380
    %v5156 = vunpack.c.l.b16 %v4381
    %v5157 = vunpack.c.l.b16 %v4382
    %v5158 = vunpack.c.l.b16 %v4383
    %v5159 = vunpack.c.l.b16 %v4384
    %v5160 = vunpack.c.l.b16 %v4385
    %v5161 = vunpack.c.l.b16 %v4386
    %v5162 = vunpack.c.l.b16 %v4387
    %v5163 = vunpack.c.l.b16 %v4388
    %v5164 = vunpack.c.l.b16 %v4389
    %v5165 = vunpack.c.l.b16 %v4390
    %v5166 = vunpack.c.l.b16 %v4391
    %v5167 = vunpack.c.l.b16 %v4392
    %v5168 = vunpack.c.l.b16 %v4393
    %v5169 = vunpack.c.l.b16 %v4394
    %v5170 = vunpack.c.l.b16 %v4395
    %v5171 = vunpack.c.l.b16 %v4396
    %v5172 = vunpack.c.l.b16 %v4397
    %v5173 = vunpack.c.l.b16 %v4398
    %v5174 = vunpack.c.l.b16 %v4399
    %v5175 = vunpack.c.l.b16 %v4400
    %v5176 = vunpack.c.l.b16 %v4401
    %v5177 = vunpack.c.l.b16 %v4402
    %v5178 = vunpack.c.l.b16 %v4403
    %v5179 = vunpack.c.l.b16 %v4404
    %v5180 = vunpack.c.l.b16 %v4405
    %v5181 = vunpack.c.l.b16 %v4406
    %v5182 = vunpack.c.l.b16 %v4407
    %v5183 = vunpack.c.l.b16 %v4408
    %v5184 = vunpack.c.l.b16 %v4409
    %v5185 = vunpack.c.l.b16 %v4410
    %v5186 = vunpack.c.l.b16 %v4411
    %v5187 = vunpack.c.l.b16 %v4412
    %v5188 = vunpack.c.l.b16 %v4413
    %v5189 = vunpack.c.l.b16 %v4414
    %v5190 = vunpack.c.l.b16 %v4415
    %v5191 = vunpack.c.l.b16 %v4416
    %v5192 = vunpack.c.l.b16 %v4417
    %v5193 = vunpack.c.l.b16 %v4418
    %v5194 = vunpack.c.l.b16 %v4419
    %v5195 = vunpack.c.l.b16 %v4420
    %v5196 = vunpack.c.l.b16 %v4421
    %v5197 = vunpack.c.l.b16 %v4422
    %v5198 = vunpack.c.l.b16 %v4423
    %v5199 = vunpack.c.l.b16 %v4424
    %v5200 = vunpack.c.l.b16 %v4425
    %v5201 = vunpack.c.l.b16 %v4426
    %v5202 = vunpack.c.l.b16 %v4427
    %v5203 = vunpack.c.l.b16 %v4428
    %v5204 = vunpack.c.l.b16 %v4429
    %v5205 = vunpack.c.l.b16 %v4430
    %v5206 = vunpack.c.l.b16 %v4431
    %v5207 = vunpack.c.l.b16 %v4432
    %v5208 = vunpack.c.l.b16 %v4433
    %v5209 = vunpack.c.l.b16 %v4434
    %v5210 = vunpack.c.l.b16 %v4435
    %v5211 = vunpack.c.l.b16 %v4436
    %v5212 = vunpack.c.l.b16 %v4437
    %v5213 = vunpack.c.l.b16 %v4438
    %v5214 = vunpack.c.l.b16 %v4439
    %v5215 = vunpack.c.l.b16 %v4440
    %v5216 = vunpack.c.l.b16 %v4441
    %v5217 = vunpack.c.l.b16 %v4442
    %v5218 = vunpack.c.l.b16 %v4443
    %v5219 = vunpack.c.l.b16 %v4444
    %v5220 = vunpack.c.l.b16 %v4445
    %v5221 = vunpack.c.l.b16 %v4446
    %v5222 = vunpack.c.l.b16 %v4447
    %v5223 = vunpack.c.l.b16 %v4448
    %v5224 = vunpack.c.l.b16 %v4449
    %v5225 = vunpack.c.l.b16 %v4450
    %v5226 = vunpack.c.l.b16 %v4451
    %v5227 = vunpack.c.l.b16 %v4452
    %v5228 = vunpack.c.l.b16 %v4453
    %v5229 = vunpack.c.l.b16 %v4454
    %v5230 = vunpack.c.l.b16 %v4455
    %v5231 = vunpack.c.l.b16 %v4456
    %v5232 = vunpack.c.l.b16 %v4457
    %v5233 = vunpack.c.l.b16 %v4458
    %v5234 = vunpack.c.l.b16 %v4459
    %v5235 = vunpack.c.l.b16 %v4460
    %v5236 = vunpack.c.l.b16 %v4461
    %v5237 = vunpack.c.l.b16 %v4462
    %v5238 = vunpack.c.l.b16 %v4463
    %v5239 = vunpack.c.l.b16 %v4464
    %v5240 = vunpack.c.l.b16 %v4465
    %v5241 = vunpack.c.l.b16 %v4466
    %v5242 = vunpack.c.l.b16 %v4467
    %v5243 = vunpack.c.l.b16 %v4468
    %v5244 = vunpack.c.l.b16 %v4469
    %v5245 = vunpack.c.l.b16 %v4470
    %v5246 = vunpack.c.l.b16 %v4471
    %v5247 = vunpack.c.l.b16 %v4472
    %v5248 = vunpack.c.l.b16 %v4473
    %v5249 = vunpack.c.l.b16 %v4474
    %v5250 = vunpack.c.l.b16 %v4475
    %v5251 = vunpack.c.l.b16 %v4476
    %v5252 = vunpack.c.l.b16 %v4477
    %v5253 = vunpack.c.l.b16 %v4478
    %v5254 = vunpack.c.l.b16 %v4479
    %v5255 = vunpack.c.l.b16 %v4480
    %v5256 = vunpack.c.l.b16 %v4481
    %v5257 = vunpack.c.l.b16 %v4482
    %v5258 = vunpack.c.l.b16 %v4483
    %v5259 = vunpack.c.l.b16 %v4484
    %v5260 = vunpack.c.l.b16 %v4485
    %v5261 = vunpack.c.l.b16 %v4486
    %v5262 = vunpack.c.l.b16 %v4487
    %v5263 = vunpack.c.l.b16 %v4488
    %v5264 = vunpack.c.l.b16 %v4489
    %v5265 = vunpack.c.l.b16 %v4490
    %v5266 = vunpack.c.l.b16 %v4491
    %v5267 = vunpack.c.l.b16 %v4492
    %v5268 = vunpack.c.l.b16 %v4493
    %v5269 = vunpack.c.l.b16 %v4494
    %v5270 = vunpack.c.l.b16 %v4495
    %v5271 = vunpack.c.l.b16 %v4496
    %v5272 = vunpack.c.l.b16 %v4497
    %v5273 = vunpack.c.l.b16 %v4498
    %v5274 = vunpack.c.l.b16 %v4499
    %v5275 = vunpack.c.l.b16 %v4500
    %v5276 = vunpack.c.l.b16 %v4501
    %v5277 = vunpack.c.l.b16 %v4502
    %v5278 = vunpack.c.l.b16 %v4503
    %v5279 = vunpack.c.l.b16 %v4504
    %v5280 = vunpack.c.l.b16 %v4505
    %v5281 = vunpack.c.l.b16 %v4506
    %v5282 = vunpack.c.l.b16 %v4507
    %v5283 = vunpack.c.l.b16 %v4508
    %v5284 = vunpack.c.l.b16 %v4509
    %v5285 = vunpack.c.l.b16 %v4510
    %v5286 = vunpack.c.l.b16 %v4511
    %v5287 = vunpack.c.l.b16 %v4512
    %v5288 = vunpack.c.l.b16 %v4513
    %v5289 = vunpack.c.l.b16 %v4514
    %v5290 = vunpack.c.l.b16 %v4515
    %v5291 = vunpack.c.l.b16 %v4516
    %v5292 = vunpack.c.l.b16 %v4517
    %v5293 = vunpack.c.l.b16 %v4518
    %v5294 = vunpack.c.l.b16 %v4519
    %v5295 = vunpack.c.l.b16 %v4520
    %v5296 = vunpack.c.l.b16 %v4521
    %v5297 = vunpack.c.l.b16 %v4522
    %v5298 = vunpack.c.l.b16 %v4523
    %v5299 = vunpack.c.l.b16 %v4524
    %v5300 = vunpack.c.l.b16 %v4525
    %v5301 = vunpack.c.l.b16 %v4526
    %v5302 = vunpack.c.l.b16 %v4527
    %v5303 = vunpack.c.l.b16 %v4528
    %v5304 = vunpack.c.l.b16 %v4529
    %v5305 = vunpack.c.l.b16 %v4530
    %v5306 = vunpack.c.l.b16 %v4531
    %v5307 = vunpack.c.l.b16 %v4532
    %v5308 = vunpack.c.l.b16 %v4533
    %v5309 = vunpack.c.l.b16 %v4534
    %v5310 = vunpack.c.l.b16 %v4535
    %v5311 = vunpack.c.l.b16 %v4536
    %v5312 = vunpack.c.l.b16 %v4537
    %v5313 = vunpack.c.l.b16 %v4538
    %v5314 = vunpack.c.l.b16 %v4539
    %v5315 = vunpack.c.l.b16 %v4540
    %v5316 = vunpack.c.l.b16 %v4541
    %v5317 = vunpack.c.l.b16 %v4542
    %v5318 = vunpack.c.l.b16 %v4543
    %v5319 = vunpack.c.l.b16 %v4544
    %v5320 = vunpack.c.l.b16 %v4545
    %v5321 = vunpack.c.l.b16 %v4546
    %v5322 = vunpack.c.l.b16 %v4547
    %v5323 = vunpack.c.l.b16 %v4548
    %v5324 = vunpack.c.l.b16 %v4549
    %v5325 = vunpack.c.l.b16 %v4550
    %v5326 = vunpack.c.l.b16 %v4551
    %v5327 = vunpack.c.l.b16 %v4552
    %v5328 = vunpack.c.l.b16 %v4553
    %v5329 = vunpack.c.l.b16 %v4554
    %v5330 = vunpack.c.l.b16 %v4555
    %v5331 = vunpack.c.l.b16 %v4556
    %v5332 = vunpack.c.l.b16 %v4557
    %v5333 = vunpack.c.l.b16 %v4558
    %v5334 = vunpack.c.l.b16 %v4559
    %v5335 = vunpack.c.l.b16 %v4560
    %v5336 = vunpack.c.l.b16 %v4561
    %v5337 = vunpack.c.l.b16 %v4562
    %v5338 = vunpack.c.l.b16 %v4563
    %v5339 = vunpack.c.l.b16 %v4564
    %v5340 = vunpack.c.l.b16 %v4565
    %v5341 = vunpack.c.l.b16 %v4566
    %v5342 = vunpack.c.l.b16 %v4567
    %v5343 = vunpack.c.l.b16 %v4568
    %v5344 = vunpack.c.l.b16 %v4569
    %v5345 = vunpack.c.l.b16 %v4570
    %v5346 = vunpack.c.l.b16 %v4571
    %v5347 = vunpack.c.l.b16 %v4572
    %v5348 = vunpack.c.l.b16 %v4573
    %v5349 = vunpack.c.l.b16 %v4574
    %v5350 = vunpack.c.l.b16 %v4575
    %v5351 = vunpack.c.l.b16 %v4576
    %v5352 = vunpack.c.l.b16 %v4577
    %v5353 = vunpack.c.l.b16 %v4578
    %v5354 = vunpack.c.l.b16 %v4579
    %v5355 = vunpack.c.l.b16 %v4580
    %v5356 = vunpack.c.l.b16 %v4581
    %v5357 = vunpack.c.l.b16 %v4582
    %v5358 = vunpack.c.l.b16 %v4583
    %v5359 = vunpack.c.l.b16 %v4584
    %v5360 = vunpack.c.l.b16 %v4585
    %v5361 = vunpack.c.l.b16 %v4586
    %v5362 = vunpack.c.l.b16 %v4587
    %v5363 = vunpack.c.l.b16 %v4588
    %v5364 = vunpack.c.l.b16 %v4589
    %v5365 = vunpack.c.l.b16 %v4590
    %v5366 = vunpack.c.l.b16 %v4591
    %v5367 = vunpack.c.l.b16 %v4592
    %v5368 = vunpack.c.l.b16 %v4593
    %v5369 = vunpack.c.l.b16 %v4594
    %v5370 = vunpack.c.l.b16 %v4595
    %v5371 = vunpack.c.l.b16 %v4596
    %v5372 = vunpack.c.l.b16 %v4597
    %v5373 = vunpack.c.l.b16 %v4598
    %v5374 = vunpack.c.l.b16 %v4599
    %v5375 = vunpack.c.l.b16 %v4600
    %v5376 = vunpack.c.l.b16 %v4601
    %v5377 = vunpack.c.l.b16 %v4602
    %v5378 = vunpack.c.l.b16 %v4603
    %v5379 = vunpack.c.l.b16 %v4604
    %v5380 = vunpack.c.l.b16 %v4605
    %v5381 = vunpack.c.l.b16 %v4606
    %v5382 = vunpack.c.l.b16 %v4607
    %v5383 = vunpack.c.l.b16 %v4608
    %v5384 = vunpack.c.l.b16 %v4609
    %v5385 = vunpack.c.l.b16 %v4610
    %v5386 = vunpack.c.l.b16 %v4611
    %v5387 = vunpack.c.l.b16 %v4612
    %v5388 = vunpack.c.l.b16 %v4613
    %v5389 = vunpack.c.l.b16 %v4614
    %v5390 = vunpack.c.l.b16 %v4615
    %v5391 = vunpack.c.l.b16 %v4616
    %v5392 = vpack.c.b16 %v5009, %v5008
    %v5393 = vpack.c.b16 %v5011, %v5010
    %v5394 = vpack.c.b16 %v5013, %v5012
    %v5395 = vpack.c.b16 %v5015, %v5014
    %v5396 = vpack.c.b16 %v5017, %v5016
    %v5397 = vpack.c.b16 %v5019, %v5018
    %v5398 = vpack.c.b16 %v5021, %v5020
    %v5399 = vpack.c.b16 %v5023, %v5022
    %v5400 = vpack.c.b16 %v5025, %v5024
    %v5401 = vpack.c.b16 %v5027, %v5026
    %v5402 = vpack.c.b16 %v5029, %v5028
    %v5403 = vpack.c.b16 %v5031, %v5030
    %v5404 = vpack.c.b16 %v5033, %v5032
    %v5405 = vpack.c.b16 %v5035, %v5034
    %v5406 = vpack.c.b16 %v5037, %v5036
    %v5407 = vpack.c.b16 %v5039, %v5038
    %v5408 = vpack.c.b16 %v5041, %v5040
    %v5409 = vpack.c.b16 %v5043, %v5042
    %v5410 = vpack.c.b16 %v5045, %v5044
    %v5411 = vpack.c.b16 %v5047, %v5046
    %v5412 = vpack.c.b16 %v5049, %v5048
    %v5413 = vpack.c.b16 %v5051, %v5050
    %v5414 = vpack.c.b16 %v5053, %v5052
    %v5415 = vpack.c.b16 %v5055, %v5054
    %v5416 = vpack.c.b16 %v5057, %v5056
    %v5417 = vpack.c.b16 %v5059, %v5058
    %v5418 = vpack.c.b16 %v5061, %v5060
    %v5419 = vpack.c.b16 %v5063, %v5062
    %v5420 = vpack.c.b16 %v5065, %v5064
    %v5421 = vpack.c.b16 %v5067, %v5066
    %v5422 = vpack.c.b16 %v5069, %v5068
    %v5423 = vpack.c.b16 %v5071, %v5070
    %v5424 = vpack.c.b16 %v5073, %v5072
    %v5425 = vpack.c.b16 %v5075, %v5074
    %v5426 = vpack.c.b16 %v5077, %v5076
    %v5427 = vpack.c.b16 %v5079, %v5078
    %v5428 = vpack.c.b16 %v5081, %v5080
    %v5429 = vpack.c.b16 %v5083, %v5082
    %v5430 = vpack.c.b16 %v5085, %v5084
    %v5431 = vpack.c.b16 %v5087, %v5086
    %v5432 = vpack.c.b16 %v5089, %v5088
    %v5433 = vpack.c.b16 %v5091, %v5090
    %v5434 = vpack.c.b16 %v5093, %v5092
    %v5435 = vpack.c.b16 %v5095, %v5094
    %v5436 = vpack.c.b16 %v5097, %v5096
    %v5437 = vpack.c.b16 %v5099, %v5098
    %v5438 = vpack.c.b16 %v5101, %v5100
    %v5439 = vpack.c.b16 %v5103, %v5102
    %v5440 = vpack.c.b16 %v5105, %v5104
    %v5441 = vpack.c.b16 %v5107, %v5106
    %v5442 = vpack.c.b16 %v5109, %v5108
    %v5443 = vpack.c.b16 %v5111, %v5110
    %v5444 = vpack.c.b16 %v5113, %v5112
    %v5445 = vpack.c.b16 %v5115, %v5114
    %v5446 = vpack.c.b16 %v5117, %v5116
    %v5447 = vpack.c.b16 %v5119, %v5118
    %v5448 = vpack.c.b16 %v5121, %v5120
    %v5449 = vpack.c.b16 %v5123, %v5122
    %v5450 = vpack.c.b16 %v5125, %v5124
    %v5451 = vpack.c.b16 %v5127, %v5126
    %v5452 = vpack.c.b16 %v5129, %v5128
    %v5453 = vpack.c.b16 %v5131, %v5130
    %v5454 = vpack.c.b16 %v5133, %v5132
    %v5455 = vpack.c.b16 %v5135, %v5134
    %v5456 = vpack.c.b16 %v5137, %v5136
    %v5457 = vpack.c.b16 %v5139, %v5138
    %v5458 = vpack.c.b16 %v5141, %v5140
    %v5459 = vpack.c.b16 %v5143, %v5142
    %v5460 = vpack.c.b16 %v5145, %v5144
    %v5461 = vpack.c.b16 %v5147, %v5146
    %v5462 = vpack.c.b16 %v5149, %v5148
    %v5463 = vpack.c.b16 %v5151, %v5150
    %v5464 = vpack.c.b16 %v5153, %v5152
    %v5465 = vpack.c.b16 %v5155, %v5154
    %v5466 = vpack.c.b16 %v5157, %v5156
    %v5467 = vpack.c.b16 %v5159, %v5158
    %v5468 = vpack.c.b16 %v5161, %v5160
    %v5469 = vpack.c.b16 %v5163, %v5162
    %v5470 = vpack.c.b16 %v5165, %v5164
    %v5471 = vpack.c.b16 %v5167, %v5166
    %v5472 = vpack.c.b16 %v5169, %v5168
    %v5473 = vpack.c.b16 %v5171, %v5170
    %v5474 = vpack.c.b16 %v5173, %v5172
    %v5475 = vpack.c.b16 %v5175, %v5174
    %v5476 = vpack.c.b16 %v5177, %v5176
    %v5477 = vpack.c.b16 %v5179, %v5178
    %v5478 = vpack.c.b16 %v5181, %v5180
    %v5479 = vpack.c.b16 %v5183, %v5182
    %v5480 = vpack.c.b16 %v5185, %v5184
    %v5481 = vpack.c.b16 %v5187, %v5186
    %v5482 = vpack.c.b16 %v5189, %v5188
    %v5483 = vpack.c.b16 %v5191, %v5190
    %v5484 = vpack.c.b16 %v5193, %v5192
    %v5485 = vpack.c.b16 %v5195, %v5194
    %v5486 = vpack.c.b16 %v5197, %v5196
    %v5487 = vpack.c.b16 %v5199, %v5198
    %v5488 = vpack.c.b16 %v5201, %v5200
    %v5489 = vpack.c.b16 %v5203, %v5202
    %v5490 = vpack.c.b16 %v5205, %v5204
    %v5491 = vpack.c.b16 %v5207, %v5206
    %v5492 = vpack.c.b16 %v5209, %v5208
    %v5493 = vpack.c.b16 %v5211, %v5210
    %v5494 = vpack.c.b16 %v5213, %v5212
    %v5495 = vpack.c.b16 %v5215, %v5214
    %v5496 = vpack.c.b16 %v5217, %v5216
    %v5497 = vpack.c.b16 %v5219, %v5218
    %v5498 = vpack.c.b16 %v5221, %v5220
    %v5499 = vpack.c.b16 %v5223, %v5222
    %v5500 = vpack.c.b16 %v5225, %v5224
    %v5501 = vpack.c.b16 %v5227, %v5226
    %v5502 = vpack.c.b16 %v5229, %v5228
    %v5503 = vpack.c.b16 %v5231, %v5230
    %v5504 = vpack.c.b16 %v5233, %v5232
    %v5505 = vpack.c.b16 %v5235, %v5234
    %v5506 = vpack.c.b16 %v5237, %v5236
    %v5507 = vpack.c.b16 %v5239, %v5238
    %v5508 = vpack.c.b16 %v5241, %v5240
    %v5509 = vpack.c.b16 %v5243, %v5242
    %v5510 = vpack.c.b16 %v5245, %v5244
    %v5511 = vpack.c.b16 %v5247, %v5246
    %v5512 = vpack.c.b16 %v5249, %v5248
    %v5513 = vpack.c.b16 %v5251, %v5250
    %v5514 = vpack.c.b16 %v5253, %v5252
    %v5515 = vpack.c.b16 %v5255, %v5254
    %v5516 = vpack.c.b16 %v5257, %v5256
    %v5517 = vpack.c.b16 %v5259, %v5258
    %v5518 = vpack.c.b16 %v5261, %v5260
    %v5519 = vpack.c.b16 %v5263, %v5262
    %v5520 = vpack.c.b16 %v5265, %v5264
    %v5521 = vpack.c.b16 %v5267, %v5266
    %v5522 = vpack.c.b16 %v5269, %v5268
    %v5523 = vpack.c.b16 %v5271, %v5270
    %v5524 = vpack.c.b16 %v5273, %v5272
    %v5525 = vpack.c.b16 %v5275, %v5274
    %v5526 = vpack.c.b16 %v5277, %v5276
    %v5527 = vpack.c.b16 %v5279, %v5278
    %v5528 = vpack.c.b16 %v5281, %v5280
    %v5529 = vpack.c.b16 %v5283, %v5282
    %v5530 = vpack.c.b16 %v5285, %v5284
    %v5531 = vpack.c.b16 %v5287, %v5286
    %v5532 = vpack.c.b16 %v5289, %v5288
    %v5533 = vpack.c.b16 %v5291, %v5290
    %v5534 = vpack.c.b16 %v5293, %v5292
    %v5535 = vpack.c.b16 %v5295, %v5294
    %v5536 = vpack.c.b16 %v5297, %v5296
    %v5537 = vpack.c.b16 %v5299, %v5298
    %v5538 = vpack.c.b16 %v5301, %v5300
    %v5539 = vpack.c.b16 %v5303, %v5302
    %v5540 = vpack.c.b16 %v5305, %v5304
    %v5541 = vpack.c.b16 %v5307, %v5306
    %v5542 = vpack.c.b16 %v5309, %v5308
    %v5543 = vpack.c.b16 %v5311, %v5310
    %v5544 = vpack.c.b16 %v5313, %v5312
    %v5545 = vpack.c.b16 %v5315, %v5314
    %v5546 = vpack.c.b16 %v5317, %v5316
    %v5547 = vpack.c.b16 %v5319, %v5318
    %v5548 = vpack.c.b16 %v5321, %v5320
    %v5549 = vpack.c.b16 %v5323, %v5322
    %v5550 = vpack.c.b16 %v5325, %v5324
    %v5551 = vpack.c.b16 %v5327, %v5326
    %v5552 = vpack.c.b16 %v5329, %v5328
    %v5553 = vpack.c.b16 %v5331, %v5330
    %v5554 = vpack.c.b16 %v5333, %v5332
    %v5555 = vpack.c.b16 %v5335, %v5334
    %v5556 = vpack.c.b16 %v5337, %v5336
    %v5557 = vpack.c.b16 %v5339, %v5338
    %v5558 = vpack.c.b16 %v5341, %v5340
    %v5559 = vpack.c.b16 %v5343, %v5342
    %v5560 = vpack.c.b16 %v5345, %v5344
    %v5561 = vpack.c.b16 %v5347, %v5346
    %v5562 = vpack.c.b16 %v5349, %v5348
    %v5563 = vpack.c.b16 %v5351, %v5350
    %v5564 = vpack.c.b16 %v5353, %v5352
    %v5565 = vpack.c.b16 %v5355, %v5354
    %v5566 = vpack.c.b16 %v5357, %v5356
    %v5567 = vpack.c.b16 %v5359, %v5358
    %v5568 = vpack.c.b16 %v5361, %v5360
    %v5569 = vpack.c.b16 %v5363, %v5362
    %v5570 = vpack.c.b16 %v5365, %v5364
    %v5571 = vpack.c.b16 %v5367, %v5366
    %v5572 = vpack.c.b16 %v5369, %v5368
    %v5573 = vpack.c.b16 %v5371, %v5370
    %v5574 = vpack.c.b16 %v5373, %v5372
    %v5575 = vpack.c.b16 %v5375, %v5374
    %v5576 = vpack.c.b16 %v5377, %v5376
    %v5577 = vpack.c.b16 %v5379, %v5378
    %v5578 = vpack.c.b16 %v5381, %v5380
    %v5579 = vpack.c.b16 %v5383, %v5382
    %v5580 = vpack.c.b16 %v5385, %v5384
    %v5581 = vpack.c.b16 %v5387, %v5386
    %v5582 = vpack.c.b16 %v5389, %v5388
    %v5583 = vpack.c.b16 %v5391, %v5390
    %5776 = vmatprep.subr.bf16.mxu0 0
    %5777 = vmatpush1.bf16.msra.mxu0 %v5392
    %5778 = vmatprep.subr.bf16.mxu0 0
    %5779 = vmatpush1.bf16.msra.mxu0 %v5393
    %5780 = vmatprep.subr.bf16.mxu0 0
    %5781 = vmatpush1.bf16.msra.mxu0 %v5394
    %5782 = vmatprep.subr.bf16.mxu0 0
    %5783 = vmatpush1.bf16.msra.mxu0 %v5395
    %5784 = vmatprep.subr.bf16.mxu0 0
    %5785 = vmatpush1.bf16.msra.mxu0 %v5396
    %5786 = vmatprep.subr.bf16.mxu0 0
    %5787 = vmatpush1.bf16.msra.mxu0 %v5397
    %5788 = vmatprep.subr.bf16.mxu0 0
    %5789 = vmatpush1.bf16.msra.mxu0 %v5398
    %5790 = vmatprep.subr.bf16.mxu0 0
    %5791 = vmatpush1.bf16.msra.mxu0 %v5399
    %5792 = vmatprep.subr.bf16.mxu0 0
    %5793 = vmatpush1.bf16.msra.mxu0 %v5400
    %5794 = vmatprep.subr.bf16.mxu0 0
    %5795 = vmatpush1.bf16.msra.mxu0 %v5401
    %5796 = vmatprep.subr.bf16.mxu0 0
    %5797 = vmatpush1.bf16.msra.mxu0 %v5402
    %5798 = vmatprep.subr.bf16.mxu0 0
    %5799 = vmatpush1.bf16.msra.mxu0 %v5403
    %5800 = vmatprep.subr.bf16.mxu0 0
    %5801 = vmatpush1.bf16.msra.mxu0 %v5404
    %5802 = vmatprep.subr.bf16.mxu0 0
    %5803 = vmatpush1.bf16.msra.mxu0 %v5405
    %5804 = vmatprep.subr.bf16.mxu0 0
    %5805 = vmatpush1.bf16.msra.mxu0 %v5406
    %5806 = vmatprep.subr.bf16.mxu0 0
    %5807 = vmatpush1.bf16.msra.mxu0 %v5407
    %5808 = vmatprep.mubr.bf16.mxu0 %v4210
    %5809 = vmatmul.mubr.bf16.gmra.mrb[0].mxu0 %v4209
    %v5810 = vpop.f32.mrb[0].mxu0
    %v5811 = vadd.f32 %v4622, %v5810
    %v5812 = vpop.f32.mrb[0].mxu0
    %v5813 = vpop.f32.mrb[0].mxu0
    %v5814 = vadd.f32 %v4622, %v5813
    %v5815 = vpop.f32.mrb[0].mxu0
    %5816 = vdwg.mxu0
    %5817 = vmatprep.subr.bf16.mxu0 0
    %5818 = vmatpush1.bf16.msra.mxu0 %v5408
    %5819 = vmatprep.subr.bf16.mxu0 0
    %5820 = vmatpush1.bf16.msra.mxu0 %v5409
    %5821 = vmatprep.subr.bf16.mxu0 0
    %5822 = vmatpush1.bf16.msra.mxu0 %v5410
    %5823 = vmatprep.subr.bf16.mxu0 0
    %5824 = vmatpush1.bf16.msra.mxu0 %v5411
    %5825 = vmatprep.subr.bf16.mxu0 0
    %5826 = vmatpush1.bf16.msra.mxu0 %v5412
    %5827 = vmatprep.subr.bf16.mxu0 0
    %5828 = vmatpush1.bf16.msra.mxu0 %v5413
    %5829 = vmatprep.subr.bf16.mxu0 0
    %5830 = vmatpush1.bf16.msra.mxu0 %v5414
    %5831 = vmatprep.subr.bf16.mxu0 0
    %5832 = vmatpush1.bf16.msra.mxu0 %v5415
    %5833 = vmatprep.subr.bf16.mxu0 0
    %5834 = vmatpush1.bf16.msra.mxu0 %v5416
    %5835 = vmatprep.subr.bf16.mxu0 0
    %5836 = vmatpush1.bf16.msra.mxu0 %v5417
    %5837 = vmatprep.subr.bf16.mxu0 0
    %5838 = vmatpush1.bf16.msra.mxu0 %v5418
    %5839 = vmatprep.subr.bf16.mxu0 0
    %5840 = vmatpush1.bf16.msra.mxu0 %v5419
    %5841 = vmatprep.subr.bf16.mxu0 0
    %5842 = vmatpush1.bf16.msra.mxu0 %v5420
    %5843 = vmatprep.subr.bf16.mxu0 0
    %5844 = vmatpush1.bf16.msra.mxu0 %v5421
    %5845 = vmatprep.subr.bf16.mxu0 0
    %5846 = vmatpush1.bf16.msra.mxu0 %v5422
    %5847 = vmatprep.subr.bf16.mxu0 0
    %5848 = vmatpush1.bf16.msra.mxu0 %v5423
    %5849 = vmatprep.mubr.bf16.mxu0 %v4212
    %5850 = vmatmul.mubr.bf16.gmra.mrb[0].mxu0 %v4211
    %v5851 = vpop.f32.mrb[0].mxu0
    %v5852 = vadd.f32 %v5811, %v5851
    %v5853 = vpop.f32.mrb[0].mxu0
    %v5854 = vpop.f32.mrb[0].mxu0
    %v5855 = vadd.f32 %v5814, %v5854
    %v5856 = vpop.f32.mrb[0].mxu0
    %5857 = vdwg.mxu0
    %5858 = vmatprep.subr.bf16.mxu0 0
    %5859 = vmatpush1.bf16.msra.mxu0 %v5424
    %5860 = vmatprep.subr.bf16.mxu0 0
    %5861 = vmatpush1.bf16.msra.mxu0 %v5425
    %5862 = vmatprep.subr.bf16.mxu0 0
    %5863 = vmatpush1.bf16.msra.mxu0 %v5426
    %5864 = vmatprep.subr.bf16.mxu0 0
    %5865 = vmatpush1.bf16.msra.mxu0 %v5427
    %5866 = vmatprep.subr.bf16.mxu0 0
    %5867 = vmatpush1.bf16.msra.mxu0 %v5428
    %5868 = vmatprep.subr.bf16.mxu0 0
    %5869 = vmatpush1.bf16.msra.mxu0 %v5429
    %5870 = vmatprep.subr.bf16.mxu0 0
    %5871 = vmatpush1.bf16.msra.mxu0 %v5430
    %5872 = vmatprep.subr.bf16.mxu0 0
    %5873 = vmatpush1.bf16.msra.mxu0 %v5431
    %5874 = vmatprep.subr.bf16.mxu0 0
    %5875 = vmatpush1.bf16.msra.mxu0 %v5432
    %5876 = vmatprep.subr.bf16.mxu0 0
    %5877 = vmatpush1.bf16.msra.mxu0 %v5433
    %5878 = vmatprep.subr.bf16.mxu0 0
    %5879 = vmatpush1.bf16.msra.mxu0 %v5434
    %5880 = vmatprep.subr.bf16.mxu0 0
    %5881 = vmatpush1.bf16.msra.mxu0 %v5435
    %5882 = vmatprep.subr.bf16.mxu0 0
    %5883 = vmatpush1.bf16.msra.mxu0 %v5436
    %5884 = vmatprep.subr.bf16.mxu0 0
    %5885 = vmatpush1.bf16.msra.mxu0 %v5437
    %5886 = vmatprep.subr.bf16.mxu0 0
    %5887 = vmatpush1.bf16.msra.mxu0 %v5438
    %5888 = vmatprep.subr.bf16.mxu0 0
    %5889 = vmatpush1.bf16.msra.mxu0 %v5439
    %5890 = vmatprep.mubr.bf16.mxu0 %v4214
    %5891 = vmatmul.mubr.bf16.gmra.mrb[0].mxu0 %v4213
    %v5892 = vpop.f32.mrb[0].mxu0
    %v5893 = vadd.f32 %v5852, %v5892
    %v5894 = vpop.f32.mrb[0].mxu0
    %v5895 = vpop.f32.mrb[0].mxu0
    %v5896 = vadd.f32 %v5855, %v5895
    %v5897 = vpop.f32.mrb[0].mxu0
    %5898 = vdwg.mxu0
    %5899 = vmatprep.subr.bf16.mxu0 0
    %5900 = vmatpush1.bf16.msra.mxu0 %v5440
    %5901 = vmatprep.subr.bf16.mxu0 0
    %5902 = vmatpush1.bf16.msra.mxu0 %v5441
    %5903 = vmatprep.subr.bf16.mxu0 0
    %5904 = vmatpush1.bf16.msra.mxu0 %v5442
    %5905 = vmatprep.subr.bf16.mxu0 0
    %5906 = vmatpush1.bf16.msra.mxu0 %v5443
    %5907 = vmatprep.subr.bf16.mxu0 0
    %5908 = vmatpush1.bf16.msra.mxu0 %v5444
    %5909 = vmatprep.subr.bf16.mxu0 0
    %5910 = vmatpush1.bf16.msra.mxu0 %v5445
    %5911 = vmatprep.subr.bf16.mxu0 0
    %5912 = vmatpush1.bf16.msra.mxu0 %v5446
    %5913 = vmatprep.subr.bf16.mxu0 0
    %5914 = vmatpush1.bf16.msra.mxu0 %v5447
    %5915 = vmatprep.subr.bf16.mxu0 0
    %5916 = vmatpush1.bf16.msra.mxu0 %v5448
    %5917 = vmatprep.subr.bf16.mxu0 0
    %5918 = vmatpush1.bf16.msra.mxu0 %v5449
    %5919 = vmatprep.subr.bf16.mxu0 0
    %5920 = vmatpush1.bf16.msra.mxu0 %v5450
    %5921 = vmatprep.subr.bf16.mxu0 0
    %5922 = vmatpush1.bf16.msra.mxu0 %v5451
    %5923 = vmatprep.subr.bf16.mxu0 0
    %5924 = vmatpush1.bf16.msra.mxu0 %v5452
    %5925 = vmatprep.subr.bf16.mxu0 0
    %5926 = vmatpush1.bf16.msra.mxu0 %v5453
    %5927 = vmatprep.subr.bf16.mxu0 0
    %5928 = vmatpush1.bf16.msra.mxu0 %v5454
    %5929 = vmatprep.subr.bf16.mxu0 0
    %5930 = vmatpush1.bf16.msra.mxu0 %v5455
    %5931 = vmatprep.mubr.bf16.mxu0 %v4216
    %5932 = vmatmul.mubr.bf16.gmra.mrb[0].mxu0 %v4215
    %v5933 = vpop.f32.mrb[0].mxu0
    %v5934 = vadd.f32 %v5893, %v5933
    %v5935 = vpop.f32.mrb[0].mxu0
    %v5936 = vpop.f32.mrb[0].mxu0
    %v5937 = vadd.f32 %v5896, %v5936
    %v5938 = vpop.f32.mrb[0].mxu0
    %5939 = vdwg.mxu0
    %5940 = vmatprep.subr.bf16.mxu0 0
    %5941 = vmatpush1.bf16.msra.mxu0 %v5456
    %5942 = vmatprep.subr.bf16.mxu0 0
    %5943 = vmatpush1.bf16.msra.mxu0 %v5457
    %5944 = vmatprep.subr.bf16.mxu0 0
    %5945 = vmatpush1.bf16.msra.mxu0 %v5458
    %5946 = vmatprep.subr.bf16.mxu0 0
    %5947 = vmatpush1.bf16.msra.mxu0 %v5459
    %5948 = vmatprep.subr.bf16.mxu0 0
    %5949 = vmatpush1.bf16.msra.mxu0 %v5460
    %5950 = vmatprep.subr.bf16.mxu0 0
    %5951 = vmatpush1.bf16.msra.mxu0 %v5461
    %5952 = vmatprep.subr.bf16.mxu0 0
    %5953 = vmatpush1.bf16.msra.mxu0 %v5462
    %5954 = vmatprep.subr.bf16.mxu0 0
    %5955 = vmatpush1.bf16.msra.mxu0 %v5463
    %5956 = vmatprep.subr.bf16.mxu0 0
    %5957 = vmatpush1.bf16.msra.mxu0 %v5464
    %5958 = vmatprep.subr.bf16.mxu0 0
    %5959 = vmatpush1.bf16.msra.mxu0 %v5465
    %5960 = vmatprep.subr.bf16.mxu0 0
    %5961 = vmatpush1.bf16.msra.mxu0 %v5466
    %5962 = vmatprep.subr.bf16.mxu0 0
    %5963 = vmatpush1.bf16.msra.mxu0 %v5467
    %5964 = vmatprep.subr.bf16.mxu0 0
    %5965 = vmatpush1.bf16.msra.mxu0 %v5468
    %5966 = vmatprep.subr.bf16.mxu0 0
    %5967 = vmatpush1.bf16.msra.mxu0 %v5469
    %5968 = vmatprep.subr.bf16.mxu0 0
    %5969 = vmatpush1.bf16.msra.mxu0 %v5470
    %5970 = vmatprep.subr.bf16.mxu0 0
    %5971 = vmatpush1.bf16.msra.mxu0 %v5471
    %5972 = vmatprep.mubr.bf16.mxu0 %v4218
    %5973 = vmatmul.mubr.bf16.gmra.mrb[0].mxu0 %v4217
    %v5974 = vpop.f32.mrb[0].mxu0
    %v5975 = vadd.f32 %v5934, %v5974
    %v5976 = vpop.f32.mrb[0].mxu0
    %v5977 = vpop.f32.mrb[0].mxu0
    %v5978 = vadd.f32 %v5937, %v5977
    %v5979 = vpop.f32.mrb[0].mxu0
    %5980 = vdwg.mxu0
    %5981 = vmatprep.subr.bf16.mxu0 0
    %5982 = vmatpush1.bf16.msra.mxu0 %v5472
    %5983 = vmatprep.subr.bf16.mxu0 0
    %5984 = vmatpush1.bf16.msra.mxu0 %v5473
    %5985 = vmatprep.subr.bf16.mxu0 0
    %5986 = vmatpush1.bf16.msra.mxu0 %v5474
    %5987 = vmatprep.subr.bf16.mxu0 0
    %5988 = vmatpush1.bf16.msra.mxu0 %v5475
    %5989 = vmatprep.subr.bf16.mxu0 0
    %5990 = vmatpush1.bf16.msra.mxu0 %v5476
    %5991 = vmatprep.subr.bf16.mxu0 0
    %5992 = vmatpush1.bf16.msra.mxu0 %v5477
    %5993 = vmatprep.subr.bf16.mxu0 0
    %5994 = vmatpush1.bf16.msra.mxu0 %v5478
    %5995 = vmatprep.subr.bf16.mxu0 0
    %5996 = vmatpush1.bf16.msra.mxu0 %v5479
    %5997 = vmatprep.subr.bf16.mxu0 0
    %5998 = vmatpush1.bf16.msra.mxu0 %v5480
    %5999 = vmatprep.subr.bf16.mxu0 0
    %6000 = vmatpush1.bf16.msra.mxu0 %v5481
    %6001 = vmatprep.subr.bf16.mxu0 0
    %6002 = vmatpush1.bf16.msra.mxu0 %v5482
    %6003 = vmatprep.subr.bf16.mxu0 0
    %6004 = vmatpush1.bf16.msra.mxu0 %v5483
    %6005 = vmatprep.subr.bf16.mxu0 0
    %6006 = vmatpush1.bf16.msra.mxu0 %v5484
    %6007 = vmatprep.subr.bf16.mxu0 0
    %6008 = vmatpush1.bf16.msra.mxu0 %v5485
    %6009 = vmatprep.subr.bf16.mxu0 0
    %6010 = vmatpush1.bf16.msra.mxu0 %v5486
    %6011 = vmatprep.subr.bf16.mxu0 0
    %6012 = vmatpush1.bf16.msra.mxu0 %v5487
    %6013 = vmatprep.mubr.bf16.mxu0 %v4220
    %6014 = vmatmul.mubr.bf16.gmra.mrb[0].mxu0 %v4219
    %v6015 = vpop.f32.mrb[0].mxu0
    %v6016 = vadd.f32 %v5975, %v6015
    %v6017 = vpop.f32.mrb[0].mxu0
    %v6018 = vpop.f32.mrb[0].mxu0
    %v6019 = vadd.f32 %v5978, %v6018
    %v6020 = vpop.f32.mrb[0].mxu0
    %6021 = vdwg.mxu0
    %6022 = vmatprep.subr.bf16.mxu0 0
    %6023 = vmatpush1.bf16.msra.mxu0 %v5488
    %6024 = vmatprep.subr.bf16.mxu0 0
    %6025 = vmatpush1.bf16.msra.mxu0 %v5489
    %6026 = vmatprep.subr.bf16.mxu0 0
    %6027 = vmatpush1.bf16.msra.mxu0 %v5490
    %6028 = vmatprep.subr.bf16.mxu0 0
    %6029 = vmatpush1.bf16.msra.mxu0 %v5491
    %6030 = vmatprep.subr.bf16.mxu0 0
    %6031 = vmatpush1.bf16.msra.mxu0 %v5492
    %6032 = vmatprep.subr.bf16.mxu0 0
    %6033 = vmatpush1.bf16.msra.mxu0 %v5493
    %6034 = vmatprep.subr.bf16.mxu0 0
    %6035 = vmatpush1.bf16.msra.mxu0 %v5494
    %6036 = vmatprep.subr.bf16.mxu0 0
    %6037 = vmatpush1.bf16.msra.mxu0 %v5495
    %6038 = vmatprep.subr.bf16.mxu0 0
    %6039 = vmatpush1.bf16.msra.mxu0 %v5496
    %6040 = vmatprep.subr.bf16.mxu0 0
    %6041 = vmatpush1.bf16.msra.mxu0 %v5497
    %6042 = vmatprep.subr.bf16.mxu0 0
    %6043 = vmatpush1.bf16.msra.mxu0 %v5498
    %6044 = vmatprep.subr.bf16.mxu0 0
    %6045 = vmatpush1.bf16.msra.mxu0 %v5499
    %6046 = vmatprep.subr.bf16.mxu0 0
    %6047 = vmatpush1.bf16.msra.mxu0 %v5500
    %6048 = vmatprep.subr.bf16.mxu0 0
    %6049 = vmatpush1.bf16.msra.mxu0 %v5501
    %6050 = vmatprep.subr.bf16.mxu0 0
    %6051 = vmatpush1.bf16.msra.mxu0 %v5502
    %6052 = vmatprep.subr.bf16.mxu0 0
    %6053 = vmatpush1.bf16.msra.mxu0 %v5503
    %6054 = vmatprep.mubr.bf16.mxu0 %v4222
    %6055 = vmatmul.mubr.bf16.gmra.mrb[0].mxu0 %v4221
    %v6056 = vpop.f32.mrb[0].mxu0
    %v6057 = vadd.f32 %v6016, %v6056
    %v6058 = vpop.f32.mrb[0].mxu0
    %v6059 = vpop.f32.mrb[0].mxu0
    %v6060 = vadd.f32 %v6019, %v6059
    %v6061 = vpop.f32.mrb[0].mxu0
    %6062 = vdwg.mxu0
    %6063 = vmatprep.subr.bf16.mxu0 0
    %6064 = vmatpush1.bf16.msra.mxu0 %v5504
    %6065 = vmatprep.subr.bf16.mxu0 0
    %6066 = vmatpush1.bf16.msra.mxu0 %v5505
    %6067 = vmatprep.subr.bf16.mxu0 0
    %6068 = vmatpush1.bf16.msra.mxu0 %v5506
    %6069 = vmatprep.subr.bf16.mxu0 0
    %6070 = vmatpush1.bf16.msra.mxu0 %v5507
    %6071 = vmatprep.subr.bf16.mxu0 0
    %6072 = vmatpush1.bf16.msra.mxu0 %v5508
    %6073 = vmatprep.subr.bf16.mxu0 0
    %6074 = vmatpush1.bf16.msra.mxu0 %v5509
    %6075 = vmatprep.subr.bf16.mxu0 0
    %6076 = vmatpush1.bf16.msra.mxu0 %v5510
    %6077 = vmatprep.subr.bf16.mxu0 0
    %6078 = vmatpush1.bf16.msra.mxu0 %v5511
    %6079 = vmatprep.subr.bf16.mxu0 0
    %6080 = vmatpush1.bf16.msra.mxu0 %v5512
    %6081 = vmatprep.subr.bf16.mxu0 0
    %6082 = vmatpush1.bf16.msra.mxu0 %v5513
    %6083 = vmatprep.subr.bf16.mxu0 0
    %6084 = vmatpush1.bf16.msra.mxu0 %v5514
    %6085 = vmatprep.subr.bf16.mxu0 0
    %6086 = vmatpush1.bf16.msra.mxu0 %v5515
    %6087 = vmatprep.subr.bf16.mxu0 0
    %6088 = vmatpush1.bf16.msra.mxu0 %v5516
    %6089 = vmatprep.subr.bf16.mxu0 0
    %6090 = vmatpush1.bf16.msra.mxu0 %v5517
    %6091 = vmatprep.subr.bf16.mxu0 0
    %6092 = vmatpush1.bf16.msra.mxu0 %v5518
    %6093 = vmatprep.subr.bf16.mxu0 0
    %6094 = vmatpush1.bf16.msra.mxu0 %v5519
    %6095 = vmatprep.mubr.bf16.mxu0 %v4224
    %6096 = vmatmul.mubr.bf16.gmra.mrb[0].mxu0 %v4223
    %v6097 = vpop.f32.mrb[0].mxu0
    %v6098 = vadd.f32 %v6057, %v6097
    %v6099 = vpop.f32.mrb[0].mxu0
    %v6100 = vpop.f32.mrb[0].mxu0
    %v6101 = vadd.f32 %v6060, %v6100
    %v6102 = vpop.f32.mrb[0].mxu0
    %6103 = vdwg.mxu0
    %6104 = vmatprep.subr.bf16.mxu0 0
    %6105 = vmatpush1.bf16.msra.mxu0 %v5520
    %6106 = vmatprep.subr.bf16.mxu0 0
    %6107 = vmatpush1.bf16.msra.mxu0 %v5521
    %6108 = vmatprep.subr.bf16.mxu0 0
    %6109 = vmatpush1.bf16.msra.mxu0 %v5522
    %6110 = vmatprep.subr.bf16.mxu0 0
    %6111 = vmatpush1.bf16.msra.mxu0 %v5523
    %6112 = vmatprep.subr.bf16.mxu0 0
    %6113 = vmatpush1.bf16.msra.mxu0 %v5524
    %6114 = vmatprep.subr.bf16.mxu0 0
    %6115 = vmatpush1.bf16.msra.mxu0 %v5525
    %6116 = vmatprep.subr.bf16.mxu0 0
    %6117 = vmatpush1.bf16.msra.mxu0 %v5526
    %6118 = vmatprep.subr.bf16.mxu0 0
    %6119 = vmatpush1.bf16.msra.mxu0 %v5527
    %6120 = vmatprep.subr.bf16.mxu0 0
    %6121 = vmatpush1.bf16.msra.mxu0 %v5528
    %6122 = vmatprep.subr.bf16.mxu0 0
    %6123 = vmatpush1.bf16.msra.mxu0 %v5529
    %6124 = vmatprep.subr.bf16.mxu0 0
    %6125 = vmatpush1.bf16.msra.mxu0 %v5530
    %6126 = vmatprep.subr.bf16.mxu0 0
    %6127 = vmatpush1.bf16.msra.mxu0 %v5531
    %6128 = vmatprep.subr.bf16.mxu0 0
    %6129 = vmatpush1.bf16.msra.mxu0 %v5532
    %6130 = vmatprep.subr.bf16.mxu0 0
    %6131 = vmatpush1.bf16.msra.mxu0 %v5533
    %6132 = vmatprep.subr.bf16.mxu0 0
    %6133 = vmatpush1.bf16.msra.mxu0 %v5534
    %6134 = vmatprep.subr.bf16.mxu0 0
    %6135 = vmatpush1.bf16.msra.mxu0 %v5535
    %6136 = vmatprep.mubr.bf16.mxu0 %v4226
    %6137 = vmatmul.mubr.bf16.gmra.mrb[0].mxu0 %v4225
    %v6138 = vpop.f32.mrb[0].mxu0
    %v6139 = vadd.f32 %v6098, %v6138
    %v6140 = vpop.f32.mrb[0].mxu0
    %v6141 = vpop.f32.mrb[0].mxu0
    %v6142 = vadd.f32 %v6101, %v6141
    %v6143 = vpop.f32.mrb[0].mxu0
    %6144 = vdwg.mxu0
    %6145 = vmatprep.subr.bf16.mxu0 0
    %6146 = vmatpush1.bf16.msra.mxu0 %v5536
    %6147 = vmatprep.subr.bf16.mxu0 0
    %6148 = vmatpush1.bf16.msra.mxu0 %v5537
    %6149 = vmatprep.subr.bf16.mxu0 0
    %6150 = vmatpush1.bf16.msra.mxu0 %v5538
    %6151 = vmatprep.subr.bf16.mxu0 0
    %6152 = vmatpush1.bf16.msra.mxu0 %v5539
    %6153 = vmatprep.subr.bf16.mxu0 0
    %6154 = vmatpush1.bf16.msra.mxu0 %v5540
    %6155 = vmatprep.subr.bf16.mxu0 0
    %6156 = vmatpush1.bf16.msra.mxu0 %v5541
    %6157 = vmatprep.subr.bf16.mxu0 0
    %6158 = vmatpush1.bf16.msra.mxu0 %v5542
    %6159 = vmatprep.subr.bf16.mxu0 0
    %6160 = vmatpush1.bf16.msra.mxu0 %v5543
    %6161 = vmatprep.subr.bf16.mxu0 0
    %6162 = vmatpush1.bf16.msra.mxu0 %v5544
    %6163 = vmatprep.subr.bf16.mxu0 0
    %6164 = vmatpush1.bf16.msra.mxu0 %v5545
    %6165 = vmatprep.subr.bf16.mxu0 0
    %6166 = vmatpush1.bf16.msra.mxu0 %v5546
    %6167 = vmatprep.subr.bf16.mxu0 0
    %6168 = vmatpush1.bf16.msra.mxu0 %v5547
    %6169 = vmatprep.subr.bf16.mxu0 0
    %6170 = vmatpush1.bf16.msra.mxu0 %v5548
    %6171 = vmatprep.subr.bf16.mxu0 0
    %6172 = vmatpush1.bf16.msra.mxu0 %v5549
    %6173 = vmatprep.subr.bf16.mxu0 0
    %6174 = vmatpush1.bf16.msra.mxu0 %v5550
    %6175 = vmatprep.subr.bf16.mxu0 0
    %6176 = vmatpush1.bf16.msra.mxu0 %v5551
    %6177 = vmatprep.mubr.bf16.mxu0 %v4228
    %6178 = vmatmul.mubr.bf16.gmra.mrb[0].mxu0 %v4227
    %v6179 = vpop.f32.mrb[0].mxu0
    %v6180 = vadd.f32 %v6139, %v6179
    %v6181 = vpop.f32.mrb[0].mxu0
    %v6182 = vpop.f32.mrb[0].mxu0
    %v6183 = vadd.f32 %v6142, %v6182
    %v6184 = vpop.f32.mrb[0].mxu0
    %6185 = vdwg.mxu0
    %6186 = vmatprep.subr.bf16.mxu0 0
    %6187 = vmatpush1.bf16.msra.mxu0 %v5552
    %6188 = vmatprep.subr.bf16.mxu0 0
    %6189 = vmatpush1.bf16.msra.mxu0 %v5553
    %6190 = vmatprep.subr.bf16.mxu0 0
    %6191 = vmatpush1.bf16.msra.mxu0 %v5554
    %6192 = vmatprep.subr.bf16.mxu0 0
    %6193 = vmatpush1.bf16.msra.mxu0 %v5555
    %6194 = vmatprep.subr.bf16.mxu0 0
    %6195 = vmatpush1.bf16.msra.mxu0 %v5556
    %6196 = vmatprep.subr.bf16.mxu0 0
    %6197 = vmatpush1.bf16.msra.mxu0 %v5557
    %6198 = vmatprep.subr.bf16.mxu0 0
    %6199 = vmatpush1.bf16.msra.mxu0 %v5558
    %6200 = vmatprep.subr.bf16.mxu0 0
    %6201 = vmatpush1.bf16.msra.mxu0 %v5559
    %6202 = vmatprep.subr.bf16.mxu0 0
    %6203 = vmatpush1.bf16.msra.mxu0 %v5560
    %6204 = vmatprep.subr.bf16.mxu0 0
    %6205 = vmatpush1.bf16.msra.mxu0 %v5561
    %6206 = vmatprep.subr.bf16.mxu0 0
    %6207 = vmatpush1.bf16.msra.mxu0 %v5562
    %6208 = vmatprep.subr.bf16.mxu0 0
    %6209 = vmatpush1.bf16.msra.mxu0 %v5563
    %6210 = vmatprep.subr.bf16.mxu0 0
    %6211 = vmatpush1.bf16.msra.mxu0 %v5564
    %6212 = vmatprep.subr.bf16.mxu0 0
    %6213 = vmatpush1.bf16.msra.mxu0 %v5565
    %6214 = vmatprep.subr.bf16.mxu0 0
    %6215 = vmatpush1.bf16.msra.mxu0 %v5566
    %6216 = vmatprep.subr.bf16.mxu0 0
    %6217 = vmatpush1.bf16.msra.mxu0 %v5567
    %6218 = vmatprep.mubr.bf16.mxu0 %v4230
    %6219 = vmatmul.mubr.bf16.gmra.mrb[0].mxu0 %v4229
    %v6220 = vpop.f32.mrb[0].mxu0
    %v6221 = vadd.f32 %v6180, %v6220
    %v6222 = vpop.f32.mrb[0].mxu0
    %v6223 = vpop.f32.mrb[0].mxu0
    %v6224 = vadd.f32 %v6183, %v6223
    %v6225 = vpop.f32.mrb[0].mxu0
    %6226 = vdwg.mxu0
    %6227 = vmatprep.subr.bf16.mxu0 0
    %6228 = vmatpush1.bf16.msra.mxu0 %v5568
    %6229 = vmatprep.subr.bf16.mxu0 0
    %6230 = vmatpush1.bf16.msra.mxu0 %v5569
    %6231 = vmatprep.subr.bf16.mxu0 0
    %6232 = vmatpush1.bf16.msra.mxu0 %v5570
    %6233 = vmatprep.subr.bf16.mxu0 0
    %6234 = vmatpush1.bf16.msra.mxu0 %v5571
    %6235 = vmatprep.subr.bf16.mxu0 0
    %6236 = vmatpush1.bf16.msra.mxu0 %v5572
    %6237 = vmatprep.subr.bf16.mxu0 0
    %6238 = vmatpush1.bf16.msra.mxu0 %v5573
    %6239 = vmatprep.subr.bf16.mxu0 0
    %6240 = vmatpush1.bf16.msra.mxu0 %v5574
    %6241 = vmatprep.subr.bf16.mxu0 0
    %6242 = vmatpush1.bf16.msra.mxu0 %v5575
    %6243 = vmatprep.subr.bf16.mxu0 0
    %6244 = vmatpush1.bf16.msra.mxu0 %v5576
    %6245 = vmatprep.subr.bf16.mxu0 0
    %6246 = vmatpush1.bf16.msra.mxu0 %v5577
    %6247 = vmatprep.subr.bf16.mxu0 0
    %6248 = vmatpush1.bf16.msra.mxu0 %v5578
    %6249 = vmatprep.subr.bf16.mxu0 0
    %6250 = vmatpush1.bf16.msra.mxu0 %v5579
    %6251 = vmatprep.subr.bf16.mxu0 0
    %6252 = vmatpush1.bf16.msra.mxu0 %v5580
    %6253 = vmatprep.subr.bf16.mxu0 0
    %6254 = vmatpush1.bf16.msra.mxu0 %v5581
    %6255 = vmatprep.subr.bf16.mxu0 0
    %6256 = vmatpush1.bf16.msra.mxu0 %v5582
    %6257 = vmatprep.subr.bf16.mxu0 0
    %6258 = vmatpush1.bf16.msra.mxu0 %v5583
    %6259 = vmatprep.mubr.bf16.mxu0 %v4232
    %6260 = vmatmul.mubr.bf16.gmra.mrb[0].mxu0 %v4231
    %v6261 = vpop.f32.mrb[0].mxu0
    %v6262 = vadd.f32 %v6221, %v6261
    %v6263 = vpop.f32.mrb[0].mxu0
    %v6264 = vpop.f32.mrb[0].mxu0
    %v6265 = vadd.f32 %v6224, %v6264
    %v6266 = vpop.f32.mrb[0].mxu0
    %6267 = vdwg.mxu0
    %6268 = vst [vmem:[#allocation11] sm:$0xff] %v6262
    %6269 = vst [vmem:[#allocation11 + $0x8] sm:$0xff] %v6265
    // Predicated region
    $region42: #{tpu_custom_call.1} parent=1 // pred_check
      _
    $region43: #{tpu_custom_call.1} parent=1 // pred_check_branch
      %6271 = sbr.rel (0) target = $region45
    $region44: #{tpu_custom_call.1} parent=1 // pred_region
      %s6273 = ssub.s32 256, 256
      %6274 = vsyncadd [#allocation4], %s6273
      %s6275 = sshll.u32 [#allocation11], 4
      %s6276 = int_to_ptr.vmem [resolvable:$true] %s6275
      %6281 = dma.vmem_to_hbm [thread:$0]  %s6276, 256, %s5, [#allocation4], 128, 128, 8
    $region45: #{tpu_custom_call.1} parent=1 // pred_fallthru
      _
    // Predicated region
    $region46: #{tpu_custom_call.1} parent=1 // pred_check
      _
    $region47: #{tpu_custom_call.1} parent=1 // pred_check_branch
      %6283 = sbr.rel (0) target = $region49
    $region48: #{tpu_custom_call.1} parent=1 // pred_region
      %6284 = dma.done [#allocation4], 256
    $region49: #{tpu_custom_call.1} parent=1 // pred_fallthru
      _
    %6285 = vsyncpa [#allocation3], 1
    %6286 = vsyncpa [#allocation6], 1
    %6287 = vsyncpa [#allocation9], 1
    %6288 = vsyncpa [#allocation4], 1

</llo_original>
